<compile_context>
chip_gen: v6e
topology: v6e:2x2x1
jax: 0.10.0
libtpu: 0.0.40
codegen_flags: <defaults>
</compile_context>

<pallas_src>
import jax
import jax.numpy as jnp
from jax.experimental import pallas as pl
from jax.experimental.pallas import tpu as pltpu

HIDDEN = 128        # hidden_size (lane-aligned)
OUTPUT = 128        # output_size (decoder vocab / Linear out dim, lane-aligned)
SEQ = 8             # number of teacher-forced decode steps in the demo


def _make_decoder_kernel(T, H):
    """Build a single-invocation kernel that runs T decode steps."""

    def kernel(tok_ref,                     # SMEM (T,)   i32  scalar-prefetch tokens
               emb_ref,                     # VMEM (V, H)      embedding table
               h0_ref,                      # VMEM (1, H)      initial hidden
               wih_ref, whh_ref,            # VMEM (H, 3H)     GRU weights (pre-transposed)
               bih_ref, bhh_ref,            # VMEM (1, 3H)     GRU biases
               wout_ref,                    # VMEM (H, V)      out Linear weight (pre-transposed)
               bout_ref,                    # VMEM (1, V)      out Linear bias
               logp_ref,                    # VMEM (T, V)      log-probs (output)
               hout_ref,                    # VMEM (1, H)      final hidden (output)
               x_scr,                       # VMEM (T, H)      embedded+ReLU inputs (scratch)
               hs_scr):                     # VMEM (T, H)      per-step hidden states (scratch)
        # --- 1) Batched input path: gather + ReLU all T embedding rows. ------
        for t in range(T):
            tok = tok_ref[t]
            x_scr[pl.ds(t, 1), :] = jnp.maximum(emb_ref[pl.ds(tok, 1), :], 0.0)

        # One (T,H) @ (H,3H) MXU matmul for every step's input-gate pre-acts.
        gx_all = (jnp.dot(x_scr[...], wih_ref[...],
                          preferred_element_type=jnp.float32) + bih_ref[...])

        # --- 2) Serial GRU recurrence (PyTorch gate order: r, z, n). ---------
        h = h0_ref[...]                                          # (1, H)
        for t in range(T):
            gh = (jnp.dot(h, whh_ref[...],
                          preferred_element_type=jnp.float32) + bhh_ref[...])
            gx = gx_all[t:t + 1, :]                              # (1, 3H) static slice
            r = jax.nn.sigmoid(gx[:, 0:H] + gh[:, 0:H])
            z = jax.nn.sigmoid(gx[:, H:2 * H] + gh[:, H:2 * H])
            n = jnp.tanh(gx[:, 2 * H:3 * H] + r * gh[:, 2 * H:3 * H])
            h = (1.0 - z) * n + z * h
            hs_scr[pl.ds(t, 1), :] = h

        hout_ref[...] = h

        # --- 3) Batched output path: one projection + log-softmax over (T,V).
        logits = (jnp.dot(hs_scr[...], wout_ref[...],
                          preferred_element_type=jnp.float32) + bout_ref[...])
        m = jnp.max(logits, axis=-1, keepdims=True)
        shifted = logits - m
        lse = jnp.log(jnp.sum(jnp.exp(shifted), axis=-1, keepdims=True))
        logp_ref[...] = shifted - lse

    return kernel


def decoder_forward_fused(tokens, hidden0, params):
    """Fused teacher-forced decode in ONE pallas_call.

    tokens: (T,) int32; hidden0: (1, 1, H) f32.
    Returns (log_probs (T, 1, V), hidden (1, 1, H)); step t of log_probs equals
    Decoder.forward(tokens[t], h_t)[0].
    """
    emb, wih_t, whh_t, bih, bhh, wout_t, bout = params
    T = int(tokens.shape[0])
    V, H = emb.shape
    h2d = hidden0.reshape(1, H)

    const = lambda i, tok: (0, 0)   # grid=(1,): everything is resident in VMEM

    # TODO(synk): for large vocab (e.g. V=32K), keep emb / wout_t in HBM
    # (pl.BlockSpec(memory_space=pl.ANY)), gather one embedding row per step via
    # DMA driven by the token prefetch, and tile wout_t over the vocab dim so the
    # kernel survives v7x's 64 MiB VMEM.
    logp, hout = pl.pallas_call(
        _make_decoder_kernel(T, H),
        out_shape=(
            jax.ShapeDtypeStruct((T, V), jnp.float32),
            jax.ShapeDtypeStruct((1, H), jnp.float32),
        ),
        grid_spec=pltpu.PrefetchScalarGridSpec(
            num_scalar_prefetch=1,            # tokens -> SMEM
            grid=(1,),                        # single invocation; loop is in-kernel
            in_specs=[
                pl.BlockSpec((V, H), const),          # embedding table
                pl.BlockSpec((1, H), const),          # initial hidden
                pl.BlockSpec((H, 3 * H), const),      # W_ih^T
                pl.BlockSpec((H, 3 * H), const),      # W_hh^T
                pl.BlockSpec((1, 3 * H), const),      # b_ih
                pl.BlockSpec((1, 3 * H), const),      # b_hh
                pl.BlockSpec((H, V), const),          # W_out^T
                pl.BlockSpec((1, V), const),          # b_out
            ],
            out_specs=(
                pl.BlockSpec((T, V), const),          # dense (T,V) log-prob tile
                pl.BlockSpec((1, H), const),          # final hidden
            ),
            scratch_shapes=[
                pltpu.VMEM((T, H), jnp.float32),      # embedded inputs
                pltpu.VMEM((T, H), jnp.float32),      # per-step hidden states
            ],
        ),
        compiler_params=pltpu.CompilerParams(
            dimension_semantics=("arbitrary",)),
    )(tokens, emb, h2d, wih_t, whh_t, bih, bhh, wout_t, bout)

    return logp.reshape(T, 1, V), hout.reshape(1, 1, H)


def decoder_forward(token, hidden, params):
    """Exact Decoder.forward contract: token (1,) int32, hidden (1,1,H).
    Returns (log_probs (1, V), hidden (1, 1, H))."""
    logp, h_new = decoder_forward_fused(token.reshape(1), hidden, params)
    return logp[0], h_new


def init_params(key, hidden, output):
    """Deterministic init matching nn.Embedding / nn.GRU / nn.Linear shapes
    (GRU & Linear weights stored pre-transposed for lane-friendly x @ W)."""
    ks = jax.random.split(key, 7)
    bound = 1.0 / jnp.sqrt(hidden)
    emb = jax.random.normal(ks[0], (output, hidden), jnp.float32)
    wih_t = jax.random.uniform(ks[1], (hidden, 3 * hidden), jnp.float32, -bound, bound)
    whh_t = jax.random.uniform(ks[2], (hidden, 3 * hidden), jnp.float32, -bound, bound)
    bih = jax.random.uniform(ks[3], (1, 3 * hidden), jnp.float32, -bound, bound)
    bhh = jax.random.uniform(ks[4], (1, 3 * hidden), jnp.float32, -bound, bound)
    wout_t = jax.random.uniform(ks[5], (hidden, output), jnp.float32, -bound, bound)
    bout = jax.random.uniform(ks[6], (1, output), jnp.float32, -bound, bound)
    return emb, wih_t, whh_t, bih, bhh, wout_t, bout


def decoder_forward_ref(tokens, hidden0, params):
    """Pure-JAX reference: per-step PyTorch-Decoder semantics, teacher-forced."""
    emb, wih_t, whh_t, bih, bhh, wout_t, bout = params
    H = hidden0.shape[-1]
    h = hidden0.reshape(1, H)
    outs = []
    for t in range(tokens.shape[0]):
        x = jnp.maximum(emb[tokens[t]].reshape(1, H), 0.0)
        gx = x @ wih_t + bih
        gh = h @ whh_t + bhh
        r = jax.nn.sigmoid(gx[:, 0:H] + gh[:, 0:H])
        z = jax.nn.sigmoid(gx[:, H:2 * H] + gh[:, H:2 * H])
        n = jnp.tanh(gx[:, 2 * H:3 * H] + r * gh[:, 2 * H:3 * H])
        h = (1.0 - z) * n + z * h
        outs.append(jax.nn.log_softmax(h @ wout_t + bout, axis=-1))
    return jnp.stack(outs, axis=0), h.reshape(1, 1, H)


if __name__ == "__main__":
    root = jax.random.PRNGKey(0)
    k_params, k_tok = jax.random.split(root)
    params = init_params(k_params, HIDDEN, OUTPUT)

    tokens = jax.random.randint(k_tok, (SEQ,), 0, OUTPUT, dtype=jnp.int32)
    hidden0 = jnp.zeros((1, 1, HIDDEN), jnp.float32)        # Decoder.init_hidden()

    # Fused decode: T GRU+Linear+LogSoftmax steps in a single pallas_call.
    logp, hidden_T = decoder_forward_fused(tokens, hidden0, params)
    jax.block_until_ready((logp, hidden_T))

    ref_logp, ref_hidden = decoder_forward_ref(tokens, hidden0, params)
    assert logp.shape == (SEQ, 1, OUTPUT) and hidden_T.shape == (1, 1, HIDDEN)
    assert jnp.allclose(logp, ref_logp, atol=1e-4), "log-prob mismatch vs reference"
    assert jnp.allclose(hidden_T, ref_hidden, atol=1e-4), "hidden mismatch vs reference"

    # Single-step call matching the exact Decoder.forward signature.
    out1, hid1 = decoder_forward(tokens[:1], hidden0, params)
    ref1, ref_h1 = decoder_forward_ref(tokens[:1], hidden0, params)
    assert out1.shape == (1, OUTPUT) and hid1.shape == (1, 1, HIDDEN)
    assert jnp.allclose(out1, ref1[0], atol=1e-4), "single-step output mismatch"
    assert jnp.allclose(hid1, ref_h1, atol=1e-4), "single-step hidden mismatch"

    print("KERNEL_OK")
</pallas_src>

<mosaic_0001>
module attributes {stable_mosaic.version = 11 : i64} {
  func.func @kernel(%arg0: i32, %arg1: memref<8xi32, #tpu.memory_space<smem>>, %arg2: memref<128x128xf32, #tpu.memory_space<vmem>>, %arg3: memref<1x128xf32, #tpu.memory_space<vmem>>, %arg4: memref<128x384xf32, #tpu.memory_space<vmem>>, %arg5: memref<128x384xf32, #tpu.memory_space<vmem>>, %arg6: memref<1x384xf32, #tpu.memory_space<vmem>>, %arg7: memref<1x384xf32, #tpu.memory_space<vmem>>, %arg8: memref<128x128xf32, #tpu.memory_space<vmem>>, %arg9: memref<1x128xf32, #tpu.memory_space<vmem>>, %arg10: memref<8x128xf32, #tpu.memory_space<vmem>>, %arg11: memref<1x128xf32, #tpu.memory_space<vmem>>, %arg12: memref<8x128xf32, #tpu.memory_space<vmem>>, %arg13: memref<8x128xf32, #tpu.memory_space<vmem>>) attributes {dimension_semantics = [#tpu.dimension_semantics<arbitrary>], iteration_bounds = array<i64: 1>, scalar_prefetch = 1 : i64, scratch_operands = 2 : i64, tpu.core_type = #tpu.core_type<tc>, window_params = [{pipeline_mode = #tpu.pipeline_mode<synchronous>, transform_indices = @transform_0, window_bounds = array<i64: 128, 128>}, {pipeline_mode = #tpu.pipeline_mode<synchronous>, transform_indices = @transform_1, window_bounds = array<i64: 1, 128>}, {pipeline_mode = #tpu.pipeline_mode<synchronous>, transform_indices = @transform_2, window_bounds = array<i64: 128, 384>}, {pipeline_mode = #tpu.pipeline_mode<synchronous>, transform_indices = @transform_3, window_bounds = array<i64: 128, 384>}, {pipeline_mode = #tpu.pipeline_mode<synchronous>, transform_indices = @transform_4, window_bounds = array<i64: 1, 384>}, {pipeline_mode = #tpu.pipeline_mode<synchronous>, transform_indices = @transform_5, window_bounds = array<i64: 1, 384>}, {pipeline_mode = #tpu.pipeline_mode<synchronous>, transform_indices = @transform_6, window_bounds = array<i64: 128, 128>}, {pipeline_mode = #tpu.pipeline_mode<synchronous>, transform_indices = @transform_7, window_bounds = array<i64: 1, 128>}, {pipeline_mode = #tpu.pipeline_mode<synchronous>, transform_indices = @transform_8, window_bounds = array<i64: 8, 128>}, {pipeline_mode = #tpu.pipeline_mode<synchronous>, transform_indices = @transform_9, window_bounds = array<i64: 1, 128>}]} {
    %c0 = arith.constant 0 : index
    %0 = memref.load %arg1[%c0] : memref<8xi32, #tpu.memory_space<smem>>
    %1 = arith.index_cast %0 : i32 to index
    %c0_0 = arith.constant 0 : index
    %2 = vector.load %arg2[%1, %c0_0] : memref<128x128xf32, #tpu.memory_space<vmem>>, vector<1x128xf32>
    %cst = arith.constant 0.000000e+00 : f32
    %3 = vector.broadcast %cst : f32 to vector<1x128xf32>
    %4 = arith.maximumf %2, %3 : vector<1x128xf32>
    %c0_1 = arith.constant 0 : index
    %c0_2 = arith.constant 0 : index
    %5 = vector.load %arg12[%c0_1, %c0_2] : memref<8x128xf32, #tpu.memory_space<vmem>>, vector<1x128xf32>
    tpu.vector_store %arg12[%c0_1, %c0_2], %4 {strides = array<i32>} : memref<8x128xf32, #tpu.memory_space<vmem>>, vector<1x128xf32>,
    %c1 = arith.constant 1 : index
    %6 = memref.load %arg1[%c1] : memref<8xi32, #tpu.memory_space<smem>>
    %7 = arith.index_cast %6 : i32 to index
    %c0_3 = arith.constant 0 : index
    %8 = vector.load %arg2[%7, %c0_3] : memref<128x128xf32, #tpu.memory_space<vmem>>, vector<1x128xf32>
    %cst_4 = arith.constant 0.000000e+00 : f32
    %9 = vector.broadcast %cst_4 : f32 to vector<1x128xf32>
    %10 = arith.maximumf %8, %9 : vector<1x128xf32>
    %c1_5 = arith.constant 1 : index
    %c0_6 = arith.constant 0 : index
    %11 = vector.load %arg12[%c1_5, %c0_6] : memref<8x128xf32, #tpu.memory_space<vmem>>, vector<1x128xf32>
    tpu.vector_store %arg12[%c1_5, %c0_6], %10 {strides = array<i32>} : memref<8x128xf32, #tpu.memory_space<vmem>>, vector<1x128xf32>,
    %c2 = arith.constant 2 : index
    %12 = memref.load %arg1[%c2] : memref<8xi32, #tpu.memory_space<smem>>
    %13 = arith.index_cast %12 : i32 to index
    %c0_7 = arith.constant 0 : index
    %14 = vector.load %arg2[%13, %c0_7] : memref<128x128xf32, #tpu.memory_space<vmem>>, vector<1x128xf32>
    %cst_8 = arith.constant 0.000000e+00 : f32
    %15 = vector.broadcast %cst_8 : f32 to vector<1x128xf32>
    %16 = arith.maximumf %14, %15 : vector<1x128xf32>
    %c2_9 = arith.constant 2 : index
    %c0_10 = arith.constant 0 : index
    %17 = vector.load %arg12[%c2_9, %c0_10] : memref<8x128xf32, #tpu.memory_space<vmem>>, vector<1x128xf32>
    tpu.vector_store %arg12[%c2_9, %c0_10], %16 {strides = array<i32>} : memref<8x128xf32, #tpu.memory_space<vmem>>, vector<1x128xf32>,
    %c3 = arith.constant 3 : index
    %18 = memref.load %arg1[%c3] : memref<8xi32, #tpu.memory_space<smem>>
    %19 = arith.index_cast %18 : i32 to index
    %c0_11 = arith.constant 0 : index
    %20 = vector.load %arg2[%19, %c0_11] : memref<128x128xf32, #tpu.memory_space<vmem>>, vector<1x128xf32>
    %cst_12 = arith.constant 0.000000e+00 : f32
    %21 = vector.broadcast %cst_12 : f32 to vector<1x128xf32>
    %22 = arith.maximumf %20, %21 : vector<1x128xf32>
    %c3_13 = arith.constant 3 : index
    %c0_14 = arith.constant 0 : index
    %23 = vector.load %arg12[%c3_13, %c0_14] : memref<8x128xf32, #tpu.memory_space<vmem>>, vector<1x128xf32>
    tpu.vector_store %arg12[%c3_13, %c0_14], %22 {strides = array<i32>} : memref<8x128xf32, #tpu.memory_space<vmem>>, vector<1x128xf32>,
    %c4 = arith.constant 4 : index
    %24 = memref.load %arg1[%c4] : memref<8xi32, #tpu.memory_space<smem>>
    %25 = arith.index_cast %24 : i32 to index
    %c0_15 = arith.constant 0 : index
    %26 = vector.load %arg2[%25, %c0_15] : memref<128x128xf32, #tpu.memory_space<vmem>>, vector<1x128xf32>
    %cst_16 = arith.constant 0.000000e+00 : f32
    %27 = vector.broadcast %cst_16 : f32 to vector<1x128xf32>
    %28 = arith.maximumf %26, %27 : vector<1x128xf32>
    %c4_17 = arith.constant 4 : index
    %c0_18 = arith.constant 0 : index
    %29 = vector.load %arg12[%c4_17, %c0_18] : memref<8x128xf32, #tpu.memory_space<vmem>>, vector<1x128xf32>
    tpu.vector_store %arg12[%c4_17, %c0_18], %28 {strides = array<i32>} : memref<8x128xf32, #tpu.memory_space<vmem>>, vector<1x128xf32>,
    %c5 = arith.constant 5 : index
    %30 = memref.load %arg1[%c5] : memref<8xi32, #tpu.memory_space<smem>>
    %31 = arith.index_cast %30 : i32 to index
    %c0_19 = arith.constant 0 : index
    %32 = vector.load %arg2[%31, %c0_19] : memref<128x128xf32, #tpu.memory_space<vmem>>, vector<1x128xf32>
    %cst_20 = arith.constant 0.000000e+00 : f32
    %33 = vector.broadcast %cst_20 : f32 to vector<1x128xf32>
    %34 = arith.maximumf %32, %33 : vector<1x128xf32>
    %c5_21 = arith.constant 5 : index
    %c0_22 = arith.constant 0 : index
    %35 = vector.load %arg12[%c5_21, %c0_22] : memref<8x128xf32, #tpu.memory_space<vmem>>, vector<1x128xf32>
    tpu.vector_store %arg12[%c5_21, %c0_22], %34 {strides = array<i32>} : memref<8x128xf32, #tpu.memory_space<vmem>>, vector<1x128xf32>,
    %c6 = arith.constant 6 : index
    %36 = memref.load %arg1[%c6] : memref<8xi32, #tpu.memory_space<smem>>
    %37 = arith.index_cast %36 : i32 to index
    %c0_23 = arith.constant 0 : index
    %38 = vector.load %arg2[%37, %c0_23] : memref<128x128xf32, #tpu.memory_space<vmem>>, vector<1x128xf32>
    %cst_24 = arith.constant 0.000000e+00 : f32
    %39 = vector.broadcast %cst_24 : f32 to vector<1x128xf32>
    %40 = arith.maximumf %38, %39 : vector<1x128xf32>
    %c6_25 = arith.constant 6 : index
    %c0_26 = arith.constant 0 : index
    %41 = vector.load %arg12[%c6_25, %c0_26] : memref<8x128xf32, #tpu.memory_space<vmem>>, vector<1x128xf32>
    tpu.vector_store %arg12[%c6_25, %c0_26], %40 {strides = array<i32>} : memref<8x128xf32, #tpu.memory_space<vmem>>, vector<1x128xf32>,
    %c7 = arith.constant 7 : index
    %42 = memref.load %arg1[%c7] : memref<8xi32, #tpu.memory_space<smem>>
    %43 = arith.index_cast %42 : i32 to index
    %c0_27 = arith.constant 0 : index
    %44 = vector.load %arg2[%43, %c0_27] : memref<128x128xf32, #tpu.memory_space<vmem>>, vector<1x128xf32>
    %cst_28 = arith.constant 0.000000e+00 : f32
    %45 = vector.broadcast %cst_28 : f32 to vector<1x128xf32>
    %46 = arith.maximumf %44, %45 : vector<1x128xf32>
    %c7_29 = arith.constant 7 : index
    %c0_30 = arith.constant 0 : index
    %47 = vector.load %arg12[%c7_29, %c0_30] : memref<8x128xf32, #tpu.memory_space<vmem>>, vector<1x128xf32>
    tpu.vector_store %arg12[%c7_29, %c0_30], %46 {strides = array<i32>} : memref<8x128xf32, #tpu.memory_space<vmem>>, vector<1x128xf32>,
    %c0_31 = arith.constant 0 : index
    %c0_32 = arith.constant 0 : index
    %48 = vector.load %arg12[%c0_31, %c0_32] : memref<8x128xf32, #tpu.memory_space<vmem>>, vector<8x128xf32>
    %c0_33 = arith.constant 0 : index
    %c0_34 = arith.constant 0 : index
    %49 = vector.load %arg4[%c0_33, %c0_34] : memref<128x384xf32, #tpu.memory_space<vmem>>, vector<128x384xf32>
    %cst_35 = arith.constant dense<0.000000e+00> : vector<8x384xf32>
    %50 = tpu.matmul %48, %49, %cst_35 {dimension_numbers = #tpu.dot_dimension_numbers<[1], [0], [0], [1], [0, 0, 1, 1], [], []>} : vector<8x128xf32>, vector<128x384xf32>, vector<8x384xf32> -> vector<8x384xf32>
    %c0_36 = arith.constant 0 : index
    %c0_37 = arith.constant 0 : index
    %51 = vector.load %arg6[%c0_36, %c0_37] : memref<1x384xf32, #tpu.memory_space<vmem>>, vector<1x384xf32>
    %52 = vector.broadcast %51 : vector<1x384xf32> to vector<8x384xf32>
    %53 = arith.addf %50, %52 : vector<8x384xf32>
    %c0_38 = arith.constant 0 : index
    %c0_39 = arith.constant 0 : index
    %54 = vector.load %arg3[%c0_38, %c0_39] : memref<1x128xf32, #tpu.memory_space<vmem>>, vector<1x128xf32>
    %c0_40 = arith.constant 0 : index
    %c0_41 = arith.constant 0 : index
    %55 = vector.load %arg5[%c0_40, %c0_41] : memref<128x384xf32, #tpu.memory_space<vmem>>, vector<128x384xf32>
    %cst_42 = arith.constant dense<0.000000e+00> : vector<1x384xf32>
    %56 = tpu.matmul %54, %55, %cst_42 {dimension_numbers = #tpu.dot_dimension_numbers<[1], [0], [0], [1], [0, 0, 1, 1], [], []>} : vector<1x128xf32>, vector<128x384xf32>, vector<1x384xf32> -> vector<1x384xf32>
    %c0_43 = arith.constant 0 : index
    %c0_44 = arith.constant 0 : index
    %57 = vector.load %arg7[%c0_43, %c0_44] : memref<1x384xf32, #tpu.memory_space<vmem>>, vector<1x384xf32>
    %58 = arith.addf %56, %57 : vector<1x384xf32>
    %59 = vector.extract_strided_slice %53 {offsets = [0, 0], sizes = [1, 384], strides = [1, 1]} : vector<8x384xf32> to vector<1x384xf32>
    %60 = vector.extract_strided_slice %59 {offsets = [0, 0], sizes = [1, 128], strides = [1, 1]} : vector<1x384xf32> to vector<1x128xf32>
    %61 = vector.extract_strided_slice %58 {offsets = [0, 0], sizes = [1, 128], strides = [1, 1]} : vector<1x384xf32> to vector<1x128xf32>
    %62 = arith.addf %60, %61 : vector<1x128xf32>
    %63 = arith.negf %62 : vector<1x128xf32>
    %64 = math.exp %63 : vector<1x128xf32>
    %cst_45 = arith.constant 1.000000e+00 : f32
    %65 = vector.broadcast %cst_45 : f32 to vector<1x128xf32>
    %66 = arith.addf %65, %64 : vector<1x128xf32>
    %67 = arith.divf %65, %66 : vector<1x128xf32>
    %68 = vector.extract_strided_slice %59 {offsets = [0, 128], sizes = [1, 128], strides = [1, 1]} : vector<1x384xf32> to vector<1x128xf32>
    %69 = vector.extract_strided_slice %58 {offsets = [0, 128], sizes = [1, 128], strides = [1, 1]} : vector<1x384xf32> to vector<1x128xf32>
    %70 = arith.addf %68, %69 : vector<1x128xf32>
    %71 = arith.negf %70 : vector<1x128xf32>
    %72 = math.exp %71 : vector<1x128xf32>
    %cst_46 = arith.constant 1.000000e+00 : f32
    %73 = vector.broadcast %cst_46 : f32 to vector<1x128xf32>
    %74 = arith.addf %73, %72 : vector<1x128xf32>
    %75 = arith.divf %73, %74 : vector<1x128xf32>
    %76 = vector.extract_strided_slice %59 {offsets = [0, 256], sizes = [1, 128], strides = [1, 1]} : vector<1x384xf32> to vector<1x128xf32>
    %77 = vector.extract_strided_slice %58 {offsets = [0, 256], sizes = [1, 128], strides = [1, 1]} : vector<1x384xf32> to vector<1x128xf32>
    %78 = arith.mulf %67, %77 : vector<1x128xf32>
    %79 = arith.addf %76, %78 : vector<1x128xf32>
    %80 = math.tanh %79 : vector<1x128xf32>
    %cst_47 = arith.constant 1.000000e+00 : f32
    %81 = vector.broadcast %cst_47 : f32 to vector<1x128xf32>
    %82 = arith.subf %81, %75 : vector<1x128xf32>
    %83 = arith.mulf %82, %80 : vector<1x128xf32>
    %84 = arith.mulf %75, %54 : vector<1x128xf32>
    %85 = arith.addf %83, %84 : vector<1x128xf32>
    %c0_48 = arith.constant 0 : index
    %c0_49 = arith.constant 0 : index
    %86 = vector.load %arg13[%c0_48, %c0_49] : memref<8x128xf32, #tpu.memory_space<vmem>>, vector<1x128xf32>
    tpu.vector_store %arg13[%c0_48, %c0_49], %85 {strides = array<i32>} : memref<8x128xf32, #tpu.memory_space<vmem>>, vector<1x128xf32>,
    %c0_50 = arith.constant 0 : index
    %c0_51 = arith.constant 0 : index
    %87 = vector.load %arg5[%c0_50, %c0_51] : memref<128x384xf32, #tpu.memory_space<vmem>>, vector<128x384xf32>
    %cst_52 = arith.constant dense<0.000000e+00> : vector<1x384xf32>
    %88 = tpu.matmul %85, %87, %cst_52 {dimension_numbers = #tpu.dot_dimension_numbers<[1], [0], [0], [1], [0, 0, 1, 1], [], []>} : vector<1x128xf32>, vector<128x384xf32>, vector<1x384xf32> -> vector<1x384xf32>
    %c0_53 = arith.constant 0 : index
    %c0_54 = arith.constant 0 : index
    %89 = vector.load %arg7[%c0_53, %c0_54] : memref<1x384xf32, #tpu.memory_space<vmem>>, vector<1x384xf32>
    %90 = arith.addf %88, %89 : vector<1x384xf32>
    %91 = vector.extract_strided_slice %53 {offsets = [1, 0], sizes = [1, 384], strides = [1, 1]} : vector<8x384xf32> to vector<1x384xf32>
    %92 = vector.extract_strided_slice %91 {offsets = [0, 0], sizes = [1, 128], strides = [1, 1]} : vector<1x384xf32> to vector<1x128xf32>
    %93 = vector.extract_strided_slice %90 {offsets = [0, 0], sizes = [1, 128], strides = [1, 1]} : vector<1x384xf32> to vector<1x128xf32>
    %94 = arith.addf %92, %93 : vector<1x128xf32>
    %95 = arith.negf %94 : vector<1x128xf32>
    %96 = math.exp %95 : vector<1x128xf32>
    %cst_55 = arith.constant 1.000000e+00 : f32
    %97 = vector.broadcast %cst_55 : f32 to vector<1x128xf32>
    %98 = arith.addf %97, %96 : vector<1x128xf32>
    %99 = arith.divf %97, %98 : vector<1x128xf32>
    %100 = vector.extract_strided_slice %91 {offsets = [0, 128], sizes = [1, 128], strides = [1, 1]} : vector<1x384xf32> to vector<1x128xf32>
    %101 = vector.extract_strided_slice %90 {offsets = [0, 128], sizes = [1, 128], strides = [1, 1]} : vector<1x384xf32> to vector<1x128xf32>
    %102 = arith.addf %100, %101 : vector<1x128xf32>
    %103 = arith.negf %102 : vector<1x128xf32>
    %104 = math.exp %103 : vector<1x128xf32>
    %cst_56 = arith.constant 1.000000e+00 : f32
    %105 = vector.broadcast %cst_56 : f32 to vector<1x128xf32>
    %106 = arith.addf %105, %104 : vector<1x128xf32>
    %107 = arith.divf %105, %106 : vector<1x128xf32>
    %108 = vector.extract_strided_slice %91 {offsets = [0, 256], sizes = [1, 128], strides = [1, 1]} : vector<1x384xf32> to vector<1x128xf32>
    %109 = vector.extract_strided_slice %90 {offsets = [0, 256], sizes = [1, 128], strides = [1, 1]} : vector<1x384xf32> to vector<1x128xf32>
    %110 = arith.mulf %99, %109 : vector<1x128xf32>
    %111 = arith.addf %108, %110 : vector<1x128xf32>
    %112 = math.tanh %111 : vector<1x128xf32>
    %cst_57 = arith.constant 1.000000e+00 : f32
    %113 = vector.broadcast %cst_57 : f32 to vector<1x128xf32>
    %114 = arith.subf %113, %107 : vector<1x128xf32>
    %115 = arith.mulf %114, %112 : vector<1x128xf32>
    %116 = arith.mulf %107, %85 : vector<1x128xf32>
    %117 = arith.addf %115, %116 : vector<1x128xf32>
    %c1_58 = arith.constant 1 : index
    %c0_59 = arith.constant 0 : index
    %118 = vector.load %arg13[%c1_58, %c0_59] : memref<8x128xf32, #tpu.memory_space<vmem>>, vector<1x128xf32>
    tpu.vector_store %arg13[%c1_58, %c0_59], %117 {strides = array<i32>} : memref<8x128xf32, #tpu.memory_space<vmem>>, vector<1x128xf32>,
    %c0_60 = arith.constant 0 : index
    %c0_61 = arith.constant 0 : index
    %119 = vector.load %arg5[%c0_60, %c0_61] : memref<128x384xf32, #tpu.memory_space<vmem>>, vector<128x384xf32>
    %cst_62 = arith.constant dense<0.000000e+00> : vector<1x384xf32>
    %120 = tpu.matmul %117, %119, %cst_62 {dimension_numbers = #tpu.dot_dimension_numbers<[1], [0], [0], [1], [0, 0, 1, 1], [], []>} : vector<1x128xf32>, vector<128x384xf32>, vector<1x384xf32> -> vector<1x384xf32>
    %c0_63 = arith.constant 0 : index
    %c0_64 = arith.constant 0 : index
    %121 = vector.load %arg7[%c0_63, %c0_64] : memref<1x384xf32, #tpu.memory_space<vmem>>, vector<1x384xf32>
    %122 = arith.addf %120, %121 : vector<1x384xf32>
    %123 = vector.extract_strided_slice %53 {offsets = [2, 0], sizes = [1, 384], strides = [1, 1]} : vector<8x384xf32> to vector<1x384xf32>
    %124 = vector.extract_strided_slice %123 {offsets = [0, 0], sizes = [1, 128], strides = [1, 1]} : vector<1x384xf32> to vector<1x128xf32>
    %125 = vector.extract_strided_slice %122 {offsets = [0, 0], sizes = [1, 128], strides = [1, 1]} : vector<1x384xf32> to vector<1x128xf32>
    %126 = arith.addf %124, %125 : vector<1x128xf32>
    %127 = arith.negf %126 : vector<1x128xf32>
    %128 = math.exp %127 : vector<1x128xf32>
    %cst_65 = arith.constant 1.000000e+00 : f32
    %129 = vector.broadcast %cst_65 : f32 to vector<1x128xf32>
    %130 = arith.addf %129, %128 : vector<1x128xf32>
    %131 = arith.divf %129, %130 : vector<1x128xf32>
    %132 = vector.extract_strided_slice %123 {offsets = [0, 128], sizes = [1, 128], strides = [1, 1]} : vector<1x384xf32> to vector<1x128xf32>
    %133 = vector.extract_strided_slice %122 {offsets = [0, 128], sizes = [1, 128], strides = [1, 1]} : vector<1x384xf32> to vector<1x128xf32>
    %134 = arith.addf %132, %133 : vector<1x128xf32>
    %135 = arith.negf %134 : vector<1x128xf32>
    %136 = math.exp %135 : vector<1x128xf32>
    %cst_66 = arith.constant 1.000000e+00 : f32
    %137 = vector.broadcast %cst_66 : f32 to vector<1x128xf32>
    %138 = arith.addf %137, %136 : vector<1x128xf32>
    %139 = arith.divf %137, %138 : vector<1x128xf32>
    %140 = vector.extract_strided_slice %123 {offsets = [0, 256], sizes = [1, 128], strides = [1, 1]} : vector<1x384xf32> to vector<1x128xf32>
    %141 = vector.extract_strided_slice %122 {offsets = [0, 256], sizes = [1, 128], strides = [1, 1]} : vector<1x384xf32> to vector<1x128xf32>
    %142 = arith.mulf %131, %141 : vector<1x128xf32>
    %143 = arith.addf %140, %142 : vector<1x128xf32>
    %144 = math.tanh %143 : vector<1x128xf32>
    %cst_67 = arith.constant 1.000000e+00 : f32
    %145 = vector.broadcast %cst_67 : f32 to vector<1x128xf32>
    %146 = arith.subf %145, %139 : vector<1x128xf32>
    %147 = arith.mulf %146, %144 : vector<1x128xf32>
    %148 = arith.mulf %139, %117 : vector<1x128xf32>
    %149 = arith.addf %147, %148 : vector<1x128xf32>
    %c2_68 = arith.constant 2 : index
    %c0_69 = arith.constant 0 : index
    %150 = vector.load %arg13[%c2_68, %c0_69] : memref<8x128xf32, #tpu.memory_space<vmem>>, vector<1x128xf32>
    tpu.vector_store %arg13[%c2_68, %c0_69], %149 {strides = array<i32>} : memref<8x128xf32, #tpu.memory_space<vmem>>, vector<1x128xf32>,
    %c0_70 = arith.constant 0 : index
    %c0_71 = arith.constant 0 : index
    %151 = vector.load %arg5[%c0_70, %c0_71] : memref<128x384xf32, #tpu.memory_space<vmem>>, vector<128x384xf32>
    %cst_72 = arith.constant dense<0.000000e+00> : vector<1x384xf32>
    %152 = tpu.matmul %149, %151, %cst_72 {dimension_numbers = #tpu.dot_dimension_numbers<[1], [0], [0], [1], [0, 0, 1, 1], [], []>} : vector<1x128xf32>, vector<128x384xf32>, vector<1x384xf32> -> vector<1x384xf32>
    %c0_73 = arith.constant 0 : index
    %c0_74 = arith.constant 0 : index
    %153 = vector.load %arg7[%c0_73, %c0_74] : memref<1x384xf32, #tpu.memory_space<vmem>>, vector<1x384xf32>
    %154 = arith.addf %152, %153 : vector<1x384xf32>
    %155 = vector.extract_strided_slice %53 {offsets = [3, 0], sizes = [1, 384], strides = [1, 1]} : vector<8x384xf32> to vector<1x384xf32>
    %156 = vector.extract_strided_slice %155 {offsets = [0, 0], sizes = [1, 128], strides = [1, 1]} : vector<1x384xf32> to vector<1x128xf32>
    %157 = vector.extract_strided_slice %154 {offsets = [0, 0], sizes = [1, 128], strides = [1, 1]} : vector<1x384xf32> to vector<1x128xf32>
    %158 = arith.addf %156, %157 : vector<1x128xf32>
    %159 = arith.negf %158 : vector<1x128xf32>
    %160 = math.exp %159 : vector<1x128xf32>
    %cst_75 = arith.constant 1.000000e+00 : f32
    %161 = vector.broadcast %cst_75 : f32 to vector<1x128xf32>
    %162 = arith.addf %161, %160 : vector<1x128xf32>
    %163 = arith.divf %161, %162 : vector<1x128xf32>
    %164 = vector.extract_strided_slice %155 {offsets = [0, 128], sizes = [1, 128], strides = [1, 1]} : vector<1x384xf32> to vector<1x128xf32>
    %165 = vector.extract_strided_slice %154 {offsets = [0, 128], sizes = [1, 128], strides = [1, 1]} : vector<1x384xf32> to vector<1x128xf32>
    %166 = arith.addf %164, %165 : vector<1x128xf32>
    %167 = arith.negf %166 : vector<1x128xf32>
    %168 = math.exp %167 : vector<1x128xf32>
    %cst_76 = arith.constant 1.000000e+00 : f32
    %169 = vector.broadcast %cst_76 : f32 to vector<1x128xf32>
    %170 = arith.addf %169, %168 : vector<1x128xf32>
    %171 = arith.divf %169, %170 : vector<1x128xf32>
    %172 = vector.extract_strided_slice %155 {offsets = [0, 256], sizes = [1, 128], strides = [1, 1]} : vector<1x384xf32> to vector<1x128xf32>
    %173 = vector.extract_strided_slice %154 {offsets = [0, 256], sizes = [1, 128], strides = [1, 1]} : vector<1x384xf32> to vector<1x128xf32>
    %174 = arith.mulf %163, %173 : vector<1x128xf32>
    %175 = arith.addf %172, %174 : vector<1x128xf32>
    %176 = math.tanh %175 : vector<1x128xf32>
    %cst_77 = arith.constant 1.000000e+00 : f32
    %177 = vector.broadcast %cst_77 : f32 to vector<1x128xf32>
    %178 = arith.subf %177, %171 : vector<1x128xf32>
    %179 = arith.mulf %178, %176 : vector<1x128xf32>
    %180 = arith.mulf %171, %149 : vector<1x128xf32>
    %181 = arith.addf %179, %180 : vector<1x128xf32>
    %c3_78 = arith.constant 3 : index
    %c0_79 = arith.constant 0 : index
    %182 = vector.load %arg13[%c3_78, %c0_79] : memref<8x128xf32, #tpu.memory_space<vmem>>, vector<1x128xf32>
    tpu.vector_store %arg13[%c3_78, %c0_79], %181 {strides = array<i32>} : memref<8x128xf32, #tpu.memory_space<vmem>>, vector<1x128xf32>,
    %c0_80 = arith.constant 0 : index
    %c0_81 = arith.constant 0 : index
    %183 = vector.load %arg5[%c0_80, %c0_81] : memref<128x384xf32, #tpu.memory_space<vmem>>, vector<128x384xf32>
    %cst_82 = arith.constant dense<0.000000e+00> : vector<1x384xf32>
    %184 = tpu.matmul %181, %183, %cst_82 {dimension_numbers = #tpu.dot_dimension_numbers<[1], [0], [0], [1], [0, 0, 1, 1], [], []>} : vector<1x128xf32>, vector<128x384xf32>, vector<1x384xf32> -> vector<1x384xf32>
    %c0_83 = arith.constant 0 : index
    %c0_84 = arith.constant 0 : index
    %185 = vector.load %arg7[%c0_83, %c0_84] : memref<1x384xf32, #tpu.memory_space<vmem>>, vector<1x384xf32>
    %186 = arith.addf %184, %185 : vector<1x384xf32>
    %187 = vector.extract_strided_slice %53 {offsets = [4, 0], sizes = [1, 384], strides = [1, 1]} : vector<8x384xf32> to vector<1x384xf32>
    %188 = vector.extract_strided_slice %187 {offsets = [0, 0], sizes = [1, 128], strides = [1, 1]} : vector<1x384xf32> to vector<1x128xf32>
    %189 = vector.extract_strided_slice %186 {offsets = [0, 0], sizes = [1, 128], strides = [1, 1]} : vector<1x384xf32> to vector<1x128xf32>
    %190 = arith.addf %188, %189 : vector<1x128xf32>
    %191 = arith.negf %190 : vector<1x128xf32>
    %192 = math.exp %191 : vector<1x128xf32>
    %cst_85 = arith.constant 1.000000e+00 : f32
    %193 = vector.broadcast %cst_85 : f32 to vector<1x128xf32>
    %194 = arith.addf %193, %192 : vector<1x128xf32>
    %195 = arith.divf %193, %194 : vector<1x128xf32>
    %196 = vector.extract_strided_slice %187 {offsets = [0, 128], sizes = [1, 128], strides = [1, 1]} : vector<1x384xf32> to vector<1x128xf32>
    %197 = vector.extract_strided_slice %186 {offsets = [0, 128], sizes = [1, 128], strides = [1, 1]} : vector<1x384xf32> to vector<1x128xf32>
    %198 = arith.addf %196, %197 : vector<1x128xf32>
    %199 = arith.negf %198 : vector<1x128xf32>
    %200 = math.exp %199 : vector<1x128xf32>
    %cst_86 = arith.constant 1.000000e+00 : f32
    %201 = vector.broadcast %cst_86 : f32 to vector<1x128xf32>
    %202 = arith.addf %201, %200 : vector<1x128xf32>
    %203 = arith.divf %201, %202 : vector<1x128xf32>
    %204 = vector.extract_strided_slice %187 {offsets = [0, 256], sizes = [1, 128], strides = [1, 1]} : vector<1x384xf32> to vector<1x128xf32>
    %205 = vector.extract_strided_slice %186 {offsets = [0, 256], sizes = [1, 128], strides = [1, 1]} : vector<1x384xf32> to vector<1x128xf32>
    %206 = arith.mulf %195, %205 : vector<1x128xf32>
    %207 = arith.addf %204, %206 : vector<1x128xf32>
    %208 = math.tanh %207 : vector<1x128xf32>
    %cst_87 = arith.constant 1.000000e+00 : f32
    %209 = vector.broadcast %cst_87 : f32 to vector<1x128xf32>
    %210 = arith.subf %209, %203 : vector<1x128xf32>
    %211 = arith.mulf %210, %208 : vector<1x128xf32>
    %212 = arith.mulf %203, %181 : vector<1x128xf32>
    %213 = arith.addf %211, %212 : vector<1x128xf32>
    %c4_88 = arith.constant 4 : index
    %c0_89 = arith.constant 0 : index
    %214 = vector.load %arg13[%c4_88, %c0_89] : memref<8x128xf32, #tpu.memory_space<vmem>>, vector<1x128xf32>
    tpu.vector_store %arg13[%c4_88, %c0_89], %213 {strides = array<i32>} : memref<8x128xf32, #tpu.memory_space<vmem>>, vector<1x128xf32>,
    %c0_90 = arith.constant 0 : index
    %c0_91 = arith.constant 0 : index
    %215 = vector.load %arg5[%c0_90, %c0_91] : memref<128x384xf32, #tpu.memory_space<vmem>>, vector<128x384xf32>
    %cst_92 = arith.constant dense<0.000000e+00> : vector<1x384xf32>
    %216 = tpu.matmul %213, %215, %cst_92 {dimension_numbers = #tpu.dot_dimension_numbers<[1], [0], [0], [1], [0, 0, 1, 1], [], []>} : vector<1x128xf32>, vector<128x384xf32>, vector<1x384xf32> -> vector<1x384xf32>
    %c0_93 = arith.constant 0 : index
    %c0_94 = arith.constant 0 : index
    %217 = vector.load %arg7[%c0_93, %c0_94] : memref<1x384xf32, #tpu.memory_space<vmem>>, vector<1x384xf32>
    %218 = arith.addf %216, %217 : vector<1x384xf32>
    %219 = vector.extract_strided_slice %53 {offsets = [5, 0], sizes = [1, 384], strides = [1, 1]} : vector<8x384xf32> to vector<1x384xf32>
    %220 = vector.extract_strided_slice %219 {offsets = [0, 0], sizes = [1, 128], strides = [1, 1]} : vector<1x384xf32> to vector<1x128xf32>
    %221 = vector.extract_strided_slice %218 {offsets = [0, 0], sizes = [1, 128], strides = [1, 1]} : vector<1x384xf32> to vector<1x128xf32>
    %222 = arith.addf %220, %221 : vector<1x128xf32>
    %223 = arith.negf %222 : vector<1x128xf32>
    %224 = math.exp %223 : vector<1x128xf32>
    %cst_95 = arith.constant 1.000000e+00 : f32
    %225 = vector.broadcast %cst_95 : f32 to vector<1x128xf32>
    %226 = arith.addf %225, %224 : vector<1x128xf32>
    %227 = arith.divf %225, %226 : vector<1x128xf32>
    %228 = vector.extract_strided_slice %219 {offsets = [0, 128], sizes = [1, 128], strides = [1, 1]} : vector<1x384xf32> to vector<1x128xf32>
    %229 = vector.extract_strided_slice %218 {offsets = [0, 128], sizes = [1, 128], strides = [1, 1]} : vector<1x384xf32> to vector<1x128xf32>
    %230 = arith.addf %228, %229 : vector<1x128xf32>
    %231 = arith.negf %230 : vector<1x128xf32>
    %232 = math.exp %231 : vector<1x128xf32>
    %cst_96 = arith.constant 1.000000e+00 : f32
    %233 = vector.broadcast %cst_96 : f32 to vector<1x128xf32>
    %234 = arith.addf %233, %232 : vector<1x128xf32>
    %235 = arith.divf %233, %234 : vector<1x128xf32>
    %236 = vector.extract_strided_slice %219 {offsets = [0, 256], sizes = [1, 128], strides = [1, 1]} : vector<1x384xf32> to vector<1x128xf32>
    %237 = vector.extract_strided_slice %218 {offsets = [0, 256], sizes = [1, 128], strides = [1, 1]} : vector<1x384xf32> to vector<1x128xf32>
    %238 = arith.mulf %227, %237 : vector<1x128xf32>
    %239 = arith.addf %236, %238 : vector<1x128xf32>
    %240 = math.tanh %239 : vector<1x128xf32>
    %cst_97 = arith.constant 1.000000e+00 : f32
    %241 = vector.broadcast %cst_97 : f32 to vector<1x128xf32>
    %242 = arith.subf %241, %235 : vector<1x128xf32>
    %243 = arith.mulf %242, %240 : vector<1x128xf32>
    %244 = arith.mulf %235, %213 : vector<1x128xf32>
    %245 = arith.addf %243, %244 : vector<1x128xf32>
    %c5_98 = arith.constant 5 : index
    %c0_99 = arith.constant 0 : index
    %246 = vector.load %arg13[%c5_98, %c0_99] : memref<8x128xf32, #tpu.memory_space<vmem>>, vector<1x128xf32>
    tpu.vector_store %arg13[%c5_98, %c0_99], %245 {strides = array<i32>} : memref<8x128xf32, #tpu.memory_space<vmem>>, vector<1x128xf32>,
    %c0_100 = arith.constant 0 : index
    %c0_101 = arith.constant 0 : index
    %247 = vector.load %arg5[%c0_100, %c0_101] : memref<128x384xf32, #tpu.memory_space<vmem>>, vector<128x384xf32>
    %cst_102 = arith.constant dense<0.000000e+00> : vector<1x384xf32>
    %248 = tpu.matmul %245, %247, %cst_102 {dimension_numbers = #tpu.dot_dimension_numbers<[1], [0], [0], [1], [0, 0, 1, 1], [], []>} : vector<1x128xf32>, vector<128x384xf32>, vector<1x384xf32> -> vector<1x384xf32>
    %c0_103 = arith.constant 0 : index
    %c0_104 = arith.constant 0 : index
    %249 = vector.load %arg7[%c0_103, %c0_104] : memref<1x384xf32, #tpu.memory_space<vmem>>, vector<1x384xf32>
    %250 = arith.addf %248, %249 : vector<1x384xf32>
    %251 = vector.extract_strided_slice %53 {offsets = [6, 0], sizes = [1, 384], strides = [1, 1]} : vector<8x384xf32> to vector<1x384xf32>
    %252 = vector.extract_strided_slice %251 {offsets = [0, 0], sizes = [1, 128], strides = [1, 1]} : vector<1x384xf32> to vector<1x128xf32>
    %253 = vector.extract_strided_slice %250 {offsets = [0, 0], sizes = [1, 128], strides = [1, 1]} : vector<1x384xf32> to vector<1x128xf32>
    %254 = arith.addf %252, %253 : vector<1x128xf32>
    %255 = arith.negf %254 : vector<1x128xf32>
    %256 = math.exp %255 : vector<1x128xf32>
    %cst_105 = arith.constant 1.000000e+00 : f32
    %257 = vector.broadcast %cst_105 : f32 to vector<1x128xf32>
    %258 = arith.addf %257, %256 : vector<1x128xf32>
    %259 = arith.divf %257, %258 : vector<1x128xf32>
    %260 = vector.extract_strided_slice %251 {offsets = [0, 128], sizes = [1, 128], strides = [1, 1]} : vector<1x384xf32> to vector<1x128xf32>
    %261 = vector.extract_strided_slice %250 {offsets = [0, 128], sizes = [1, 128], strides = [1, 1]} : vector<1x384xf32> to vector<1x128xf32>
    %262 = arith.addf %260, %261 : vector<1x128xf32>
    %263 = arith.negf %262 : vector<1x128xf32>
    %264 = math.exp %263 : vector<1x128xf32>
    %cst_106 = arith.constant 1.000000e+00 : f32
    %265 = vector.broadcast %cst_106 : f32 to vector<1x128xf32>
    %266 = arith.addf %265, %264 : vector<1x128xf32>
    %267 = arith.divf %265, %266 : vector<1x128xf32>
    %268 = vector.extract_strided_slice %251 {offsets = [0, 256], sizes = [1, 128], strides = [1, 1]} : vector<1x384xf32> to vector<1x128xf32>
    %269 = vector.extract_strided_slice %250 {offsets = [0, 256], sizes = [1, 128], strides = [1, 1]} : vector<1x384xf32> to vector<1x128xf32>
    %270 = arith.mulf %259, %269 : vector<1x128xf32>
    %271 = arith.addf %268, %270 : vector<1x128xf32>
    %272 = math.tanh %271 : vector<1x128xf32>
    %cst_107 = arith.constant 1.000000e+00 : f32
    %273 = vector.broadcast %cst_107 : f32 to vector<1x128xf32>
    %274 = arith.subf %273, %267 : vector<1x128xf32>
    %275 = arith.mulf %274, %272 : vector<1x128xf32>
    %276 = arith.mulf %267, %245 : vector<1x128xf32>
    %277 = arith.addf %275, %276 : vector<1x128xf32>
    %c6_108 = arith.constant 6 : index
    %c0_109 = arith.constant 0 : index
    %278 = vector.load %arg13[%c6_108, %c0_109] : memref<8x128xf32, #tpu.memory_space<vmem>>, vector<1x128xf32>
    tpu.vector_store %arg13[%c6_108, %c0_109], %277 {strides = array<i32>} : memref<8x128xf32, #tpu.memory_space<vmem>>, vector<1x128xf32>,
    %c0_110 = arith.constant 0 : index
    %c0_111 = arith.constant 0 : index
    %279 = vector.load %arg5[%c0_110, %c0_111] : memref<128x384xf32, #tpu.memory_space<vmem>>, vector<128x384xf32>
    %cst_112 = arith.constant dense<0.000000e+00> : vector<1x384xf32>
    %280 = tpu.matmul %277, %279, %cst_112 {dimension_numbers = #tpu.dot_dimension_numbers<[1], [0], [0], [1], [0, 0, 1, 1], [], []>} : vector<1x128xf32>, vector<128x384xf32>, vector<1x384xf32> -> vector<1x384xf32>
    %c0_113 = arith.constant 0 : index
    %c0_114 = arith.constant 0 : index
    %281 = vector.load %arg7[%c0_113, %c0_114] : memref<1x384xf32, #tpu.memory_space<vmem>>, vector<1x384xf32>
    %282 = arith.addf %280, %281 : vector<1x384xf32>
    %283 = vector.extract_strided_slice %53 {offsets = [7, 0], sizes = [1, 384], strides = [1, 1]} : vector<8x384xf32> to vector<1x384xf32>
    %284 = vector.extract_strided_slice %283 {offsets = [0, 0], sizes = [1, 128], strides = [1, 1]} : vector<1x384xf32> to vector<1x128xf32>
    %285 = vector.extract_strided_slice %282 {offsets = [0, 0], sizes = [1, 128], strides = [1, 1]} : vector<1x384xf32> to vector<1x128xf32>
    %286 = arith.addf %284, %285 : vector<1x128xf32>
    %287 = arith.negf %286 : vector<1x128xf32>
    %288 = math.exp %287 : vector<1x128xf32>
    %cst_115 = arith.constant 1.000000e+00 : f32
    %289 = vector.broadcast %cst_115 : f32 to vector<1x128xf32>
    %290 = arith.addf %289, %288 : vector<1x128xf32>
    %291 = arith.divf %289, %290 : vector<1x128xf32>
    %292 = vector.extract_strided_slice %283 {offsets = [0, 128], sizes = [1, 128], strides = [1, 1]} : vector<1x384xf32> to vector<1x128xf32>
    %293 = vector.extract_strided_slice %282 {offsets = [0, 128], sizes = [1, 128], strides = [1, 1]} : vector<1x384xf32> to vector<1x128xf32>
    %294 = arith.addf %292, %293 : vector<1x128xf32>
    %295 = arith.negf %294 : vector<1x128xf32>
    %296 = math.exp %295 : vector<1x128xf32>
    %cst_116 = arith.constant 1.000000e+00 : f32
    %297 = vector.broadcast %cst_116 : f32 to vector<1x128xf32>
    %298 = arith.addf %297, %296 : vector<1x128xf32>
    %299 = arith.divf %297, %298 : vector<1x128xf32>
    %300 = vector.extract_strided_slice %283 {offsets = [0, 256], sizes = [1, 128], strides = [1, 1]} : vector<1x384xf32> to vector<1x128xf32>
    %301 = vector.extract_strided_slice %282 {offsets = [0, 256], sizes = [1, 128], strides = [1, 1]} : vector<1x384xf32> to vector<1x128xf32>
    %302 = arith.mulf %291, %301 : vector<1x128xf32>
    %303 = arith.addf %300, %302 : vector<1x128xf32>
    %304 = math.tanh %303 : vector<1x128xf32>
    %cst_117 = arith.constant 1.000000e+00 : f32
    %305 = vector.broadcast %cst_117 : f32 to vector<1x128xf32>
    %306 = arith.subf %305, %299 : vector<1x128xf32>
    %307 = arith.mulf %306, %304 : vector<1x128xf32>
    %308 = arith.mulf %299, %277 : vector<1x128xf32>
    %309 = arith.addf %307, %308 : vector<1x128xf32>
    %c7_118 = arith.constant 7 : index
    %c0_119 = arith.constant 0 : index
    %310 = vector.load %arg13[%c7_118, %c0_119] : memref<8x128xf32, #tpu.memory_space<vmem>>, vector<1x128xf32>
    tpu.vector_store %arg13[%c7_118, %c0_119], %309 {strides = array<i32>} : memref<8x128xf32, #tpu.memory_space<vmem>>, vector<1x128xf32>,
    %c0_120 = arith.constant 0 : index
    %c0_121 = arith.constant 0 : index
    %311 = vector.load %arg11[%c0_120, %c0_121] : memref<1x128xf32, #tpu.memory_space<vmem>>, vector<1x128xf32>
    tpu.vector_store %arg11[%c0_120, %c0_121], %309 {strides = array<i32>} : memref<1x128xf32, #tpu.memory_space<vmem>>, vector<1x128xf32>,
    %c0_122 = arith.constant 0 : index
    %c0_123 = arith.constant 0 : index
    %312 = vector.load %arg13[%c0_122, %c0_123] : memref<8x128xf32, #tpu.memory_space<vmem>>, vector<8x128xf32>
    %c0_124 = arith.constant 0 : index
    %c0_125 = arith.constant 0 : index
    %313 = vector.load %arg8[%c0_124, %c0_125] : memref<128x128xf32, #tpu.memory_space<vmem>>, vector<128x128xf32>
    %cst_126 = arith.constant dense<0.000000e+00> : vector<8x128xf32>
    %314 = tpu.matmul %312, %313, %cst_126 {dimension_numbers = #tpu.dot_dimension_numbers<[1], [0], [0], [1], [0, 0, 1, 1], [], []>} : vector<8x128xf32>, vector<128x128xf32>, vector<8x128xf32> -> vector<8x128xf32>
    %c0_127 = arith.constant 0 : index
    %c0_128 = arith.constant 0 : index
    %315 = vector.load %arg9[%c0_127, %c0_128] : memref<1x128xf32, #tpu.memory_space<vmem>>, vector<1x128xf32>
    %316 = vector.broadcast %315 : vector<1x128xf32> to vector<8x128xf32>
    %317 = arith.addf %314, %316 : vector<8x128xf32>
    %cst_129 = arith.constant dense<0xFF800000> : vector<8xf32>
    %318 = vector.multi_reduction <maximumf>, %317, %cst_129 [1] : vector<8x128xf32> to vector<8xf32>
    %319 = vector.shape_cast %318 : vector<8xf32> to vector<8x1xf32>
    %320 = vector.broadcast %319 : vector<8x1xf32> to vector<8x128xf32>
    %321 = arith.subf %317, %320 : vector<8x128xf32>
    %322 = math.exp %321 : vector<8x128xf32>
    %cst_130 = arith.constant dense<0.000000e+00> : vector<8xf32>
    %323 = vector.multi_reduction <add>, %322, %cst_130 [1] : vector<8x128xf32> to vector<8xf32>
    %324 = vector.shape_cast %323 : vector<8xf32> to vector<8x1xf32>
    %325 = math.log %324 : vector<8x1xf32>
    %326 = vector.broadcast %325 : vector<8x1xf32> to vector<8x128xf32>
    %327 = arith.subf %321, %326 : vector<8x128xf32>
    %c0_131 = arith.constant 0 : index
    %c0_132 = arith.constant 0 : index
    %328 = vector.load %arg10[%c0_131, %c0_132] : memref<8x128xf32, #tpu.memory_space<vmem>>, vector<8x128xf32>
    tpu.vector_store %arg10[%c0_131, %c0_132], %327 {strides = array<i32>} : memref<8x128xf32, #tpu.memory_space<vmem>>, vector<8x128xf32>,
    return
  }
  func.func @transform_0(%arg0: i32, %arg1: memref<8xi32, #tpu.memory_space<smem>>) -> (i32, i32) {
    %c0_i32 = arith.constant 0 : i32
    %c0_i32_0 = arith.constant 0 : i32
    %c0_i32_1 = arith.constant 0 : i32
    return %c0_i32, %c0_i32_0 : i32, i32
  }
  func.func @transform_1(%arg0: i32, %arg1: memref<8xi32, #tpu.memory_space<smem>>) -> (i32, i32) {
    %c0_i32 = arith.constant 0 : i32
    %c0_i32_0 = arith.constant 0 : i32
    %c0_i32_1 = arith.constant 0 : i32
    return %c0_i32, %c0_i32_0 : i32, i32
  }
  func.func @transform_2(%arg0: i32, %arg1: memref<8xi32, #tpu.memory_space<smem>>) -> (i32, i32) {
    %c0_i32 = arith.constant 0 : i32
    %c0_i32_0 = arith.constant 0 : i32
    %c0_i32_1 = arith.constant 0 : i32
    return %c0_i32, %c0_i32_0 : i32, i32
  }
  func.func @transform_3(%arg0: i32, %arg1: memref<8xi32, #tpu.memory_space<smem>>) -> (i32, i32) {
    %c0_i32 = arith.constant 0 : i32
    %c0_i32_0 = arith.constant 0 : i32
    %c0_i32_1 = arith.constant 0 : i32
    return %c0_i32, %c0_i32_0 : i32, i32
  }
  func.func @transform_4(%arg0: i32, %arg1: memref<8xi32, #tpu.memory_space<smem>>) -> (i32, i32) {
    %c0_i32 = arith.constant 0 : i32
    %c0_i32_0 = arith.constant 0 : i32
    %c0_i32_1 = arith.constant 0 : i32
    return %c0_i32, %c0_i32_0 : i32, i32
  }
  func.func @transform_5(%arg0: i32, %arg1: memref<8xi32, #tpu.memory_space<smem>>) -> (i32, i32) {
    %c0_i32 = arith.constant 0 : i32
    %c0_i32_0 = arith.constant 0 : i32
    %c0_i32_1 = arith.constant 0 : i32
    return %c0_i32, %c0_i32_0 : i32, i32
  }
  func.func @transform_6(%arg0: i32, %arg1: memref<8xi32, #tpu.memory_space<smem>>) -> (i32, i32) {
    %c0_i32 = arith.constant 0 : i32
    %c0_i32_0 = arith.constant 0 : i32
    %c0_i32_1 = arith.constant 0 : i32
    return %c0_i32, %c0_i32_0 : i32, i32
  }
  func.func @transform_7(%arg0: i32, %arg1: memref<8xi32, #tpu.memory_space<smem>>) -> (i32, i32) {
    %c0_i32 = arith.constant 0 : i32
    %c0_i32_0 = arith.constant 0 : i32
    %c0_i32_1 = arith.constant 0 : i32
    return %c0_i32, %c0_i32_0 : i32, i32
  }
  func.func @transform_8(%arg0: i32, %arg1: memref<8xi32, #tpu.memory_space<smem>>) -> (i32, i32) {
    %c0_i32 = arith.constant 0 : i32
    %c0_i32_0 = arith.constant 0 : i32
    %c0_i32_1 = arith.constant 0 : i32
    return %c0_i32, %c0_i32_0 : i32, i32
  }
  func.func @transform_9(%arg0: i32, %arg1: memref<8xi32, #tpu.memory_space<smem>>) -> (i32, i32) {
    %c0_i32 = arith.constant 0 : i32
    %c0_i32_0 = arith.constant 0 : i32
    %c0_i32_1 = arith.constant 0 : i32
    return %c0_i32, %c0_i32_0 : i32, i32
  }
}

</mosaic_0001>

<llo_original>
// kernel: tpu_custom_call.1
$region0: #{tpu_custom_call.1}
  #allocation0 [shape = 'u32[]', space=smem, size = 0x4, offset = 0x4, fixed_abs, tag = 'smem constant byte address 0x4 - core index']
  #allocation1 [shape = 'u32[144,128]{1,0:T(1,128)}', space=vmem, size = 0x12000, scoped, tag = 'internal scratch']
  #allocation2 [shape = 'f32[8,128]{1,0:T(8,128)}', space=vmem, size = 0x1000, scoped, tag = 'scratch operand']
  #allocation3 [shape = 'f32[8,128]{1,0:T(8,128)}', space=vmem, size = 0x1000, scoped, tag = 'scratch operand']
  #allocation4 [shape = 's32[1]{0}', space=sflag, size = 0x4, scoped, tag = 'scoped memory for tpu_custom_call.1']
  #allocation5 [shape = 'u8[512]{0}', space=smem, size = 0x200, scoped, tag = 'prefetched SMEM operand 0']
  %s0 = inlined_call_operand.hbm [shape: s32[8], index: 0, kind: input, shape index: {}]
  %s1 = inlined_call_operand.hbm [shape: f32[128,128], index: 1, kind: input, shape index: {}]
  %s2 = inlined_call_operand.vmem [shape: f32[1,128], index: 2, kind: input, shape index: {}]
  %s3 = inlined_call_operand.hbm [shape: f32[128,384], index: 3, kind: input, shape index: {}]
  %s4 = inlined_call_operand.hbm [shape: f32[128,384], index: 4, kind: input, shape index: {}]
  %s5 = inlined_call_operand.vmem [shape: f32[1,384], index: 5, kind: input, shape index: {}]
  %s6 = inlined_call_operand.vmem [shape: f32[1,384], index: 6, kind: input, shape index: {}]
  %s7 = inlined_call_operand.hbm [shape: f32[128,128], index: 7, kind: input, shape index: {}]
  %s8 = inlined_call_operand.vmem [shape: f32[1,128], index: 8, kind: input, shape index: {}]
  %s9 = inlined_call_operand.hbm [shape: f32[8,128], index: 9, kind: output, shape index: {0}]
  %s10 = inlined_call_operand.hbm [shape: f32[1,128], index: 10, kind: output, shape index: {1}]
  %11 = xla_tuple %s9, %s10
  %s12 = sld [smem:[#allocation0]]
  $region66: #{tpu_custom_call.1} parent=0
    _
  %s14 = ssub.s32 1, %s12
  %s15 = scalar_select 0, %s14, %s12
  %17 = dma.hbm_to_smem %s0, 16, [#allocation5], [#allocation4]
  %18 = dma.done [#allocation4], 16
  %19 = sfence
  $region1: #{tpu_custom_call.1} parent=0
    #allocation6 [shape = 'u8[65536]{0}', space=vmem, size = 0x10000, scoped, tag = 'input window, operand 1, single buffered']
    #allocation7 [shape = 's32[1]{0}', space=sflag, size = 0x4, scoped, tag = 'scoped memory for tpu_custom_call.1']
    #allocation8 [shape = 's32[1]{0}', space=sflag, size = 0x4, scoped, tag = 'scoped memory for tpu_custom_call.1']
    #allocation9 [shape = 'u8[196608]{0}', space=vmem, size = 0x30000, scoped, tag = 'input window, operand 3, single buffered']
    #allocation10 [shape = 's32[1]{0}', space=sflag, size = 0x4, scoped, tag = 'scoped memory for tpu_custom_call.1']
    #allocation11 [shape = 'u8[196608]{0}', space=vmem, size = 0x30000, scoped, tag = 'input window, operand 4, single buffered']
    #allocation12 [shape = 'u8[65536]{0}', space=vmem, size = 0x10000, scoped, tag = 'input window, operand 7, single buffered']
    #allocation13 [shape = 's32[1]{0}', space=sflag, size = 0x4, scoped, tag = 'scoped memory for tpu_custom_call.1']
    #allocation14 [shape = 'u8[4096]{0}', space=vmem, size = 0x1000, scoped, tag = 'output window, operand 0, single buffered']
    #allocation15 [shape = 'u8[512]{0}', space=vmem, size = 0x400, scoped, tag = 'output window, operand 1, single buffered']
    #allocation16 [shape = 's32[1]{0}', space=sflag, size = 0x4, scoped, tag = 'scoped memory for tpu_custom_call.1']
    %20 = vsyncpa [#allocation7], 0
    %21 = vsyncpa [#allocation10], 0
    %22 = vsyncpa [#allocation13], 0
    %23 = vsyncpa [#allocation8], 0
    %24 = vsyncpa [#allocation16], 0
    // Predicated region
    $region2: #{tpu_custom_call.1} parent=1 // pred_check
      _
    $region3: #{tpu_custom_call.1} parent=1 // pred_check_branch
      %26 = sbr.rel (0) target = $region5
    $region4: #{tpu_custom_call.1} parent=1 // pred_region
      %s28 = ssub.s32 2048, 2048
      %29 = vsyncadd [#allocation7], %s28
      %s30 = sshll.u32 [#allocation6], 4
      %s31 = int_to_ptr.vmem [resolvable:$true] %s30
      %36 = dma.hbm_to_vmem [thread:$0]  %s1, 2048, %s31, [#allocation7], 128, 128, 8
    $region5: #{tpu_custom_call.1} parent=1 // pred_fallthru
      _
    // Predicated region
    $region6: #{tpu_custom_call.1} parent=1 // pred_check
      _
    $region7: #{tpu_custom_call.1} parent=1 // pred_check_branch
      %38 = sbr.rel (0) target = $region9
    $region8: #{tpu_custom_call.1} parent=1 // pred_region
      _
    $region9: #{tpu_custom_call.1} parent=1 // pred_fallthru
      _
    // Predicated region
    $region10: #{tpu_custom_call.1} parent=1 // pred_check
      _
    $region11: #{tpu_custom_call.1} parent=1 // pred_check_branch
      %40 = sbr.rel (0) target = $region13
    $region12: #{tpu_custom_call.1} parent=1 // pred_region
      %s42 = ssub.s32 6144, 6144
      %43 = vsyncadd [#allocation10], %s42
      %s44 = sshll.u32 [#allocation9], 4
      %s45 = int_to_ptr.vmem [resolvable:$true] %s44
      %50 = dma.hbm_to_vmem [thread:$0]  %s3, 6144, %s45, [#allocation10], 384, 384, 24
    $region13: #{tpu_custom_call.1} parent=1 // pred_fallthru
      _
    // Predicated region
    $region14: #{tpu_custom_call.1} parent=1 // pred_check
      _
    $region15: #{tpu_custom_call.1} parent=1 // pred_check_branch
      %52 = sbr.rel (0) target = $region17
    $region16: #{tpu_custom_call.1} parent=1 // pred_region
      %s54 = ssub.s32 6144, 6144
      %55 = vsyncadd [#allocation10], %s54
      %s56 = sshll.u32 [#allocation11], 4
      %s57 = int_to_ptr.vmem [resolvable:$true] %s56
      %62 = dma.hbm_to_vmem [thread:$0]  %s4, 6144, %s57, [#allocation10], 384, 384, 24
    $region17: #{tpu_custom_call.1} parent=1 // pred_fallthru
      _
    // Predicated region
    $region18: #{tpu_custom_call.1} parent=1 // pred_check
      _
    $region19: #{tpu_custom_call.1} parent=1 // pred_check_branch
      %64 = sbr.rel (0) target = $region21
    $region20: #{tpu_custom_call.1} parent=1 // pred_region
      _
    $region21: #{tpu_custom_call.1} parent=1 // pred_fallthru
      _
    // Predicated region
    $region22: #{tpu_custom_call.1} parent=1 // pred_check
      _
    $region23: #{tpu_custom_call.1} parent=1 // pred_check_branch
      %66 = sbr.rel (0) target = $region25
    $region24: #{tpu_custom_call.1} parent=1 // pred_region
      _
    $region25: #{tpu_custom_call.1} parent=1 // pred_fallthru
      _
    // Predicated region
    $region26: #{tpu_custom_call.1} parent=1 // pred_check
      _
    $region27: #{tpu_custom_call.1} parent=1 // pred_check_branch
      %68 = sbr.rel (0) target = $region29
    $region28: #{tpu_custom_call.1} parent=1 // pred_region
      %s70 = ssub.s32 2048, 2048
      %71 = vsyncadd [#allocation13], %s70
      %s72 = sshll.u32 [#allocation12], 4
      %s73 = int_to_ptr.vmem [resolvable:$true] %s72
      %78 = dma.hbm_to_vmem [thread:$0]  %s7, 2048, %s73, [#allocation13], 128, 128, 8
    $region29: #{tpu_custom_call.1} parent=1 // pred_fallthru
      _
    // Predicated region
    $region30: #{tpu_custom_call.1} parent=1 // pred_check
      _
    $region31: #{tpu_custom_call.1} parent=1 // pred_check_branch
      %80 = sbr.rel (0) target = $region33
    $region32: #{tpu_custom_call.1} parent=1 // pred_region
      _
    $region33: #{tpu_custom_call.1} parent=1 // pred_fallthru
      _
    // Predicated region
    $region34: #{tpu_custom_call.1} parent=1 // pred_check
      _
    $region35: #{tpu_custom_call.1} parent=1 // pred_check_branch
      %82 = sbr.rel (0) target = $region37
    $region36: #{tpu_custom_call.1} parent=1 // pred_region
      %83 = dma.done [#allocation7], 2048
    $region37: #{tpu_custom_call.1} parent=1 // pred_fallthru
      _
    // Predicated region
    $region38: #{tpu_custom_call.1} parent=1 // pred_check
      _
    $region39: #{tpu_custom_call.1} parent=1 // pred_check_branch
      %85 = sbr.rel (0) target = $region41
    $region40: #{tpu_custom_call.1} parent=1 // pred_region
      %86 = dma.done [#allocation10], 6144
    $region41: #{tpu_custom_call.1} parent=1 // pred_fallthru
      _
    // Predicated region
    $region42: #{tpu_custom_call.1} parent=1 // pred_check
      _
    $region43: #{tpu_custom_call.1} parent=1 // pred_check_branch
      %88 = sbr.rel (0) target = $region45
    $region44: #{tpu_custom_call.1} parent=1 // pred_region
      %89 = dma.done [#allocation10], 6144
    $region45: #{tpu_custom_call.1} parent=1 // pred_fallthru
      _
    // Predicated region
    $region46: #{tpu_custom_call.1} parent=1 // pred_check
      _
    $region47: #{tpu_custom_call.1} parent=1 // pred_check_branch
      %91 = sbr.rel (0) target = $region49
    $region48: #{tpu_custom_call.1} parent=1 // pred_region
      %92 = dma.done [#allocation13], 2048
    $region49: #{tpu_custom_call.1} parent=1 // pred_fallthru
      _
    %s93 = sld [smem:[#allocation5]]
    %s94 = scalar_lea.vmem [#allocation6], %s93
    %v95 = vld [vmem:[%s94] sm:$0x1]
    %v96 = vmax.f32 %v95, 0.0
    %97 = vst [vmem:[#allocation2] sm:$0x1] %v96
    %s98 = sld [smem:[#allocation5 + $0x1]]
    %s99 = scalar_lea.vmem [#allocation6], %s98
    %v100 = vld [vmem:[%s99] sm:$0x1]
    %v101 = vmax.f32 %v100, 0.0
    %102 = vst [vmem:[#allocation2 + $0x1] sm:$0x1] %v101
    %s103 = sld [smem:[#allocation5 + $0x2]]
    %s104 = scalar_lea.vmem [#allocation6], %s103
    %v105 = vld [vmem:[%s104] sm:$0x1]
    %v106 = vmax.f32 %v105, 0.0
    %107 = vst [vmem:[#allocation2 + $0x2] sm:$0x1] %v106
    %s108 = sld [smem:[#allocation5 + $0x3]]
    %s109 = scalar_lea.vmem [#allocation6], %s108
    %v110 = vld [vmem:[%s109] sm:$0x1]
    %v111 = vmax.f32 %v110, 0.0
    %112 = vst [vmem:[#allocation2 + $0x3] sm:$0x1] %v111
    %s113 = sld [smem:[#allocation5 + $0x4]]
    %s114 = scalar_lea.vmem [#allocation6], %s113
    %v115 = vld [vmem:[%s114] sm:$0x1]
    %v116 = vmax.f32 %v115, 0.0
    %117 = vst [vmem:[#allocation2 + $0x4] sm:$0x1] %v116
    %s118 = sld [smem:[#allocation5 + $0x5]]
    %s119 = scalar_lea.vmem [#allocation6], %s118
    %v120 = vld [vmem:[%s119] sm:$0x1]
    %v121 = vmax.f32 %v120, 0.0
    %122 = vst [vmem:[#allocation2 + $0x5] sm:$0x1] %v121
    %s123 = sld [smem:[#allocation5 + $0x6]]
    %s124 = scalar_lea.vmem [#allocation6], %s123
    %v125 = vld [vmem:[%s124] sm:$0x1]
    %v126 = vmax.f32 %v125, 0.0
    %127 = vst [vmem:[#allocation2 + $0x6] sm:$0x1] %v126
    %s128 = sld [smem:[#allocation5 + $0x7]]
    %s129 = scalar_lea.vmem [#allocation6], %s128
    %v130 = vld [vmem:[%s129] sm:$0x1]
    %v131 = vmax.f32 %v130, 0.0
    %132 = vst [vmem:[#allocation2 + $0x7] sm:$0x1] %v131
    %v133 = vld [vmem:[#allocation2] sm:$0xff]
    %v134 = vld [vmem:[#allocation9] sm:$0xff]
    %v135 = vld [vmem:[#allocation9 + $0x8] sm:$0xff]
    %v136 = vld [vmem:[#allocation9 + $0x10] sm:$0xff]
    %v137 = vld [vmem:[#allocation9 + $0x18] sm:$0xff]
    %v138 = vld [vmem:[#allocation9 + $0x20] sm:$0xff]
    %v139 = vld [vmem:[#allocation9 + $0x28] sm:$0xff]
    %v140 = vld [vmem:[#allocation9 + $0x30] sm:$0xff]
    %v141 = vld [vmem:[#allocation9 + $0x38] sm:$0xff]
    %v142 = vld [vmem:[#allocation9 + $0x40] sm:$0xff]
    %v143 = vld [vmem:[#allocation9 + $0x48] sm:$0xff]
    %v144 = vld [vmem:[#allocation9 + $0x50] sm:$0xff]
    %v145 = vld [vmem:[#allocation9 + $0x58] sm:$0xff]
    %v146 = vld [vmem:[#allocation9 + $0x60] sm:$0xff]
    %v147 = vld [vmem:[#allocation9 + $0x68] sm:$0xff]
    %v148 = vld [vmem:[#allocation9 + $0x70] sm:$0xff]
    %v149 = vld [vmem:[#allocation9 + $0x78] sm:$0xff]
    %v150 = vld [vmem:[#allocation9 + $0x80] sm:$0xff]
    %v151 = vld [vmem:[#allocation9 + $0x88] sm:$0xff]
    %v152 = vld [vmem:[#allocation9 + $0x90] sm:$0xff]
    %v153 = vld [vmem:[#allocation9 + $0x98] sm:$0xff]
    %v154 = vld [vmem:[#allocation9 + $0xa0] sm:$0xff]
    %v155 = vld [vmem:[#allocation9 + $0xa8] sm:$0xff]
    %v156 = vld [vmem:[#allocation9 + $0xb0] sm:$0xff]
    %v157 = vld [vmem:[#allocation9 + $0xb8] sm:$0xff]
    %v158 = vld [vmem:[#allocation9 + $0xc0] sm:$0xff]
    %v159 = vld [vmem:[#allocation9 + $0xc8] sm:$0xff]
    %v160 = vld [vmem:[#allocation9 + $0xd0] sm:$0xff]
    %v161 = vld [vmem:[#allocation9 + $0xd8] sm:$0xff]
    %v162 = vld [vmem:[#allocation9 + $0xe0] sm:$0xff]
    %v163 = vld [vmem:[#allocation9 + $0xe8] sm:$0xff]
    %v164 = vld [vmem:[#allocation9 + $0xf0] sm:$0xff]
    %v165 = vld [vmem:[#allocation9 + $0xf8] sm:$0xff]
    %v166 = vld [vmem:[#allocation9 + $0x100] sm:$0xff]
    %v167 = vld [vmem:[#allocation9 + $0x108] sm:$0xff]
    %v168 = vld [vmem:[#allocation9 + $0x110] sm:$0xff]
    %v169 = vld [vmem:[#allocation9 + $0x118] sm:$0xff]
    %v170 = vld [vmem:[#allocation9 + $0x120] sm:$0xff]
    %v171 = vld [vmem:[#allocation9 + $0x128] sm:$0xff]
    %v172 = vld [vmem:[#allocation9 + $0x130] sm:$0xff]
    %v173 = vld [vmem:[#allocation9 + $0x138] sm:$0xff]
    %v174 = vld [vmem:[#allocation9 + $0x140] sm:$0xff]
    %v175 = vld [vmem:[#allocation9 + $0x148] sm:$0xff]
    %v176 = vld [vmem:[#allocation9 + $0x150] sm:$0xff]
    %v177 = vld [vmem:[#allocation9 + $0x158] sm:$0xff]
    %v178 = vld [vmem:[#allocation9 + $0x160] sm:$0xff]
    %v179 = vld [vmem:[#allocation9 + $0x168] sm:$0xff]
    %v180 = vld [vmem:[#allocation9 + $0x170] sm:$0xff]
    %v181 = vld [vmem:[#allocation9 + $0x178] sm:$0xff]
    %v182 = vld [vmem:[%s5] sm:$0x7]
    %v184 = vlaneseq
    %v185 = vshrl.u32 %v184, 7
    %v186 = vsub.s32 0, %v185
    %v187 = vrot.slane %v182, %v186
    %v188 = vlaneseq
    %v189 = vshrl.u32 %v188, 7
    %v190 = vsub.s32 1, %v189
    %v191 = vrot.slane %v182, %v190
    %v192 = vlaneseq
    %v193 = vshrl.u32 %v192, 7
    %v194 = vsub.s32 2, %v193
    %v195 = vrot.slane %v182, %v194
    %199 = vmatprep.subr.mxu0 %v180
    %200 = vmatpush1.msra.mxu0 %v179
    %201 = vmatprep.subr.mxu0 %v177
    %202 = vmatpush1.msra.mxu0 %v176
    %203 = vmatprep.subr.mxu0 %v174
    %204 = vmatpush1.msra.mxu0 %v173
    %205 = vmatprep.subr.mxu0 %v171
    %206 = vmatpush1.msra.mxu0 %v170
    %207 = vmatprep.subr.mxu0 %v168
    %208 = vmatpush1.msra.mxu0 %v167
    %209 = vmatprep.subr.mxu0 %v165
    %210 = vmatpush1.msra.mxu0 %v164
    %211 = vmatprep.subr.mxu0 %v162
    %212 = vmatpush1.msra.mxu0 %v161
    %213 = vmatprep.subr.mxu0 %v159
    %214 = vmatpush1.msra.mxu0 %v158
    %215 = vmatprep.subr.mxu0 %v156
    %216 = vmatpush1.msra.mxu0 %v155
    %217 = vmatprep.subr.mxu0 %v153
    %218 = vmatpush1.msra.mxu0 %v152
    %219 = vmatprep.subr.mxu0 %v150
    %220 = vmatpush1.msra.mxu0 %v149
    %221 = vmatprep.subr.mxu0 %v147
    %222 = vmatpush1.msra.mxu0 %v146
    %223 = vmatprep.subr.mxu0 %v144
    %224 = vmatpush1.msra.mxu0 %v143
    %225 = vmatprep.subr.mxu0 %v141
    %226 = vmatpush1.msra.mxu0 %v140
    %227 = vmatprep.subr.mxu0 %v138
    %228 = vmatpush1.msra.mxu0 %v137
    %229 = vmatprep.subr.mxu0 %v135
    %230 = vmatpush1.msra.mxu0 %v134
    %231 = vmatprep.subr.mxu0 0.0
    %232 = vmatpush2.msra.mxu0 0.0
    %233 = vmatprep.subr.mxu0 0.0
    %234 = vmatpush2.msra.mxu0 0.0
    %235 = vmatprep.subr.mxu0 0.0
    %236 = vmatpush2.msra.mxu0 0.0
    %237 = vmatprep.subr.mxu0 0.0
    %238 = vmatpush2.msra.mxu0 0.0
    %239 = vmatprep.subr.mxu0 0.0
    %240 = vmatpush2.msra.mxu0 0.0
    %241 = vmatprep.subr.mxu0 0.0
    %242 = vmatpush2.msra.mxu0 0.0
    %243 = vmatprep.subr.mxu0 0.0
    %244 = vmatpush2.msra.mxu0 0.0
    %245 = vmatprep.subr.mxu0 0.0
    %246 = vmatpush2.msra.mxu0 0.0
    %247 = vmatprep.subr.mxu0 0.0
    %248 = vmatpush2.msra.mxu0 0.0
    %249 = vmatprep.subr.mxu0 0.0
    %250 = vmatpush2.msra.mxu0 0.0
    %251 = vmatprep.subr.mxu0 0.0
    %252 = vmatpush2.msra.mxu0 0.0
    %253 = vmatprep.subr.mxu0 0.0
    %254 = vmatpush2.msra.mxu0 0.0
    %255 = vmatprep.subr.mxu0 0.0
    %256 = vmatpush2.msra.mxu0 0.0
    %257 = vmatprep.subr.mxu0 0.0
    %258 = vmatpush2.msra.mxu0 0.0
    %259 = vmatprep.subr.mxu0 0.0
    %260 = vmatpush2.msra.mxu0 0.0
    %261 = vmatprep.subr.mxu0 0.0
    %262 = vmatpush2.msra.mxu0 0.0
    %263 = vmatprep.mubr.f32.mxu0 0.0
    %264 = vmatmul.mubr.f32.gmra.mxu0 %v133
    %v265 = vpop.f32.mrf.mxu0
    %v266 = vadd.f32 %v187, %v265
    %v267 = vpop.f32.mrf.mxu0
    %v268 = vadd.f32 %v191, %v267
    %269 = vdwg.mxu0
    %270 = vmatprep.subr.mxu0 0.0
    %271 = vmatpush1.msra.mxu0 %v181
    %272 = vmatprep.subr.mxu0 0.0
    %273 = vmatpush1.msra.mxu0 %v178
    %274 = vmatprep.subr.mxu0 0.0
    %275 = vmatpush1.msra.mxu0 %v175
    %276 = vmatprep.subr.mxu0 0.0
    %277 = vmatpush1.msra.mxu0 %v172
    %278 = vmatprep.subr.mxu0 0.0
    %279 = vmatpush1.msra.mxu0 %v169
    %280 = vmatprep.subr.mxu0 0.0
    %281 = vmatpush1.msra.mxu0 %v166
    %282 = vmatprep.subr.mxu0 0.0
    %283 = vmatpush1.msra.mxu0 %v163
    %284 = vmatprep.subr.mxu0 0.0
    %285 = vmatpush1.msra.mxu0 %v160
    %286 = vmatprep.subr.mxu0 0.0
    %287 = vmatpush1.msra.mxu0 %v157
    %288 = vmatprep.subr.mxu0 0.0
    %289 = vmatpush1.msra.mxu0 %v154
    %290 = vmatprep.subr.mxu0 0.0
    %291 = vmatpush1.msra.mxu0 %v151
    %292 = vmatprep.subr.mxu0 0.0
    %293 = vmatpush1.msra.mxu0 %v148
    %294 = vmatprep.subr.mxu0 0.0
    %295 = vmatpush1.msra.mxu0 %v145
    %296 = vmatprep.subr.mxu0 0.0
    %297 = vmatpush1.msra.mxu0 %v142
    %298 = vmatprep.subr.mxu0 0.0
    %299 = vmatpush1.msra.mxu0 %v139
    %300 = vmatprep.subr.mxu0 0.0
    %301 = vmatpush1.msra.mxu0 %v136
    %302 = vmatprep.subr.mxu0 0.0
    %303 = vmatpush2.msra.mxu0 0.0
    %304 = vmatprep.subr.mxu0 0.0
    %305 = vmatpush2.msra.mxu0 0.0
    %306 = vmatprep.subr.mxu0 0.0
    %307 = vmatpush2.msra.mxu0 0.0
    %308 = vmatprep.subr.mxu0 0.0
    %309 = vmatpush2.msra.mxu0 0.0
    %310 = vmatprep.subr.mxu0 0.0
    %311 = vmatpush2.msra.mxu0 0.0
    %312 = vmatprep.subr.mxu0 0.0
    %313 = vmatpush2.msra.mxu0 0.0
    %314 = vmatprep.subr.mxu0 0.0
    %315 = vmatpush2.msra.mxu0 0.0
    %316 = vmatprep.subr.mxu0 0.0
    %317 = vmatpush2.msra.mxu0 0.0
    %318 = vmatprep.subr.mxu0 0.0
    %319 = vmatpush2.msra.mxu0 0.0
    %320 = vmatprep.subr.mxu0 0.0
    %321 = vmatpush2.msra.mxu0 0.0
    %322 = vmatprep.subr.mxu0 0.0
    %323 = vmatpush2.msra.mxu0 0.0
    %324 = vmatprep.subr.mxu0 0.0
    %325 = vmatpush2.msra.mxu0 0.0
    %326 = vmatprep.subr.mxu0 0.0
    %327 = vmatpush2.msra.mxu0 0.0
    %328 = vmatprep.subr.mxu0 0.0
    %329 = vmatpush2.msra.mxu0 0.0
    %330 = vmatprep.subr.mxu0 0.0
    %331 = vmatpush2.msra.mxu0 0.0
    %332 = vmatprep.subr.mxu0 0.0
    %333 = vmatpush2.msra.mxu0 0.0
    %334 = vmatprep.mubr.f32.mxu0 0.0
    %335 = vmatmul.mubr.f32.gmra.mxu0 %v133
    %v336 = vpop.f32.mrf.mxu0
    %v337 = vadd.f32 %v195, %v336
    %v338 = vpop.f32.mrf.mxu0
    %339 = vdwg.mxu0
    %v340 = vld [vmem:[%s2] sm:$0x1]
    %v341 = vld [vmem:[#allocation11] sm:$0xff]
    %v342 = vld [vmem:[#allocation11 + $0x8] sm:$0xff]
    %v343 = vld [vmem:[#allocation11 + $0x10] sm:$0xff]
    %v344 = vld [vmem:[#allocation11 + $0x18] sm:$0xff]
    %v345 = vld [vmem:[#allocation11 + $0x20] sm:$0xff]
    %v346 = vld [vmem:[#allocation11 + $0x28] sm:$0xff]
    %v347 = vld [vmem:[#allocation11 + $0x30] sm:$0xff]
    %v348 = vld [vmem:[#allocation11 + $0x38] sm:$0xff]
    %v349 = vld [vmem:[#allocation11 + $0x40] sm:$0xff]
    %v350 = vld [vmem:[#allocation11 + $0x48] sm:$0xff]
    %v351 = vld [vmem:[#allocation11 + $0x50] sm:$0xff]
    %v352 = vld [vmem:[#allocation11 + $0x58] sm:$0xff]
    %v353 = vld [vmem:[#allocation11 + $0x60] sm:$0xff]
    %v354 = vld [vmem:[#allocation11 + $0x68] sm:$0xff]
    %v355 = vld [vmem:[#allocation11 + $0x70] sm:$0xff]
    %v356 = vld [vmem:[#allocation11 + $0x78] sm:$0xff]
    %v357 = vld [vmem:[#allocation11 + $0x80] sm:$0xff]
    %v358 = vld [vmem:[#allocation11 + $0x88] sm:$0xff]
    %v359 = vld [vmem:[#allocation11 + $0x90] sm:$0xff]
    %v360 = vld [vmem:[#allocation11 + $0x98] sm:$0xff]
    %v361 = vld [vmem:[#allocation11 + $0xa0] sm:$0xff]
    %v362 = vld [vmem:[#allocation11 + $0xa8] sm:$0xff]
    %v363 = vld [vmem:[#allocation11 + $0xb0] sm:$0xff]
    %v364 = vld [vmem:[#allocation11 + $0xb8] sm:$0xff]
    %v365 = vld [vmem:[#allocation11 + $0xc0] sm:$0xff]
    %v366 = vld [vmem:[#allocation11 + $0xc8] sm:$0xff]
    %v367 = vld [vmem:[#allocation11 + $0xd0] sm:$0xff]
    %v368 = vld [vmem:[#allocation11 + $0xd8] sm:$0xff]
    %v369 = vld [vmem:[#allocation11 + $0xe0] sm:$0xff]
    %v370 = vld [vmem:[#allocation11 + $0xe8] sm:$0xff]
    %v371 = vld [vmem:[#allocation11 + $0xf0] sm:$0xff]
    %v372 = vld [vmem:[#allocation11 + $0xf8] sm:$0xff]
    %v373 = vld [vmem:[#allocation11 + $0x100] sm:$0xff]
    %v374 = vld [vmem:[#allocation11 + $0x108] sm:$0xff]
    %v375 = vld [vmem:[#allocation11 + $0x110] sm:$0xff]
    %v376 = vld [vmem:[#allocation11 + $0x118] sm:$0xff]
    %v377 = vld [vmem:[#allocation11 + $0x120] sm:$0xff]
    %v378 = vld [vmem:[#allocation11 + $0x128] sm:$0xff]
    %v379 = vld [vmem:[#allocation11 + $0x130] sm:$0xff]
    %v380 = vld [vmem:[#allocation11 + $0x138] sm:$0xff]
    %v381 = vld [vmem:[#allocation11 + $0x140] sm:$0xff]
    %v382 = vld [vmem:[#allocation11 + $0x148] sm:$0xff]
    %v383 = vld [vmem:[#allocation11 + $0x150] sm:$0xff]
    %v384 = vld [vmem:[#allocation11 + $0x158] sm:$0xff]
    %v385 = vld [vmem:[#allocation11 + $0x160] sm:$0xff]
    %v386 = vld [vmem:[#allocation11 + $0x168] sm:$0xff]
    %v387 = vld [vmem:[#allocation11 + $0x170] sm:$0xff]
    %v388 = vld [vmem:[#allocation11 + $0x178] sm:$0xff]
    %v389 = vld [vmem:[%s6] sm:$0x7]
    %v391 = vlaneseq
    %v392 = vshrl.u32 %v391, 7
    %v393 = vsub.s32 0, %v392
    %v394 = vrot.slane %v389, %v393
    %v395 = vlaneseq
    %v396 = vshrl.u32 %v395, 7
    %v397 = vsub.s32 1, %v396
    %v398 = vrot.slane %v389, %v397
    %v399 = vlaneseq
    %v400 = vshrl.u32 %v399, 7
    %v401 = vsub.s32 2, %v400
    %v402 = vrot.slane %v389, %v401
    %406 = vmatprep.subr.mxu0 %v387
    %407 = vmatpush1.msra.mxu0 %v386
    %408 = vmatprep.subr.mxu0 %v384
    %409 = vmatpush1.msra.mxu0 %v383
    %410 = vmatprep.subr.mxu0 %v381
    %411 = vmatpush1.msra.mxu0 %v380
    %412 = vmatprep.subr.mxu0 %v378
    %413 = vmatpush1.msra.mxu0 %v377
    %414 = vmatprep.subr.mxu0 %v375
    %415 = vmatpush1.msra.mxu0 %v374
    %416 = vmatprep.subr.mxu0 %v372
    %417 = vmatpush1.msra.mxu0 %v371
    %418 = vmatprep.subr.mxu0 %v369
    %419 = vmatpush1.msra.mxu0 %v368
    %420 = vmatprep.subr.mxu0 %v366
    %421 = vmatpush1.msra.mxu0 %v365
    %422 = vmatprep.subr.mxu0 %v363
    %423 = vmatpush1.msra.mxu0 %v362
    %424 = vmatprep.subr.mxu0 %v360
    %425 = vmatpush1.msra.mxu0 %v359
    %426 = vmatprep.subr.mxu0 %v357
    %427 = vmatpush1.msra.mxu0 %v356
    %428 = vmatprep.subr.mxu0 %v354
    %429 = vmatpush1.msra.mxu0 %v353
    %430 = vmatprep.subr.mxu0 %v351
    %431 = vmatpush1.msra.mxu0 %v350
    %432 = vmatprep.subr.mxu0 %v348
    %433 = vmatpush1.msra.mxu0 %v347
    %434 = vmatprep.subr.mxu0 %v345
    %435 = vmatpush1.msra.mxu0 %v344
    %436 = vmatprep.subr.mxu0 %v342
    %437 = vmatpush1.msra.mxu0 %v341
    %438 = vmatprep.subr.mxu0 0.0
    %439 = vmatpush2.msra.mxu0 0.0
    %440 = vmatprep.subr.mxu0 0.0
    %441 = vmatpush2.msra.mxu0 0.0
    %442 = vmatprep.subr.mxu0 0.0
    %443 = vmatpush2.msra.mxu0 0.0
    %444 = vmatprep.subr.mxu0 0.0
    %445 = vmatpush2.msra.mxu0 0.0
    %446 = vmatprep.subr.mxu0 0.0
    %447 = vmatpush2.msra.mxu0 0.0
    %448 = vmatprep.subr.mxu0 0.0
    %449 = vmatpush2.msra.mxu0 0.0
    %450 = vmatprep.subr.mxu0 0.0
    %451 = vmatpush2.msra.mxu0 0.0
    %452 = vmatprep.subr.mxu0 0.0
    %453 = vmatpush2.msra.mxu0 0.0
    %454 = vmatprep.subr.mxu0 0.0
    %455 = vmatpush2.msra.mxu0 0.0
    %456 = vmatprep.subr.mxu0 0.0
    %457 = vmatpush2.msra.mxu0 0.0
    %458 = vmatprep.subr.mxu0 0.0
    %459 = vmatpush2.msra.mxu0 0.0
    %460 = vmatprep.subr.mxu0 0.0
    %461 = vmatpush2.msra.mxu0 0.0
    %462 = vmatprep.subr.mxu0 0.0
    %463 = vmatpush2.msra.mxu0 0.0
    %464 = vmatprep.subr.mxu0 0.0
    %465 = vmatpush2.msra.mxu0 0.0
    %466 = vmatprep.subr.mxu0 0.0
    %467 = vmatpush2.msra.mxu0 0.0
    %468 = vmatprep.subr.mxu0 0.0
    %469 = vmatpush2.msra.mxu0 0.0
    %470 = vmatprep.mubr.f32.mxu0 0.0
    %471 = vmatmul.mubr.f32.gmra.mxu0 %v340
    %v472 = vpop.f32.mrf.mxu0
    %v473 = vadd.f32 %v394, %v472
    %v474 = vpop.f32.mrf.mxu0
    %v475 = vadd.f32 %v398, %v474
    %476 = vdwg.mxu0
    %477 = vmatprep.subr.mxu0 0.0
    %478 = vmatpush1.msra.mxu0 %v388
    %479 = vmatprep.subr.mxu0 0.0
    %480 = vmatpush1.msra.mxu0 %v385
    %481 = vmatprep.subr.mxu0 0.0
    %482 = vmatpush1.msra.mxu0 %v382
    %483 = vmatprep.subr.mxu0 0.0
    %484 = vmatpush1.msra.mxu0 %v379
    %485 = vmatprep.subr.mxu0 0.0
    %486 = vmatpush1.msra.mxu0 %v376
    %487 = vmatprep.subr.mxu0 0.0
    %488 = vmatpush1.msra.mxu0 %v373
    %489 = vmatprep.subr.mxu0 0.0
    %490 = vmatpush1.msra.mxu0 %v370
    %491 = vmatprep.subr.mxu0 0.0
    %492 = vmatpush1.msra.mxu0 %v367
    %493 = vmatprep.subr.mxu0 0.0
    %494 = vmatpush1.msra.mxu0 %v364
    %495 = vmatprep.subr.mxu0 0.0
    %496 = vmatpush1.msra.mxu0 %v361
    %497 = vmatprep.subr.mxu0 0.0
    %498 = vmatpush1.msra.mxu0 %v358
    %499 = vmatprep.subr.mxu0 0.0
    %500 = vmatpush1.msra.mxu0 %v355
    %501 = vmatprep.subr.mxu0 0.0
    %502 = vmatpush1.msra.mxu0 %v352
    %503 = vmatprep.subr.mxu0 0.0
    %504 = vmatpush1.msra.mxu0 %v349
    %505 = vmatprep.subr.mxu0 0.0
    %506 = vmatpush1.msra.mxu0 %v346
    %507 = vmatprep.subr.mxu0 0.0
    %508 = vmatpush1.msra.mxu0 %v343
    %509 = vmatprep.subr.mxu0 0.0
    %510 = vmatpush2.msra.mxu0 0.0
    %511 = vmatprep.subr.mxu0 0.0
    %512 = vmatpush2.msra.mxu0 0.0
    %513 = vmatprep.subr.mxu0 0.0
    %514 = vmatpush2.msra.mxu0 0.0
    %515 = vmatprep.subr.mxu0 0.0
    %516 = vmatpush2.msra.mxu0 0.0
    %517 = vmatprep.subr.mxu0 0.0
    %518 = vmatpush2.msra.mxu0 0.0
    %519 = vmatprep.subr.mxu0 0.0
    %520 = vmatpush2.msra.mxu0 0.0
    %521 = vmatprep.subr.mxu0 0.0
    %522 = vmatpush2.msra.mxu0 0.0
    %523 = vmatprep.subr.mxu0 0.0
    %524 = vmatpush2.msra.mxu0 0.0
    %525 = vmatprep.subr.mxu0 0.0
    %526 = vmatpush2.msra.mxu0 0.0
    %527 = vmatprep.subr.mxu0 0.0
    %528 = vmatpush2.msra.mxu0 0.0
    %529 = vmatprep.subr.mxu0 0.0
    %530 = vmatpush2.msra.mxu0 0.0
    %531 = vmatprep.subr.mxu0 0.0
    %532 = vmatpush2.msra.mxu0 0.0
    %533 = vmatprep.subr.mxu0 0.0
    %534 = vmatpush2.msra.mxu0 0.0
    %535 = vmatprep.subr.mxu0 0.0
    %536 = vmatpush2.msra.mxu0 0.0
    %537 = vmatprep.subr.mxu0 0.0
    %538 = vmatpush2.msra.mxu0 0.0
    %539 = vmatprep.subr.mxu0 0.0
    %540 = vmatpush2.msra.mxu0 0.0
    %541 = vmatprep.mubr.f32.mxu0 0.0
    %542 = vmatmul.mubr.f32.gmra.mxu0 %v340
    %v543 = vpop.f32.mrf.mxu0
    %v544 = vadd.f32 %v402, %v543
    %v545 = vpop.f32.mrf.mxu0
    %546 = vdwg.mxu0
    %v547 = vadd.f32 %v266, %v473
    %v548 = vxor.u32 %v547, 2147483648
    %v549 = vmul.f32 %v548, 1.442695
    %v550 = vpow.pop %v549
    %v551 = vadd.f32 %v550, 1.0
    %v552 = vrcp.pop %v551
    %v553 = vmul.f32 1.0, %v552
    %v554 = vadd.f32 %v268, %v475
    %v555 = vxor.u32 %v554, 2147483648
    %v556 = vmul.f32 %v555, 1.442695
    %v557 = vpow.pop %v556
    %v558 = vadd.f32 %v557, 1.0
    %v559 = vrcp.pop %v558
    %v560 = vmul.f32 1.0, %v559
    %v561 = vmul.f32 %v553, %v544
    %v562 = vadd.f32 %v337, %v561
    %v563 = vtanh.pop %v562
    %v564 = vsub.f32 1.0, %v560
    %v565 = vmul.f32 %v564, %v563
    %v566 = vmul.f32 %v560, %v340
    %v567 = vadd.f32 %v565, %v566
    %568 = vst [vmem:[#allocation3] sm:$0x1] %v567
    %v569 = vld [vmem:[#allocation11] sm:$0xff]
    %v570 = vld [vmem:[#allocation11 + $0x8] sm:$0xff]
    %v571 = vld [vmem:[#allocation11 + $0x10] sm:$0xff]
    %v572 = vld [vmem:[#allocation11 + $0x18] sm:$0xff]
    %v573 = vld [vmem:[#allocation11 + $0x20] sm:$0xff]
    %v574 = vld [vmem:[#allocation11 + $0x28] sm:$0xff]
    %v575 = vld [vmem:[#allocation11 + $0x30] sm:$0xff]
    %v576 = vld [vmem:[#allocation11 + $0x38] sm:$0xff]
    %v577 = vld [vmem:[#allocation11 + $0x40] sm:$0xff]
    %v578 = vld [vmem:[#allocation11 + $0x48] sm:$0xff]
    %v579 = vld [vmem:[#allocation11 + $0x50] sm:$0xff]
    %v580 = vld [vmem:[#allocation11 + $0x58] sm:$0xff]
    %v581 = vld [vmem:[#allocation11 + $0x60] sm:$0xff]
    %v582 = vld [vmem:[#allocation11 + $0x68] sm:$0xff]
    %v583 = vld [vmem:[#allocation11 + $0x70] sm:$0xff]
    %v584 = vld [vmem:[#allocation11 + $0x78] sm:$0xff]
    %v585 = vld [vmem:[#allocation11 + $0x80] sm:$0xff]
    %v586 = vld [vmem:[#allocation11 + $0x88] sm:$0xff]
    %v587 = vld [vmem:[#allocation11 + $0x90] sm:$0xff]
    %v588 = vld [vmem:[#allocation11 + $0x98] sm:$0xff]
    %v589 = vld [vmem:[#allocation11 + $0xa0] sm:$0xff]
    %v590 = vld [vmem:[#allocation11 + $0xa8] sm:$0xff]
    %v591 = vld [vmem:[#allocation11 + $0xb0] sm:$0xff]
    %v592 = vld [vmem:[#allocation11 + $0xb8] sm:$0xff]
    %v593 = vld [vmem:[#allocation11 + $0xc0] sm:$0xff]
    %v594 = vld [vmem:[#allocation11 + $0xc8] sm:$0xff]
    %v595 = vld [vmem:[#allocation11 + $0xd0] sm:$0xff]
    %v596 = vld [vmem:[#allocation11 + $0xd8] sm:$0xff]
    %v597 = vld [vmem:[#allocation11 + $0xe0] sm:$0xff]
    %v598 = vld [vmem:[#allocation11 + $0xe8] sm:$0xff]
    %v599 = vld [vmem:[#allocation11 + $0xf0] sm:$0xff]
    %v600 = vld [vmem:[#allocation11 + $0xf8] sm:$0xff]
    %v601 = vld [vmem:[#allocation11 + $0x100] sm:$0xff]
    %v602 = vld [vmem:[#allocation11 + $0x108] sm:$0xff]
    %v603 = vld [vmem:[#allocation11 + $0x110] sm:$0xff]
    %v604 = vld [vmem:[#allocation11 + $0x118] sm:$0xff]
    %v605 = vld [vmem:[#allocation11 + $0x120] sm:$0xff]
    %v606 = vld [vmem:[#allocation11 + $0x128] sm:$0xff]
    %v607 = vld [vmem:[#allocation11 + $0x130] sm:$0xff]
    %v608 = vld [vmem:[#allocation11 + $0x138] sm:$0xff]
    %v609 = vld [vmem:[#allocation11 + $0x140] sm:$0xff]
    %v610 = vld [vmem:[#allocation11 + $0x148] sm:$0xff]
    %v611 = vld [vmem:[#allocation11 + $0x150] sm:$0xff]
    %v612 = vld [vmem:[#allocation11 + $0x158] sm:$0xff]
    %v613 = vld [vmem:[#allocation11 + $0x160] sm:$0xff]
    %v614 = vld [vmem:[#allocation11 + $0x168] sm:$0xff]
    %v615 = vld [vmem:[#allocation11 + $0x170] sm:$0xff]
    %v616 = vld [vmem:[#allocation11 + $0x178] sm:$0xff]
    %v617 = vld [vmem:[%s6] sm:$0x7]
    %v619 = vlaneseq
    %v620 = vshrl.u32 %v619, 7
    %v621 = vsub.s32 0, %v620
    %v622 = vrot.slane %v617, %v621
    %v623 = vlaneseq
    %v624 = vshrl.u32 %v623, 7
    %v625 = vsub.s32 1, %v624
    %v626 = vrot.slane %v617, %v625
    %v627 = vlaneseq
    %v628 = vshrl.u32 %v627, 7
    %v629 = vsub.s32 2, %v628
    %v630 = vrot.slane %v617, %v629
    %634 = vmatprep.subr.mxu0 %v615
    %635 = vmatpush1.msra.mxu0 %v614
    %636 = vmatprep.subr.mxu0 %v612
    %637 = vmatpush1.msra.mxu0 %v611
    %638 = vmatprep.subr.mxu0 %v609
    %639 = vmatpush1.msra.mxu0 %v608
    %640 = vmatprep.subr.mxu0 %v606
    %641 = vmatpush1.msra.mxu0 %v605
    %642 = vmatprep.subr.mxu0 %v603
    %643 = vmatpush1.msra.mxu0 %v602
    %644 = vmatprep.subr.mxu0 %v600
    %645 = vmatpush1.msra.mxu0 %v599
    %646 = vmatprep.subr.mxu0 %v597
    %647 = vmatpush1.msra.mxu0 %v596
    %648 = vmatprep.subr.mxu0 %v594
    %649 = vmatpush1.msra.mxu0 %v593
    %650 = vmatprep.subr.mxu0 %v591
    %651 = vmatpush1.msra.mxu0 %v590
    %652 = vmatprep.subr.mxu0 %v588
    %653 = vmatpush1.msra.mxu0 %v587
    %654 = vmatprep.subr.mxu0 %v585
    %655 = vmatpush1.msra.mxu0 %v584
    %656 = vmatprep.subr.mxu0 %v582
    %657 = vmatpush1.msra.mxu0 %v581
    %658 = vmatprep.subr.mxu0 %v579
    %659 = vmatpush1.msra.mxu0 %v578
    %660 = vmatprep.subr.mxu0 %v576
    %661 = vmatpush1.msra.mxu0 %v575
    %662 = vmatprep.subr.mxu0 %v573
    %663 = vmatpush1.msra.mxu0 %v572
    %664 = vmatprep.subr.mxu0 %v570
    %665 = vmatpush1.msra.mxu0 %v569
    %666 = vmatprep.subr.mxu0 0.0
    %667 = vmatpush2.msra.mxu0 0.0
    %668 = vmatprep.subr.mxu0 0.0
    %669 = vmatpush2.msra.mxu0 0.0
    %670 = vmatprep.subr.mxu0 0.0
    %671 = vmatpush2.msra.mxu0 0.0
    %672 = vmatprep.subr.mxu0 0.0
    %673 = vmatpush2.msra.mxu0 0.0
    %674 = vmatprep.subr.mxu0 0.0
    %675 = vmatpush2.msra.mxu0 0.0
    %676 = vmatprep.subr.mxu0 0.0
    %677 = vmatpush2.msra.mxu0 0.0
    %678 = vmatprep.subr.mxu0 0.0
    %679 = vmatpush2.msra.mxu0 0.0
    %680 = vmatprep.subr.mxu0 0.0
    %681 = vmatpush2.msra.mxu0 0.0
    %682 = vmatprep.subr.mxu0 0.0
    %683 = vmatpush2.msra.mxu0 0.0
    %684 = vmatprep.subr.mxu0 0.0
    %685 = vmatpush2.msra.mxu0 0.0
    %686 = vmatprep.subr.mxu0 0.0
    %687 = vmatpush2.msra.mxu0 0.0
    %688 = vmatprep.subr.mxu0 0.0
    %689 = vmatpush2.msra.mxu0 0.0
    %690 = vmatprep.subr.mxu0 0.0
    %691 = vmatpush2.msra.mxu0 0.0
    %692 = vmatprep.subr.mxu0 0.0
    %693 = vmatpush2.msra.mxu0 0.0
    %694 = vmatprep.subr.mxu0 0.0
    %695 = vmatpush2.msra.mxu0 0.0
    %696 = vmatprep.subr.mxu0 0.0
    %697 = vmatpush2.msra.mxu0 0.0
    %698 = vmatprep.mubr.f32.mxu0 0.0
    %699 = vmatmul.mubr.f32.gmra.mxu0 %v567
    %v700 = vpop.f32.mrf.mxu0
    %v701 = vadd.f32 %v622, %v700
    %v702 = vpop.f32.mrf.mxu0
    %v703 = vadd.f32 %v626, %v702
    %704 = vdwg.mxu0
    %705 = vmatprep.subr.mxu0 0.0
    %706 = vmatpush1.msra.mxu0 %v616
    %707 = vmatprep.subr.mxu0 0.0
    %708 = vmatpush1.msra.mxu0 %v613
    %709 = vmatprep.subr.mxu0 0.0
    %710 = vmatpush1.msra.mxu0 %v610
    %711 = vmatprep.subr.mxu0 0.0
    %712 = vmatpush1.msra.mxu0 %v607
    %713 = vmatprep.subr.mxu0 0.0
    %714 = vmatpush1.msra.mxu0 %v604
    %715 = vmatprep.subr.mxu0 0.0
    %716 = vmatpush1.msra.mxu0 %v601
    %717 = vmatprep.subr.mxu0 0.0
    %718 = vmatpush1.msra.mxu0 %v598
    %719 = vmatprep.subr.mxu0 0.0
    %720 = vmatpush1.msra.mxu0 %v595
    %721 = vmatprep.subr.mxu0 0.0
    %722 = vmatpush1.msra.mxu0 %v592
    %723 = vmatprep.subr.mxu0 0.0
    %724 = vmatpush1.msra.mxu0 %v589
    %725 = vmatprep.subr.mxu0 0.0
    %726 = vmatpush1.msra.mxu0 %v586
    %727 = vmatprep.subr.mxu0 0.0
    %728 = vmatpush1.msra.mxu0 %v583
    %729 = vmatprep.subr.mxu0 0.0
    %730 = vmatpush1.msra.mxu0 %v580
    %731 = vmatprep.subr.mxu0 0.0
    %732 = vmatpush1.msra.mxu0 %v577
    %733 = vmatprep.subr.mxu0 0.0
    %734 = vmatpush1.msra.mxu0 %v574
    %735 = vmatprep.subr.mxu0 0.0
    %736 = vmatpush1.msra.mxu0 %v571
    %737 = vmatprep.subr.mxu0 0.0
    %738 = vmatpush2.msra.mxu0 0.0
    %739 = vmatprep.subr.mxu0 0.0
    %740 = vmatpush2.msra.mxu0 0.0
    %741 = vmatprep.subr.mxu0 0.0
    %742 = vmatpush2.msra.mxu0 0.0
    %743 = vmatprep.subr.mxu0 0.0
    %744 = vmatpush2.msra.mxu0 0.0
    %745 = vmatprep.subr.mxu0 0.0
    %746 = vmatpush2.msra.mxu0 0.0
    %747 = vmatprep.subr.mxu0 0.0
    %748 = vmatpush2.msra.mxu0 0.0
    %749 = vmatprep.subr.mxu0 0.0
    %750 = vmatpush2.msra.mxu0 0.0
    %751 = vmatprep.subr.mxu0 0.0
    %752 = vmatpush2.msra.mxu0 0.0
    %753 = vmatprep.subr.mxu0 0.0
    %754 = vmatpush2.msra.mxu0 0.0
    %755 = vmatprep.subr.mxu0 0.0
    %756 = vmatpush2.msra.mxu0 0.0
    %757 = vmatprep.subr.mxu0 0.0
    %758 = vmatpush2.msra.mxu0 0.0
    %759 = vmatprep.subr.mxu0 0.0
    %760 = vmatpush2.msra.mxu0 0.0
    %761 = vmatprep.subr.mxu0 0.0
    %762 = vmatpush2.msra.mxu0 0.0
    %763 = vmatprep.subr.mxu0 0.0
    %764 = vmatpush2.msra.mxu0 0.0
    %765 = vmatprep.subr.mxu0 0.0
    %766 = vmatpush2.msra.mxu0 0.0
    %767 = vmatprep.subr.mxu0 0.0
    %768 = vmatpush2.msra.mxu0 0.0
    %769 = vmatprep.mubr.f32.mxu0 0.0
    %770 = vmatmul.mubr.f32.gmra.mxu0 %v567
    %v771 = vpop.f32.mrf.mxu0
    %v772 = vadd.f32 %v630, %v771
    %v773 = vpop.f32.mrf.mxu0
    %774 = vdwg.mxu0
    %v776 = vrot.slane %v701, 7
    %v778 = vadd.f32 %v266, %v776
    %v779 = vxor.u32 %v778, 2147483648
    %v780 = vmul.f32 %v779, 1.442695
    %v781 = vpow.pop %v780
    %v782 = vadd.f32 %v781, 1.0
    %v783 = vrcp.pop %v782
    %v784 = vmul.f32 1.0, %v783
    %v786 = vrot.slane %v703, 7
    %v788 = vadd.f32 %v268, %v786
    %v789 = vxor.u32 %v788, 2147483648
    %v790 = vmul.f32 %v789, 1.442695
    %v791 = vpow.pop %v790
    %v792 = vadd.f32 %v791, 1.0
    %v793 = vrcp.pop %v792
    %v794 = vmul.f32 1.0, %v793
    %v796 = vrot.slane %v772, 7
    %v798 = vmul.f32 %v784, %v796
    %v799 = vadd.f32 %v337, %v798
    %v800 = vtanh.pop %v799
    %v801 = vsub.f32 1.0, %v794
    %v802 = vmul.f32 %v801, %v800
    %v804 = vrot.slane %v567, 7
    %v806 = vmul.f32 %v794, %v804
    %v807 = vadd.f32 %v802, %v806
    %808 = vst [vmem:[#allocation3] sm:$0x2] %v807
    %v809 = vld [vmem:[#allocation11] sm:$0xff]
    %v810 = vld [vmem:[#allocation11 + $0x8] sm:$0xff]
    %v811 = vld [vmem:[#allocation11 + $0x10] sm:$0xff]
    %v812 = vld [vmem:[#allocation11 + $0x18] sm:$0xff]
    %v813 = vld [vmem:[#allocation11 + $0x20] sm:$0xff]
    %v814 = vld [vmem:[#allocation11 + $0x28] sm:$0xff]
    %v815 = vld [vmem:[#allocation11 + $0x30] sm:$0xff]
    %v816 = vld [vmem:[#allocation11 + $0x38] sm:$0xff]
    %v817 = vld [vmem:[#allocation11 + $0x40] sm:$0xff]
    %v818 = vld [vmem:[#allocation11 + $0x48] sm:$0xff]
    %v819 = vld [vmem:[#allocation11 + $0x50] sm:$0xff]
    %v820 = vld [vmem:[#allocation11 + $0x58] sm:$0xff]
    %v821 = vld [vmem:[#allocation11 + $0x60] sm:$0xff]
    %v822 = vld [vmem:[#allocation11 + $0x68] sm:$0xff]
    %v823 = vld [vmem:[#allocation11 + $0x70] sm:$0xff]
    %v824 = vld [vmem:[#allocation11 + $0x78] sm:$0xff]
    %v825 = vld [vmem:[#allocation11 + $0x80] sm:$0xff]
    %v826 = vld [vmem:[#allocation11 + $0x88] sm:$0xff]
    %v827 = vld [vmem:[#allocation11 + $0x90] sm:$0xff]
    %v828 = vld [vmem:[#allocation11 + $0x98] sm:$0xff]
    %v829 = vld [vmem:[#allocation11 + $0xa0] sm:$0xff]
    %v830 = vld [vmem:[#allocation11 + $0xa8] sm:$0xff]
    %v831 = vld [vmem:[#allocation11 + $0xb0] sm:$0xff]
    %v832 = vld [vmem:[#allocation11 + $0xb8] sm:$0xff]
    %v833 = vld [vmem:[#allocation11 + $0xc0] sm:$0xff]
    %v834 = vld [vmem:[#allocation11 + $0xc8] sm:$0xff]
    %v835 = vld [vmem:[#allocation11 + $0xd0] sm:$0xff]
    %v836 = vld [vmem:[#allocation11 + $0xd8] sm:$0xff]
    %v837 = vld [vmem:[#allocation11 + $0xe0] sm:$0xff]
    %v838 = vld [vmem:[#allocation11 + $0xe8] sm:$0xff]
    %v839 = vld [vmem:[#allocation11 + $0xf0] sm:$0xff]
    %v840 = vld [vmem:[#allocation11 + $0xf8] sm:$0xff]
    %v841 = vld [vmem:[#allocation11 + $0x100] sm:$0xff]
    %v842 = vld [vmem:[#allocation11 + $0x108] sm:$0xff]
    %v843 = vld [vmem:[#allocation11 + $0x110] sm:$0xff]
    %v844 = vld [vmem:[#allocation11 + $0x118] sm:$0xff]
    %v845 = vld [vmem:[#allocation11 + $0x120] sm:$0xff]
    %v846 = vld [vmem:[#allocation11 + $0x128] sm:$0xff]
    %v847 = vld [vmem:[#allocation11 + $0x130] sm:$0xff]
    %v848 = vld [vmem:[#allocation11 + $0x138] sm:$0xff]
    %v849 = vld [vmem:[#allocation11 + $0x140] sm:$0xff]
    %v850 = vld [vmem:[#allocation11 + $0x148] sm:$0xff]
    %v851 = vld [vmem:[#allocation11 + $0x150] sm:$0xff]
    %v852 = vld [vmem:[#allocation11 + $0x158] sm:$0xff]
    %v853 = vld [vmem:[#allocation11 + $0x160] sm:$0xff]
    %v854 = vld [vmem:[#allocation11 + $0x168] sm:$0xff]
    %v855 = vld [vmem:[#allocation11 + $0x170] sm:$0xff]
    %v856 = vld [vmem:[#allocation11 + $0x178] sm:$0xff]
    %v857 = vld [vmem:[%s6] sm:$0x7]
    %v859 = vrot.slane %v807, 1
    %v862 = vlaneseq
    %v863 = vshrl.u32 %v862, 7
    %v864 = vsub.s32 0, %v863
    %v865 = vrot.slane %v857, %v864
    %v866 = vlaneseq
    %v867 = vshrl.u32 %v866, 7
    %v868 = vsub.s32 1, %v867
    %v869 = vrot.slane %v857, %v868
    %v870 = vlaneseq
    %v871 = vshrl.u32 %v870, 7
    %v872 = vsub.s32 2, %v871
    %v873 = vrot.slane %v857, %v872
    %877 = vmatprep.subr.mxu0 %v855
    %878 = vmatpush1.msra.mxu0 %v854
    %879 = vmatprep.subr.mxu0 %v852
    %880 = vmatpush1.msra.mxu0 %v851
    %881 = vmatprep.subr.mxu0 %v849
    %882 = vmatpush1.msra.mxu0 %v848
    %883 = vmatprep.subr.mxu0 %v846
    %884 = vmatpush1.msra.mxu0 %v845
    %885 = vmatprep.subr.mxu0 %v843
    %886 = vmatpush1.msra.mxu0 %v842
    %887 = vmatprep.subr.mxu0 %v840
    %888 = vmatpush1.msra.mxu0 %v839
    %889 = vmatprep.subr.mxu0 %v837
    %890 = vmatpush1.msra.mxu0 %v836
    %891 = vmatprep.subr.mxu0 %v834
    %892 = vmatpush1.msra.mxu0 %v833
    %893 = vmatprep.subr.mxu0 %v831
    %894 = vmatpush1.msra.mxu0 %v830
    %895 = vmatprep.subr.mxu0 %v828
    %896 = vmatpush1.msra.mxu0 %v827
    %897 = vmatprep.subr.mxu0 %v825
    %898 = vmatpush1.msra.mxu0 %v824
    %899 = vmatprep.subr.mxu0 %v822
    %900 = vmatpush1.msra.mxu0 %v821
    %901 = vmatprep.subr.mxu0 %v819
    %902 = vmatpush1.msra.mxu0 %v818
    %903 = vmatprep.subr.mxu0 %v816
    %904 = vmatpush1.msra.mxu0 %v815
    %905 = vmatprep.subr.mxu0 %v813
    %906 = vmatpush1.msra.mxu0 %v812
    %907 = vmatprep.subr.mxu0 %v810
    %908 = vmatpush1.msra.mxu0 %v809
    %909 = vmatprep.subr.mxu0 0.0
    %910 = vmatpush2.msra.mxu0 0.0
    %911 = vmatprep.subr.mxu0 0.0
    %912 = vmatpush2.msra.mxu0 0.0
    %913 = vmatprep.subr.mxu0 0.0
    %914 = vmatpush2.msra.mxu0 0.0
    %915 = vmatprep.subr.mxu0 0.0
    %916 = vmatpush2.msra.mxu0 0.0
    %917 = vmatprep.subr.mxu0 0.0
    %918 = vmatpush2.msra.mxu0 0.0
    %919 = vmatprep.subr.mxu0 0.0
    %920 = vmatpush2.msra.mxu0 0.0
    %921 = vmatprep.subr.mxu0 0.0
    %922 = vmatpush2.msra.mxu0 0.0
    %923 = vmatprep.subr.mxu0 0.0
    %924 = vmatpush2.msra.mxu0 0.0
    %925 = vmatprep.subr.mxu0 0.0
    %926 = vmatpush2.msra.mxu0 0.0
    %927 = vmatprep.subr.mxu0 0.0
    %928 = vmatpush2.msra.mxu0 0.0
    %929 = vmatprep.subr.mxu0 0.0
    %930 = vmatpush2.msra.mxu0 0.0
    %931 = vmatprep.subr.mxu0 0.0
    %932 = vmatpush2.msra.mxu0 0.0
    %933 = vmatprep.subr.mxu0 0.0
    %934 = vmatpush2.msra.mxu0 0.0
    %935 = vmatprep.subr.mxu0 0.0
    %936 = vmatpush2.msra.mxu0 0.0
    %937 = vmatprep.subr.mxu0 0.0
    %938 = vmatpush2.msra.mxu0 0.0
    %939 = vmatprep.subr.mxu0 0.0
    %940 = vmatpush2.msra.mxu0 0.0
    %941 = vmatprep.mubr.f32.mxu0 0.0
    %942 = vmatmul.mubr.f32.gmra.mxu0 %v859
    %v943 = vpop.f32.mrf.mxu0
    %v944 = vadd.f32 %v865, %v943
    %v945 = vpop.f32.mrf.mxu0
    %v946 = vadd.f32 %v869, %v945
    %947 = vdwg.mxu0
    %948 = vmatprep.subr.mxu0 0.0
    %949 = vmatpush1.msra.mxu0 %v856
    %950 = vmatprep.subr.mxu0 0.0
    %951 = vmatpush1.msra.mxu0 %v853
    %952 = vmatprep.subr.mxu0 0.0
    %953 = vmatpush1.msra.mxu0 %v850
    %954 = vmatprep.subr.mxu0 0.0
    %955 = vmatpush1.msra.mxu0 %v847
    %956 = vmatprep.subr.mxu0 0.0
    %957 = vmatpush1.msra.mxu0 %v844
    %958 = vmatprep.subr.mxu0 0.0
    %959 = vmatpush1.msra.mxu0 %v841
    %960 = vmatprep.subr.mxu0 0.0
    %961 = vmatpush1.msra.mxu0 %v838
    %962 = vmatprep.subr.mxu0 0.0
    %963 = vmatpush1.msra.mxu0 %v835
    %964 = vmatprep.subr.mxu0 0.0
    %965 = vmatpush1.msra.mxu0 %v832
    %966 = vmatprep.subr.mxu0 0.0
    %967 = vmatpush1.msra.mxu0 %v829
    %968 = vmatprep.subr.mxu0 0.0
    %969 = vmatpush1.msra.mxu0 %v826
    %970 = vmatprep.subr.mxu0 0.0
    %971 = vmatpush1.msra.mxu0 %v823
    %972 = vmatprep.subr.mxu0 0.0
    %973 = vmatpush1.msra.mxu0 %v820
    %974 = vmatprep.subr.mxu0 0.0
    %975 = vmatpush1.msra.mxu0 %v817
    %976 = vmatprep.subr.mxu0 0.0
    %977 = vmatpush1.msra.mxu0 %v814
    %978 = vmatprep.subr.mxu0 0.0
    %979 = vmatpush1.msra.mxu0 %v811
    %980 = vmatprep.subr.mxu0 0.0
    %981 = vmatpush2.msra.mxu0 0.0
    %982 = vmatprep.subr.mxu0 0.0
    %983 = vmatpush2.msra.mxu0 0.0
    %984 = vmatprep.subr.mxu0 0.0
    %985 = vmatpush2.msra.mxu0 0.0
    %986 = vmatprep.subr.mxu0 0.0
    %987 = vmatpush2.msra.mxu0 0.0
    %988 = vmatprep.subr.mxu0 0.0
    %989 = vmatpush2.msra.mxu0 0.0
    %990 = vmatprep.subr.mxu0 0.0
    %991 = vmatpush2.msra.mxu0 0.0
    %992 = vmatprep.subr.mxu0 0.0
    %993 = vmatpush2.msra.mxu0 0.0
    %994 = vmatprep.subr.mxu0 0.0
    %995 = vmatpush2.msra.mxu0 0.0
    %996 = vmatprep.subr.mxu0 0.0
    %997 = vmatpush2.msra.mxu0 0.0
    %998 = vmatprep.subr.mxu0 0.0
    %999 = vmatpush2.msra.mxu0 0.0
    %1000 = vmatprep.subr.mxu0 0.0
    %1001 = vmatpush2.msra.mxu0 0.0
    %1002 = vmatprep.subr.mxu0 0.0
    %1003 = vmatpush2.msra.mxu0 0.0
    %1004 = vmatprep.subr.mxu0 0.0
    %1005 = vmatpush2.msra.mxu0 0.0
    %1006 = vmatprep.subr.mxu0 0.0
    %1007 = vmatpush2.msra.mxu0 0.0
    %1008 = vmatprep.subr.mxu0 0.0
    %1009 = vmatpush2.msra.mxu0 0.0
    %1010 = vmatprep.subr.mxu0 0.0
    %1011 = vmatpush2.msra.mxu0 0.0
    %1012 = vmatprep.mubr.f32.mxu0 0.0
    %1013 = vmatmul.mubr.f32.gmra.mxu0 %v859
    %v1014 = vpop.f32.mrf.mxu0
    %v1015 = vadd.f32 %v873, %v1014
    %v1016 = vpop.f32.mrf.mxu0
    %1017 = vdwg.mxu0
    %v1019 = vrot.slane %v944, 6
    %v1021 = vadd.f32 %v266, %v1019
    %v1022 = vxor.u32 %v1021, 2147483648
    %v1023 = vmul.f32 %v1022, 1.442695
    %v1024 = vpow.pop %v1023
    %v1025 = vadd.f32 %v1024, 1.0
    %v1026 = vrcp.pop %v1025
    %v1027 = vmul.f32 1.0, %v1026
    %v1029 = vrot.slane %v946, 6
    %v1031 = vadd.f32 %v268, %v1029
    %v1032 = vxor.u32 %v1031, 2147483648
    %v1033 = vmul.f32 %v1032, 1.442695
    %v1034 = vpow.pop %v1033
    %v1035 = vadd.f32 %v1034, 1.0
    %v1036 = vrcp.pop %v1035
    %v1037 = vmul.f32 1.0, %v1036
    %v1039 = vrot.slane %v1015, 6
    %v1041 = vmul.f32 %v1027, %v1039
    %v1042 = vadd.f32 %v337, %v1041
    %v1043 = vtanh.pop %v1042
    %v1044 = vsub.f32 1.0, %v1037
    %v1045 = vmul.f32 %v1044, %v1043
    %v1046 = vrot.slane %v807, 7
    %v1048 = vmul.f32 %v1037, %v1046
    %v1049 = vadd.f32 %v1045, %v1048
    %1050 = vst [vmem:[#allocation3] sm:$0x4] %v1049
    %v1051 = vld [vmem:[#allocation11] sm:$0xff]
    %v1052 = vld [vmem:[#allocation11 + $0x8] sm:$0xff]
    %v1053 = vld [vmem:[#allocation11 + $0x10] sm:$0xff]
    %v1054 = vld [vmem:[#allocation11 + $0x18] sm:$0xff]
    %v1055 = vld [vmem:[#allocation11 + $0x20] sm:$0xff]
    %v1056 = vld [vmem:[#allocation11 + $0x28] sm:$0xff]
    %v1057 = vld [vmem:[#allocation11 + $0x30] sm:$0xff]
    %v1058 = vld [vmem:[#allocation11 + $0x38] sm:$0xff]
    %v1059 = vld [vmem:[#allocation11 + $0x40] sm:$0xff]
    %v1060 = vld [vmem:[#allocation11 + $0x48] sm:$0xff]
    %v1061 = vld [vmem:[#allocation11 + $0x50] sm:$0xff]
    %v1062 = vld [vmem:[#allocation11 + $0x58] sm:$0xff]
    %v1063 = vld [vmem:[#allocation11 + $0x60] sm:$0xff]
    %v1064 = vld [vmem:[#allocation11 + $0x68] sm:$0xff]
    %v1065 = vld [vmem:[#allocation11 + $0x70] sm:$0xff]
    %v1066 = vld [vmem:[#allocation11 + $0x78] sm:$0xff]
    %v1067 = vld [vmem:[#allocation11 + $0x80] sm:$0xff]
    %v1068 = vld [vmem:[#allocation11 + $0x88] sm:$0xff]
    %v1069 = vld [vmem:[#allocation11 + $0x90] sm:$0xff]
    %v1070 = vld [vmem:[#allocation11 + $0x98] sm:$0xff]
    %v1071 = vld [vmem:[#allocation11 + $0xa0] sm:$0xff]
    %v1072 = vld [vmem:[#allocation11 + $0xa8] sm:$0xff]
    %v1073 = vld [vmem:[#allocation11 + $0xb0] sm:$0xff]
    %v1074 = vld [vmem:[#allocation11 + $0xb8] sm:$0xff]
    %v1075 = vld [vmem:[#allocation11 + $0xc0] sm:$0xff]
    %v1076 = vld [vmem:[#allocation11 + $0xc8] sm:$0xff]
    %v1077 = vld [vmem:[#allocation11 + $0xd0] sm:$0xff]
    %v1078 = vld [vmem:[#allocation11 + $0xd8] sm:$0xff]
    %v1079 = vld [vmem:[#allocation11 + $0xe0] sm:$0xff]
    %v1080 = vld [vmem:[#allocation11 + $0xe8] sm:$0xff]
    %v1081 = vld [vmem:[#allocation11 + $0xf0] sm:$0xff]
    %v1082 = vld [vmem:[#allocation11 + $0xf8] sm:$0xff]
    %v1083 = vld [vmem:[#allocation11 + $0x100] sm:$0xff]
    %v1084 = vld [vmem:[#allocation11 + $0x108] sm:$0xff]
    %v1085 = vld [vmem:[#allocation11 + $0x110] sm:$0xff]
    %v1086 = vld [vmem:[#allocation11 + $0x118] sm:$0xff]
    %v1087 = vld [vmem:[#allocation11 + $0x120] sm:$0xff]
    %v1088 = vld [vmem:[#allocation11 + $0x128] sm:$0xff]
    %v1089 = vld [vmem:[#allocation11 + $0x130] sm:$0xff]
    %v1090 = vld [vmem:[#allocation11 + $0x138] sm:$0xff]
    %v1091 = vld [vmem:[#allocation11 + $0x140] sm:$0xff]
    %v1092 = vld [vmem:[#allocation11 + $0x148] sm:$0xff]
    %v1093 = vld [vmem:[#allocation11 + $0x150] sm:$0xff]
    %v1094 = vld [vmem:[#allocation11 + $0x158] sm:$0xff]
    %v1095 = vld [vmem:[#allocation11 + $0x160] sm:$0xff]
    %v1096 = vld [vmem:[#allocation11 + $0x168] sm:$0xff]
    %v1097 = vld [vmem:[#allocation11 + $0x170] sm:$0xff]
    %v1098 = vld [vmem:[#allocation11 + $0x178] sm:$0xff]
    %v1099 = vld [vmem:[%s6] sm:$0x7]
    %v1101 = vrot.slane %v1049, 2
    %v1104 = vlaneseq
    %v1105 = vshrl.u32 %v1104, 7
    %v1106 = vsub.s32 0, %v1105
    %v1107 = vrot.slane %v1099, %v1106
    %v1108 = vlaneseq
    %v1109 = vshrl.u32 %v1108, 7
    %v1110 = vsub.s32 1, %v1109
    %v1111 = vrot.slane %v1099, %v1110
    %v1112 = vlaneseq
    %v1113 = vshrl.u32 %v1112, 7
    %v1114 = vsub.s32 2, %v1113
    %v1115 = vrot.slane %v1099, %v1114
    %1119 = vmatprep.subr.mxu0 %v1097
    %1120 = vmatpush1.msra.mxu0 %v1096
    %1121 = vmatprep.subr.mxu0 %v1094
    %1122 = vmatpush1.msra.mxu0 %v1093
    %1123 = vmatprep.subr.mxu0 %v1091
    %1124 = vmatpush1.msra.mxu0 %v1090
    %1125 = vmatprep.subr.mxu0 %v1088
    %1126 = vmatpush1.msra.mxu0 %v1087
    %1127 = vmatprep.subr.mxu0 %v1085
    %1128 = vmatpush1.msra.mxu0 %v1084
    %1129 = vmatprep.subr.mxu0 %v1082
    %1130 = vmatpush1.msra.mxu0 %v1081
    %1131 = vmatprep.subr.mxu0 %v1079
    %1132 = vmatpush1.msra.mxu0 %v1078
    %1133 = vmatprep.subr.mxu0 %v1076
    %1134 = vmatpush1.msra.mxu0 %v1075
    %1135 = vmatprep.subr.mxu0 %v1073
    %1136 = vmatpush1.msra.mxu0 %v1072
    %1137 = vmatprep.subr.mxu0 %v1070
    %1138 = vmatpush1.msra.mxu0 %v1069
    %1139 = vmatprep.subr.mxu0 %v1067
    %1140 = vmatpush1.msra.mxu0 %v1066
    %1141 = vmatprep.subr.mxu0 %v1064
    %1142 = vmatpush1.msra.mxu0 %v1063
    %1143 = vmatprep.subr.mxu0 %v1061
    %1144 = vmatpush1.msra.mxu0 %v1060
    %1145 = vmatprep.subr.mxu0 %v1058
    %1146 = vmatpush1.msra.mxu0 %v1057
    %1147 = vmatprep.subr.mxu0 %v1055
    %1148 = vmatpush1.msra.mxu0 %v1054
    %1149 = vmatprep.subr.mxu0 %v1052
    %1150 = vmatpush1.msra.mxu0 %v1051
    %1151 = vmatprep.subr.mxu0 0.0
    %1152 = vmatpush2.msra.mxu0 0.0
    %1153 = vmatprep.subr.mxu0 0.0
    %1154 = vmatpush2.msra.mxu0 0.0
    %1155 = vmatprep.subr.mxu0 0.0
    %1156 = vmatpush2.msra.mxu0 0.0
    %1157 = vmatprep.subr.mxu0 0.0
    %1158 = vmatpush2.msra.mxu0 0.0
    %1159 = vmatprep.subr.mxu0 0.0
    %1160 = vmatpush2.msra.mxu0 0.0
    %1161 = vmatprep.subr.mxu0 0.0
    %1162 = vmatpush2.msra.mxu0 0.0
    %1163 = vmatprep.subr.mxu0 0.0
    %1164 = vmatpush2.msra.mxu0 0.0
    %1165 = vmatprep.subr.mxu0 0.0
    %1166 = vmatpush2.msra.mxu0 0.0
    %1167 = vmatprep.subr.mxu0 0.0
    %1168 = vmatpush2.msra.mxu0 0.0
    %1169 = vmatprep.subr.mxu0 0.0
    %1170 = vmatpush2.msra.mxu0 0.0
    %1171 = vmatprep.subr.mxu0 0.0
    %1172 = vmatpush2.msra.mxu0 0.0
    %1173 = vmatprep.subr.mxu0 0.0
    %1174 = vmatpush2.msra.mxu0 0.0
    %1175 = vmatprep.subr.mxu0 0.0
    %1176 = vmatpush2.msra.mxu0 0.0
    %1177 = vmatprep.subr.mxu0 0.0
    %1178 = vmatpush2.msra.mxu0 0.0
    %1179 = vmatprep.subr.mxu0 0.0
    %1180 = vmatpush2.msra.mxu0 0.0
    %1181 = vmatprep.subr.mxu0 0.0
    %1182 = vmatpush2.msra.mxu0 0.0
    %1183 = vmatprep.mubr.f32.mxu0 0.0
    %1184 = vmatmul.mubr.f32.gmra.mxu0 %v1101
    %v1185 = vpop.f32.mrf.mxu0
    %v1186 = vadd.f32 %v1107, %v1185
    %v1187 = vpop.f32.mrf.mxu0
    %v1188 = vadd.f32 %v1111, %v1187
    %1189 = vdwg.mxu0
    %1190 = vmatprep.subr.mxu0 0.0
    %1191 = vmatpush1.msra.mxu0 %v1098
    %1192 = vmatprep.subr.mxu0 0.0
    %1193 = vmatpush1.msra.mxu0 %v1095
    %1194 = vmatprep.subr.mxu0 0.0
    %1195 = vmatpush1.msra.mxu0 %v1092
    %1196 = vmatprep.subr.mxu0 0.0
    %1197 = vmatpush1.msra.mxu0 %v1089
    %1198 = vmatprep.subr.mxu0 0.0
    %1199 = vmatpush1.msra.mxu0 %v1086
    %1200 = vmatprep.subr.mxu0 0.0
    %1201 = vmatpush1.msra.mxu0 %v1083
    %1202 = vmatprep.subr.mxu0 0.0
    %1203 = vmatpush1.msra.mxu0 %v1080
    %1204 = vmatprep.subr.mxu0 0.0
    %1205 = vmatpush1.msra.mxu0 %v1077
    %1206 = vmatprep.subr.mxu0 0.0
    %1207 = vmatpush1.msra.mxu0 %v1074
    %1208 = vmatprep.subr.mxu0 0.0
    %1209 = vmatpush1.msra.mxu0 %v1071
    %1210 = vmatprep.subr.mxu0 0.0
    %1211 = vmatpush1.msra.mxu0 %v1068
    %1212 = vmatprep.subr.mxu0 0.0
    %1213 = vmatpush1.msra.mxu0 %v1065
    %1214 = vmatprep.subr.mxu0 0.0
    %1215 = vmatpush1.msra.mxu0 %v1062
    %1216 = vmatprep.subr.mxu0 0.0
    %1217 = vmatpush1.msra.mxu0 %v1059
    %1218 = vmatprep.subr.mxu0 0.0
    %1219 = vmatpush1.msra.mxu0 %v1056
    %1220 = vmatprep.subr.mxu0 0.0
    %1221 = vmatpush1.msra.mxu0 %v1053
    %1222 = vmatprep.subr.mxu0 0.0
    %1223 = vmatpush2.msra.mxu0 0.0
    %1224 = vmatprep.subr.mxu0 0.0
    %1225 = vmatpush2.msra.mxu0 0.0
    %1226 = vmatprep.subr.mxu0 0.0
    %1227 = vmatpush2.msra.mxu0 0.0
    %1228 = vmatprep.subr.mxu0 0.0
    %1229 = vmatpush2.msra.mxu0 0.0
    %1230 = vmatprep.subr.mxu0 0.0
    %1231 = vmatpush2.msra.mxu0 0.0
    %1232 = vmatprep.subr.mxu0 0.0
    %1233 = vmatpush2.msra.mxu0 0.0
    %1234 = vmatprep.subr.mxu0 0.0
    %1235 = vmatpush2.msra.mxu0 0.0
    %1236 = vmatprep.subr.mxu0 0.0
    %1237 = vmatpush2.msra.mxu0 0.0
    %1238 = vmatprep.subr.mxu0 0.0
    %1239 = vmatpush2.msra.mxu0 0.0
    %1240 = vmatprep.subr.mxu0 0.0
    %1241 = vmatpush2.msra.mxu0 0.0
    %1242 = vmatprep.subr.mxu0 0.0
    %1243 = vmatpush2.msra.mxu0 0.0
    %1244 = vmatprep.subr.mxu0 0.0
    %1245 = vmatpush2.msra.mxu0 0.0
    %1246 = vmatprep.subr.mxu0 0.0
    %1247 = vmatpush2.msra.mxu0 0.0
    %1248 = vmatprep.subr.mxu0 0.0
    %1249 = vmatpush2.msra.mxu0 0.0
    %1250 = vmatprep.subr.mxu0 0.0
    %1251 = vmatpush2.msra.mxu0 0.0
    %1252 = vmatprep.subr.mxu0 0.0
    %1253 = vmatpush2.msra.mxu0 0.0
    %1254 = vmatprep.mubr.f32.mxu0 0.0
    %1255 = vmatmul.mubr.f32.gmra.mxu0 %v1101
    %v1256 = vpop.f32.mrf.mxu0
    %v1257 = vadd.f32 %v1115, %v1256
    %v1258 = vpop.f32.mrf.mxu0
    %1259 = vdwg.mxu0
    %v1261 = vrot.slane %v1186, 5
    %v1263 = vadd.f32 %v266, %v1261
    %v1264 = vxor.u32 %v1263, 2147483648
    %v1265 = vmul.f32 %v1264, 1.442695
    %v1266 = vpow.pop %v1265
    %v1267 = vadd.f32 %v1266, 1.0
    %v1268 = vrcp.pop %v1267
    %v1269 = vmul.f32 1.0, %v1268
    %v1271 = vrot.slane %v1188, 5
    %v1273 = vadd.f32 %v268, %v1271
    %v1274 = vxor.u32 %v1273, 2147483648
    %v1275 = vmul.f32 %v1274, 1.442695
    %v1276 = vpow.pop %v1275
    %v1277 = vadd.f32 %v1276, 1.0
    %v1278 = vrcp.pop %v1277
    %v1279 = vmul.f32 1.0, %v1278
    %v1281 = vrot.slane %v1257, 5
    %v1283 = vmul.f32 %v1269, %v1281
    %v1284 = vadd.f32 %v337, %v1283
    %v1285 = vtanh.pop %v1284
    %v1286 = vsub.f32 1.0, %v1279
    %v1287 = vmul.f32 %v1286, %v1285
    %v1288 = vrot.slane %v1049, 7
    %v1290 = vmul.f32 %v1279, %v1288
    %v1291 = vadd.f32 %v1287, %v1290
    %1292 = vst [vmem:[#allocation3] sm:$0x8] %v1291
    %v1293 = vld [vmem:[#allocation11] sm:$0xff]
    %v1294 = vld [vmem:[#allocation11 + $0x8] sm:$0xff]
    %v1295 = vld [vmem:[#allocation11 + $0x10] sm:$0xff]
    %v1296 = vld [vmem:[#allocation11 + $0x18] sm:$0xff]
    %v1297 = vld [vmem:[#allocation11 + $0x20] sm:$0xff]
    %v1298 = vld [vmem:[#allocation11 + $0x28] sm:$0xff]
    %v1299 = vld [vmem:[#allocation11 + $0x30] sm:$0xff]
    %v1300 = vld [vmem:[#allocation11 + $0x38] sm:$0xff]
    %v1301 = vld [vmem:[#allocation11 + $0x40] sm:$0xff]
    %v1302 = vld [vmem:[#allocation11 + $0x48] sm:$0xff]
    %v1303 = vld [vmem:[#allocation11 + $0x50] sm:$0xff]
    %v1304 = vld [vmem:[#allocation11 + $0x58] sm:$0xff]
    %v1305 = vld [vmem:[#allocation11 + $0x60] sm:$0xff]
    %v1306 = vld [vmem:[#allocation11 + $0x68] sm:$0xff]
    %v1307 = vld [vmem:[#allocation11 + $0x70] sm:$0xff]
    %v1308 = vld [vmem:[#allocation11 + $0x78] sm:$0xff]
    %v1309 = vld [vmem:[#allocation11 + $0x80] sm:$0xff]
    %v1310 = vld [vmem:[#allocation11 + $0x88] sm:$0xff]
    %v1311 = vld [vmem:[#allocation11 + $0x90] sm:$0xff]
    %v1312 = vld [vmem:[#allocation11 + $0x98] sm:$0xff]
    %v1313 = vld [vmem:[#allocation11 + $0xa0] sm:$0xff]
    %v1314 = vld [vmem:[#allocation11 + $0xa8] sm:$0xff]
    %v1315 = vld [vmem:[#allocation11 + $0xb0] sm:$0xff]
    %v1316 = vld [vmem:[#allocation11 + $0xb8] sm:$0xff]
    %v1317 = vld [vmem:[#allocation11 + $0xc0] sm:$0xff]
    %v1318 = vld [vmem:[#allocation11 + $0xc8] sm:$0xff]
    %v1319 = vld [vmem:[#allocation11 + $0xd0] sm:$0xff]
    %v1320 = vld [vmem:[#allocation11 + $0xd8] sm:$0xff]
    %v1321 = vld [vmem:[#allocation11 + $0xe0] sm:$0xff]
    %v1322 = vld [vmem:[#allocation11 + $0xe8] sm:$0xff]
    %v1323 = vld [vmem:[#allocation11 + $0xf0] sm:$0xff]
    %v1324 = vld [vmem:[#allocation11 + $0xf8] sm:$0xff]
    %v1325 = vld [vmem:[#allocation11 + $0x100] sm:$0xff]
    %v1326 = vld [vmem:[#allocation11 + $0x108] sm:$0xff]
    %v1327 = vld [vmem:[#allocation11 + $0x110] sm:$0xff]
    %v1328 = vld [vmem:[#allocation11 + $0x118] sm:$0xff]
    %v1329 = vld [vmem:[#allocation11 + $0x120] sm:$0xff]
    %v1330 = vld [vmem:[#allocation11 + $0x128] sm:$0xff]
    %v1331 = vld [vmem:[#allocation11 + $0x130] sm:$0xff]
    %v1332 = vld [vmem:[#allocation11 + $0x138] sm:$0xff]
    %v1333 = vld [vmem:[#allocation11 + $0x140] sm:$0xff]
    %v1334 = vld [vmem:[#allocation11 + $0x148] sm:$0xff]
    %v1335 = vld [vmem:[#allocation11 + $0x150] sm:$0xff]
    %v1336 = vld [vmem:[#allocation11 + $0x158] sm:$0xff]
    %v1337 = vld [vmem:[#allocation11 + $0x160] sm:$0xff]
    %v1338 = vld [vmem:[#allocation11 + $0x168] sm:$0xff]
    %v1339 = vld [vmem:[#allocation11 + $0x170] sm:$0xff]
    %v1340 = vld [vmem:[#allocation11 + $0x178] sm:$0xff]
    %v1341 = vld [vmem:[%s6] sm:$0x7]
    %v1343 = vrot.slane %v1291, 3
    %v1346 = vlaneseq
    %v1347 = vshrl.u32 %v1346, 7
    %v1348 = vsub.s32 0, %v1347
    %v1349 = vrot.slane %v1341, %v1348
    %v1350 = vlaneseq
    %v1351 = vshrl.u32 %v1350, 7
    %v1352 = vsub.s32 1, %v1351
    %v1353 = vrot.slane %v1341, %v1352
    %v1354 = vlaneseq
    %v1355 = vshrl.u32 %v1354, 7
    %v1356 = vsub.s32 2, %v1355
    %v1357 = vrot.slane %v1341, %v1356
    %1361 = vmatprep.subr.mxu0 %v1339
    %1362 = vmatpush1.msra.mxu0 %v1338
    %1363 = vmatprep.subr.mxu0 %v1336
    %1364 = vmatpush1.msra.mxu0 %v1335
    %1365 = vmatprep.subr.mxu0 %v1333
    %1366 = vmatpush1.msra.mxu0 %v1332
    %1367 = vmatprep.subr.mxu0 %v1330
    %1368 = vmatpush1.msra.mxu0 %v1329
    %1369 = vmatprep.subr.mxu0 %v1327
    %1370 = vmatpush1.msra.mxu0 %v1326
    %1371 = vmatprep.subr.mxu0 %v1324
    %1372 = vmatpush1.msra.mxu0 %v1323
    %1373 = vmatprep.subr.mxu0 %v1321
    %1374 = vmatpush1.msra.mxu0 %v1320
    %1375 = vmatprep.subr.mxu0 %v1318
    %1376 = vmatpush1.msra.mxu0 %v1317
    %1377 = vmatprep.subr.mxu0 %v1315
    %1378 = vmatpush1.msra.mxu0 %v1314
    %1379 = vmatprep.subr.mxu0 %v1312
    %1380 = vmatpush1.msra.mxu0 %v1311
    %1381 = vmatprep.subr.mxu0 %v1309
    %1382 = vmatpush1.msra.mxu0 %v1308
    %1383 = vmatprep.subr.mxu0 %v1306
    %1384 = vmatpush1.msra.mxu0 %v1305
    %1385 = vmatprep.subr.mxu0 %v1303
    %1386 = vmatpush1.msra.mxu0 %v1302
    %1387 = vmatprep.subr.mxu0 %v1300
    %1388 = vmatpush1.msra.mxu0 %v1299
    %1389 = vmatprep.subr.mxu0 %v1297
    %1390 = vmatpush1.msra.mxu0 %v1296
    %1391 = vmatprep.subr.mxu0 %v1294
    %1392 = vmatpush1.msra.mxu0 %v1293
    %1393 = vmatprep.subr.mxu0 0.0
    %1394 = vmatpush2.msra.mxu0 0.0
    %1395 = vmatprep.subr.mxu0 0.0
    %1396 = vmatpush2.msra.mxu0 0.0
    %1397 = vmatprep.subr.mxu0 0.0
    %1398 = vmatpush2.msra.mxu0 0.0
    %1399 = vmatprep.subr.mxu0 0.0
    %1400 = vmatpush2.msra.mxu0 0.0
    %1401 = vmatprep.subr.mxu0 0.0
    %1402 = vmatpush2.msra.mxu0 0.0
    %1403 = vmatprep.subr.mxu0 0.0
    %1404 = vmatpush2.msra.mxu0 0.0
    %1405 = vmatprep.subr.mxu0 0.0
    %1406 = vmatpush2.msra.mxu0 0.0
    %1407 = vmatprep.subr.mxu0 0.0
    %1408 = vmatpush2.msra.mxu0 0.0
    %1409 = vmatprep.subr.mxu0 0.0
    %1410 = vmatpush2.msra.mxu0 0.0
    %1411 = vmatprep.subr.mxu0 0.0
    %1412 = vmatpush2.msra.mxu0 0.0
    %1413 = vmatprep.subr.mxu0 0.0
    %1414 = vmatpush2.msra.mxu0 0.0
    %1415 = vmatprep.subr.mxu0 0.0
    %1416 = vmatpush2.msra.mxu0 0.0
    %1417 = vmatprep.subr.mxu0 0.0
    %1418 = vmatpush2.msra.mxu0 0.0
    %1419 = vmatprep.subr.mxu0 0.0
    %1420 = vmatpush2.msra.mxu0 0.0
    %1421 = vmatprep.subr.mxu0 0.0
    %1422 = vmatpush2.msra.mxu0 0.0
    %1423 = vmatprep.subr.mxu0 0.0
    %1424 = vmatpush2.msra.mxu0 0.0
    %1425 = vmatprep.mubr.f32.mxu0 0.0
    %1426 = vmatmul.mubr.f32.gmra.mxu0 %v1343
    %v1427 = vpop.f32.mrf.mxu0
    %v1428 = vadd.f32 %v1349, %v1427
    %v1429 = vpop.f32.mrf.mxu0
    %v1430 = vadd.f32 %v1353, %v1429
    %1431 = vdwg.mxu0
    %1432 = vmatprep.subr.mxu0 0.0
    %1433 = vmatpush1.msra.mxu0 %v1340
    %1434 = vmatprep.subr.mxu0 0.0
    %1435 = vmatpush1.msra.mxu0 %v1337
    %1436 = vmatprep.subr.mxu0 0.0
    %1437 = vmatpush1.msra.mxu0 %v1334
    %1438 = vmatprep.subr.mxu0 0.0
    %1439 = vmatpush1.msra.mxu0 %v1331
    %1440 = vmatprep.subr.mxu0 0.0
    %1441 = vmatpush1.msra.mxu0 %v1328
    %1442 = vmatprep.subr.mxu0 0.0
    %1443 = vmatpush1.msra.mxu0 %v1325
    %1444 = vmatprep.subr.mxu0 0.0
    %1445 = vmatpush1.msra.mxu0 %v1322
    %1446 = vmatprep.subr.mxu0 0.0
    %1447 = vmatpush1.msra.mxu0 %v1319
    %1448 = vmatprep.subr.mxu0 0.0
    %1449 = vmatpush1.msra.mxu0 %v1316
    %1450 = vmatprep.subr.mxu0 0.0
    %1451 = vmatpush1.msra.mxu0 %v1313
    %1452 = vmatprep.subr.mxu0 0.0
    %1453 = vmatpush1.msra.mxu0 %v1310
    %1454 = vmatprep.subr.mxu0 0.0
    %1455 = vmatpush1.msra.mxu0 %v1307
    %1456 = vmatprep.subr.mxu0 0.0
    %1457 = vmatpush1.msra.mxu0 %v1304
    %1458 = vmatprep.subr.mxu0 0.0
    %1459 = vmatpush1.msra.mxu0 %v1301
    %1460 = vmatprep.subr.mxu0 0.0
    %1461 = vmatpush1.msra.mxu0 %v1298
    %1462 = vmatprep.subr.mxu0 0.0
    %1463 = vmatpush1.msra.mxu0 %v1295
    %1464 = vmatprep.subr.mxu0 0.0
    %1465 = vmatpush2.msra.mxu0 0.0
    %1466 = vmatprep.subr.mxu0 0.0
    %1467 = vmatpush2.msra.mxu0 0.0
    %1468 = vmatprep.subr.mxu0 0.0
    %1469 = vmatpush2.msra.mxu0 0.0
    %1470 = vmatprep.subr.mxu0 0.0
    %1471 = vmatpush2.msra.mxu0 0.0
    %1472 = vmatprep.subr.mxu0 0.0
    %1473 = vmatpush2.msra.mxu0 0.0
    %1474 = vmatprep.subr.mxu0 0.0
    %1475 = vmatpush2.msra.mxu0 0.0
    %1476 = vmatprep.subr.mxu0 0.0
    %1477 = vmatpush2.msra.mxu0 0.0
    %1478 = vmatprep.subr.mxu0 0.0
    %1479 = vmatpush2.msra.mxu0 0.0
    %1480 = vmatprep.subr.mxu0 0.0
    %1481 = vmatpush2.msra.mxu0 0.0
    %1482 = vmatprep.subr.mxu0 0.0
    %1483 = vmatpush2.msra.mxu0 0.0
    %1484 = vmatprep.subr.mxu0 0.0
    %1485 = vmatpush2.msra.mxu0 0.0
    %1486 = vmatprep.subr.mxu0 0.0
    %1487 = vmatpush2.msra.mxu0 0.0
    %1488 = vmatprep.subr.mxu0 0.0
    %1489 = vmatpush2.msra.mxu0 0.0
    %1490 = vmatprep.subr.mxu0 0.0
    %1491 = vmatpush2.msra.mxu0 0.0
    %1492 = vmatprep.subr.mxu0 0.0
    %1493 = vmatpush2.msra.mxu0 0.0
    %1494 = vmatprep.subr.mxu0 0.0
    %1495 = vmatpush2.msra.mxu0 0.0
    %1496 = vmatprep.mubr.f32.mxu0 0.0
    %1497 = vmatmul.mubr.f32.gmra.mxu0 %v1343
    %v1498 = vpop.f32.mrf.mxu0
    %v1499 = vadd.f32 %v1357, %v1498
    %v1500 = vpop.f32.mrf.mxu0
    %1501 = vdwg.mxu0
    %v1503 = vrot.slane %v1428, 4
    %v1505 = vadd.f32 %v266, %v1503
    %v1506 = vxor.u32 %v1505, 2147483648
    %v1507 = vmul.f32 %v1506, 1.442695
    %v1508 = vpow.pop %v1507
    %v1509 = vadd.f32 %v1508, 1.0
    %v1510 = vrcp.pop %v1509
    %v1511 = vmul.f32 1.0, %v1510
    %v1513 = vrot.slane %v1430, 4
    %v1515 = vadd.f32 %v268, %v1513
    %v1516 = vxor.u32 %v1515, 2147483648
    %v1517 = vmul.f32 %v1516, 1.442695
    %v1518 = vpow.pop %v1517
    %v1519 = vadd.f32 %v1518, 1.0
    %v1520 = vrcp.pop %v1519
    %v1521 = vmul.f32 1.0, %v1520
    %v1523 = vrot.slane %v1499, 4
    %v1525 = vmul.f32 %v1511, %v1523
    %v1526 = vadd.f32 %v337, %v1525
    %v1527 = vtanh.pop %v1526
    %v1528 = vsub.f32 1.0, %v1521
    %v1529 = vmul.f32 %v1528, %v1527
    %v1530 = vrot.slane %v1291, 7
    %v1532 = vmul.f32 %v1521, %v1530
    %v1533 = vadd.f32 %v1529, %v1532
    %1534 = vst [vmem:[#allocation3] sm:$0x10] %v1533
    %v1535 = vld [vmem:[#allocation11] sm:$0xff]
    %v1536 = vld [vmem:[#allocation11 + $0x8] sm:$0xff]
    %v1537 = vld [vmem:[#allocation11 + $0x10] sm:$0xff]
    %v1538 = vld [vmem:[#allocation11 + $0x18] sm:$0xff]
    %v1539 = vld [vmem:[#allocation11 + $0x20] sm:$0xff]
    %v1540 = vld [vmem:[#allocation11 + $0x28] sm:$0xff]
    %v1541 = vld [vmem:[#allocation11 + $0x30] sm:$0xff]
    %v1542 = vld [vmem:[#allocation11 + $0x38] sm:$0xff]
    %v1543 = vld [vmem:[#allocation11 + $0x40] sm:$0xff]
    %v1544 = vld [vmem:[#allocation11 + $0x48] sm:$0xff]
    %v1545 = vld [vmem:[#allocation11 + $0x50] sm:$0xff]
    %v1546 = vld [vmem:[#allocation11 + $0x58] sm:$0xff]
    %v1547 = vld [vmem:[#allocation11 + $0x60] sm:$0xff]
    %v1548 = vld [vmem:[#allocation11 + $0x68] sm:$0xff]
    %v1549 = vld [vmem:[#allocation11 + $0x70] sm:$0xff]
    %v1550 = vld [vmem:[#allocation11 + $0x78] sm:$0xff]
    %v1551 = vld [vmem:[#allocation11 + $0x80] sm:$0xff]
    %v1552 = vld [vmem:[#allocation11 + $0x88] sm:$0xff]
    %v1553 = vld [vmem:[#allocation11 + $0x90] sm:$0xff]
    %v1554 = vld [vmem:[#allocation11 + $0x98] sm:$0xff]
    %v1555 = vld [vmem:[#allocation11 + $0xa0] sm:$0xff]
    %v1556 = vld [vmem:[#allocation11 + $0xa8] sm:$0xff]
    %v1557 = vld [vmem:[#allocation11 + $0xb0] sm:$0xff]
    %v1558 = vld [vmem:[#allocation11 + $0xb8] sm:$0xff]
    %v1559 = vld [vmem:[#allocation11 + $0xc0] sm:$0xff]
    %v1560 = vld [vmem:[#allocation11 + $0xc8] sm:$0xff]
    %v1561 = vld [vmem:[#allocation11 + $0xd0] sm:$0xff]
    %v1562 = vld [vmem:[#allocation11 + $0xd8] sm:$0xff]
    %v1563 = vld [vmem:[#allocation11 + $0xe0] sm:$0xff]
    %v1564 = vld [vmem:[#allocation11 + $0xe8] sm:$0xff]
    %v1565 = vld [vmem:[#allocation11 + $0xf0] sm:$0xff]
    %v1566 = vld [vmem:[#allocation11 + $0xf8] sm:$0xff]
    %v1567 = vld [vmem:[#allocation11 + $0x100] sm:$0xff]
    %v1568 = vld [vmem:[#allocation11 + $0x108] sm:$0xff]
    %v1569 = vld [vmem:[#allocation11 + $0x110] sm:$0xff]
    %v1570 = vld [vmem:[#allocation11 + $0x118] sm:$0xff]
    %v1571 = vld [vmem:[#allocation11 + $0x120] sm:$0xff]
    %v1572 = vld [vmem:[#allocation11 + $0x128] sm:$0xff]
    %v1573 = vld [vmem:[#allocation11 + $0x130] sm:$0xff]
    %v1574 = vld [vmem:[#allocation11 + $0x138] sm:$0xff]
    %v1575 = vld [vmem:[#allocation11 + $0x140] sm:$0xff]
    %v1576 = vld [vmem:[#allocation11 + $0x148] sm:$0xff]
    %v1577 = vld [vmem:[#allocation11 + $0x150] sm:$0xff]
    %v1578 = vld [vmem:[#allocation11 + $0x158] sm:$0xff]
    %v1579 = vld [vmem:[#allocation11 + $0x160] sm:$0xff]
    %v1580 = vld [vmem:[#allocation11 + $0x168] sm:$0xff]
    %v1581 = vld [vmem:[#allocation11 + $0x170] sm:$0xff]
    %v1582 = vld [vmem:[#allocation11 + $0x178] sm:$0xff]
    %v1583 = vld [vmem:[%s6] sm:$0x7]
    %v1585 = vrot.slane %v1533, 4
    %v1588 = vlaneseq
    %v1589 = vshrl.u32 %v1588, 7
    %v1590 = vsub.s32 0, %v1589
    %v1591 = vrot.slane %v1583, %v1590
    %v1592 = vlaneseq
    %v1593 = vshrl.u32 %v1592, 7
    %v1594 = vsub.s32 1, %v1593
    %v1595 = vrot.slane %v1583, %v1594
    %v1596 = vlaneseq
    %v1597 = vshrl.u32 %v1596, 7
    %v1598 = vsub.s32 2, %v1597
    %v1599 = vrot.slane %v1583, %v1598
    %1603 = vmatprep.subr.mxu0 %v1581
    %1604 = vmatpush1.msra.mxu0 %v1580
    %1605 = vmatprep.subr.mxu0 %v1578
    %1606 = vmatpush1.msra.mxu0 %v1577
    %1607 = vmatprep.subr.mxu0 %v1575
    %1608 = vmatpush1.msra.mxu0 %v1574
    %1609 = vmatprep.subr.mxu0 %v1572
    %1610 = vmatpush1.msra.mxu0 %v1571
    %1611 = vmatprep.subr.mxu0 %v1569
    %1612 = vmatpush1.msra.mxu0 %v1568
    %1613 = vmatprep.subr.mxu0 %v1566
    %1614 = vmatpush1.msra.mxu0 %v1565
    %1615 = vmatprep.subr.mxu0 %v1563
    %1616 = vmatpush1.msra.mxu0 %v1562
    %1617 = vmatprep.subr.mxu0 %v1560
    %1618 = vmatpush1.msra.mxu0 %v1559
    %1619 = vmatprep.subr.mxu0 %v1557
    %1620 = vmatpush1.msra.mxu0 %v1556
    %1621 = vmatprep.subr.mxu0 %v1554
    %1622 = vmatpush1.msra.mxu0 %v1553
    %1623 = vmatprep.subr.mxu0 %v1551
    %1624 = vmatpush1.msra.mxu0 %v1550
    %1625 = vmatprep.subr.mxu0 %v1548
    %1626 = vmatpush1.msra.mxu0 %v1547
    %1627 = vmatprep.subr.mxu0 %v1545
    %1628 = vmatpush1.msra.mxu0 %v1544
    %1629 = vmatprep.subr.mxu0 %v1542
    %1630 = vmatpush1.msra.mxu0 %v1541
    %1631 = vmatprep.subr.mxu0 %v1539
    %1632 = vmatpush1.msra.mxu0 %v1538
    %1633 = vmatprep.subr.mxu0 %v1536
    %1634 = vmatpush1.msra.mxu0 %v1535
    %1635 = vmatprep.subr.mxu0 0.0
    %1636 = vmatpush2.msra.mxu0 0.0
    %1637 = vmatprep.subr.mxu0 0.0
    %1638 = vmatpush2.msra.mxu0 0.0
    %1639 = vmatprep.subr.mxu0 0.0
    %1640 = vmatpush2.msra.mxu0 0.0
    %1641 = vmatprep.subr.mxu0 0.0
    %1642 = vmatpush2.msra.mxu0 0.0
    %1643 = vmatprep.subr.mxu0 0.0
    %1644 = vmatpush2.msra.mxu0 0.0
    %1645 = vmatprep.subr.mxu0 0.0
    %1646 = vmatpush2.msra.mxu0 0.0
    %1647 = vmatprep.subr.mxu0 0.0
    %1648 = vmatpush2.msra.mxu0 0.0
    %1649 = vmatprep.subr.mxu0 0.0
    %1650 = vmatpush2.msra.mxu0 0.0
    %1651 = vmatprep.subr.mxu0 0.0
    %1652 = vmatpush2.msra.mxu0 0.0
    %1653 = vmatprep.subr.mxu0 0.0
    %1654 = vmatpush2.msra.mxu0 0.0
    %1655 = vmatprep.subr.mxu0 0.0
    %1656 = vmatpush2.msra.mxu0 0.0
    %1657 = vmatprep.subr.mxu0 0.0
    %1658 = vmatpush2.msra.mxu0 0.0
    %1659 = vmatprep.subr.mxu0 0.0
    %1660 = vmatpush2.msra.mxu0 0.0
    %1661 = vmatprep.subr.mxu0 0.0
    %1662 = vmatpush2.msra.mxu0 0.0
    %1663 = vmatprep.subr.mxu0 0.0
    %1664 = vmatpush2.msra.mxu0 0.0
    %1665 = vmatprep.subr.mxu0 0.0
    %1666 = vmatpush2.msra.mxu0 0.0
    %1667 = vmatprep.mubr.f32.mxu0 0.0
    %1668 = vmatmul.mubr.f32.gmra.mxu0 %v1585
    %v1669 = vpop.f32.mrf.mxu0
    %v1670 = vadd.f32 %v1591, %v1669
    %v1671 = vpop.f32.mrf.mxu0
    %v1672 = vadd.f32 %v1595, %v1671
    %1673 = vdwg.mxu0
    %1674 = vmatprep.subr.mxu0 0.0
    %1675 = vmatpush1.msra.mxu0 %v1582
    %1676 = vmatprep.subr.mxu0 0.0
    %1677 = vmatpush1.msra.mxu0 %v1579
    %1678 = vmatprep.subr.mxu0 0.0
    %1679 = vmatpush1.msra.mxu0 %v1576
    %1680 = vmatprep.subr.mxu0 0.0
    %1681 = vmatpush1.msra.mxu0 %v1573
    %1682 = vmatprep.subr.mxu0 0.0
    %1683 = vmatpush1.msra.mxu0 %v1570
    %1684 = vmatprep.subr.mxu0 0.0
    %1685 = vmatpush1.msra.mxu0 %v1567
    %1686 = vmatprep.subr.mxu0 0.0
    %1687 = vmatpush1.msra.mxu0 %v1564
    %1688 = vmatprep.subr.mxu0 0.0
    %1689 = vmatpush1.msra.mxu0 %v1561
    %1690 = vmatprep.subr.mxu0 0.0
    %1691 = vmatpush1.msra.mxu0 %v1558
    %1692 = vmatprep.subr.mxu0 0.0
    %1693 = vmatpush1.msra.mxu0 %v1555
    %1694 = vmatprep.subr.mxu0 0.0
    %1695 = vmatpush1.msra.mxu0 %v1552
    %1696 = vmatprep.subr.mxu0 0.0
    %1697 = vmatpush1.msra.mxu0 %v1549
    %1698 = vmatprep.subr.mxu0 0.0
    %1699 = vmatpush1.msra.mxu0 %v1546
    %1700 = vmatprep.subr.mxu0 0.0
    %1701 = vmatpush1.msra.mxu0 %v1543
    %1702 = vmatprep.subr.mxu0 0.0
    %1703 = vmatpush1.msra.mxu0 %v1540
    %1704 = vmatprep.subr.mxu0 0.0
    %1705 = vmatpush1.msra.mxu0 %v1537
    %1706 = vmatprep.subr.mxu0 0.0
    %1707 = vmatpush2.msra.mxu0 0.0
    %1708 = vmatprep.subr.mxu0 0.0
    %1709 = vmatpush2.msra.mxu0 0.0
    %1710 = vmatprep.subr.mxu0 0.0
    %1711 = vmatpush2.msra.mxu0 0.0
    %1712 = vmatprep.subr.mxu0 0.0
    %1713 = vmatpush2.msra.mxu0 0.0
    %1714 = vmatprep.subr.mxu0 0.0
    %1715 = vmatpush2.msra.mxu0 0.0
    %1716 = vmatprep.subr.mxu0 0.0
    %1717 = vmatpush2.msra.mxu0 0.0
    %1718 = vmatprep.subr.mxu0 0.0
    %1719 = vmatpush2.msra.mxu0 0.0
    %1720 = vmatprep.subr.mxu0 0.0
    %1721 = vmatpush2.msra.mxu0 0.0
    %1722 = vmatprep.subr.mxu0 0.0
    %1723 = vmatpush2.msra.mxu0 0.0
    %1724 = vmatprep.subr.mxu0 0.0
    %1725 = vmatpush2.msra.mxu0 0.0
    %1726 = vmatprep.subr.mxu0 0.0
    %1727 = vmatpush2.msra.mxu0 0.0
    %1728 = vmatprep.subr.mxu0 0.0
    %1729 = vmatpush2.msra.mxu0 0.0
    %1730 = vmatprep.subr.mxu0 0.0
    %1731 = vmatpush2.msra.mxu0 0.0
    %1732 = vmatprep.subr.mxu0 0.0
    %1733 = vmatpush2.msra.mxu0 0.0
    %1734 = vmatprep.subr.mxu0 0.0
    %1735 = vmatpush2.msra.mxu0 0.0
    %1736 = vmatprep.subr.mxu0 0.0
    %1737 = vmatpush2.msra.mxu0 0.0
    %1738 = vmatprep.mubr.f32.mxu0 0.0
    %1739 = vmatmul.mubr.f32.gmra.mxu0 %v1585
    %v1740 = vpop.f32.mrf.mxu0
    %v1741 = vadd.f32 %v1599, %v1740
    %v1742 = vpop.f32.mrf.mxu0
    %1743 = vdwg.mxu0
    %v1745 = vrot.slane %v1670, 3
    %v1747 = vadd.f32 %v266, %v1745
    %v1748 = vxor.u32 %v1747, 2147483648
    %v1749 = vmul.f32 %v1748, 1.442695
    %v1750 = vpow.pop %v1749
    %v1751 = vadd.f32 %v1750, 1.0
    %v1752 = vrcp.pop %v1751
    %v1753 = vmul.f32 1.0, %v1752
    %v1755 = vrot.slane %v1672, 3
    %v1757 = vadd.f32 %v268, %v1755
    %v1758 = vxor.u32 %v1757, 2147483648
    %v1759 = vmul.f32 %v1758, 1.442695
    %v1760 = vpow.pop %v1759
    %v1761 = vadd.f32 %v1760, 1.0
    %v1762 = vrcp.pop %v1761
    %v1763 = vmul.f32 1.0, %v1762
    %v1765 = vrot.slane %v1741, 3
    %v1767 = vmul.f32 %v1753, %v1765
    %v1768 = vadd.f32 %v337, %v1767
    %v1769 = vtanh.pop %v1768
    %v1770 = vsub.f32 1.0, %v1763
    %v1771 = vmul.f32 %v1770, %v1769
    %v1772 = vrot.slane %v1533, 7
    %v1774 = vmul.f32 %v1763, %v1772
    %v1775 = vadd.f32 %v1771, %v1774
    %1776 = vst [vmem:[#allocation3] sm:$0x20] %v1775
    %v1777 = vld [vmem:[#allocation11] sm:$0xff]
    %v1778 = vld [vmem:[#allocation11 + $0x8] sm:$0xff]
    %v1779 = vld [vmem:[#allocation11 + $0x10] sm:$0xff]
    %v1780 = vld [vmem:[#allocation11 + $0x18] sm:$0xff]
    %v1781 = vld [vmem:[#allocation11 + $0x20] sm:$0xff]
    %v1782 = vld [vmem:[#allocation11 + $0x28] sm:$0xff]
    %v1783 = vld [vmem:[#allocation11 + $0x30] sm:$0xff]
    %v1784 = vld [vmem:[#allocation11 + $0x38] sm:$0xff]
    %v1785 = vld [vmem:[#allocation11 + $0x40] sm:$0xff]
    %v1786 = vld [vmem:[#allocation11 + $0x48] sm:$0xff]
    %v1787 = vld [vmem:[#allocation11 + $0x50] sm:$0xff]
    %v1788 = vld [vmem:[#allocation11 + $0x58] sm:$0xff]
    %v1789 = vld [vmem:[#allocation11 + $0x60] sm:$0xff]
    %v1790 = vld [vmem:[#allocation11 + $0x68] sm:$0xff]
    %v1791 = vld [vmem:[#allocation11 + $0x70] sm:$0xff]
    %v1792 = vld [vmem:[#allocation11 + $0x78] sm:$0xff]
    %v1793 = vld [vmem:[#allocation11 + $0x80] sm:$0xff]
    %v1794 = vld [vmem:[#allocation11 + $0x88] sm:$0xff]
    %v1795 = vld [vmem:[#allocation11 + $0x90] sm:$0xff]
    %v1796 = vld [vmem:[#allocation11 + $0x98] sm:$0xff]
    %v1797 = vld [vmem:[#allocation11 + $0xa0] sm:$0xff]
    %v1798 = vld [vmem:[#allocation11 + $0xa8] sm:$0xff]
    %v1799 = vld [vmem:[#allocation11 + $0xb0] sm:$0xff]
    %v1800 = vld [vmem:[#allocation11 + $0xb8] sm:$0xff]
    %v1801 = vld [vmem:[#allocation11 + $0xc0] sm:$0xff]
    %v1802 = vld [vmem:[#allocation11 + $0xc8] sm:$0xff]
    %v1803 = vld [vmem:[#allocation11 + $0xd0] sm:$0xff]
    %v1804 = vld [vmem:[#allocation11 + $0xd8] sm:$0xff]
    %v1805 = vld [vmem:[#allocation11 + $0xe0] sm:$0xff]
    %v1806 = vld [vmem:[#allocation11 + $0xe8] sm:$0xff]
    %v1807 = vld [vmem:[#allocation11 + $0xf0] sm:$0xff]
    %v1808 = vld [vmem:[#allocation11 + $0xf8] sm:$0xff]
    %v1809 = vld [vmem:[#allocation11 + $0x100] sm:$0xff]
    %v1810 = vld [vmem:[#allocation11 + $0x108] sm:$0xff]
    %v1811 = vld [vmem:[#allocation11 + $0x110] sm:$0xff]
    %v1812 = vld [vmem:[#allocation11 + $0x118] sm:$0xff]
    %v1813 = vld [vmem:[#allocation11 + $0x120] sm:$0xff]
    %v1814 = vld [vmem:[#allocation11 + $0x128] sm:$0xff]
    %v1815 = vld [vmem:[#allocation11 + $0x130] sm:$0xff]
    %v1816 = vld [vmem:[#allocation11 + $0x138] sm:$0xff]
    %v1817 = vld [vmem:[#allocation11 + $0x140] sm:$0xff]
    %v1818 = vld [vmem:[#allocation11 + $0x148] sm:$0xff]
    %v1819 = vld [vmem:[#allocation11 + $0x150] sm:$0xff]
    %v1820 = vld [vmem:[#allocation11 + $0x158] sm:$0xff]
    %v1821 = vld [vmem:[#allocation11 + $0x160] sm:$0xff]
    %v1822 = vld [vmem:[#allocation11 + $0x168] sm:$0xff]
    %v1823 = vld [vmem:[#allocation11 + $0x170] sm:$0xff]
    %v1824 = vld [vmem:[#allocation11 + $0x178] sm:$0xff]
    %v1825 = vld [vmem:[%s6] sm:$0x7]
    %v1827 = vrot.slane %v1775, 5
    %v1830 = vlaneseq
    %v1831 = vshrl.u32 %v1830, 7
    %v1832 = vsub.s32 0, %v1831
    %v1833 = vrot.slane %v1825, %v1832
    %v1834 = vlaneseq
    %v1835 = vshrl.u32 %v1834, 7
    %v1836 = vsub.s32 1, %v1835
    %v1837 = vrot.slane %v1825, %v1836
    %v1838 = vlaneseq
    %v1839 = vshrl.u32 %v1838, 7
    %v1840 = vsub.s32 2, %v1839
    %v1841 = vrot.slane %v1825, %v1840
    %1845 = vmatprep.subr.mxu0 %v1823
    %1846 = vmatpush1.msra.mxu0 %v1822
    %1847 = vmatprep.subr.mxu0 %v1820
    %1848 = vmatpush1.msra.mxu0 %v1819
    %1849 = vmatprep.subr.mxu0 %v1817
    %1850 = vmatpush1.msra.mxu0 %v1816
    %1851 = vmatprep.subr.mxu0 %v1814
    %1852 = vmatpush1.msra.mxu0 %v1813
    %1853 = vmatprep.subr.mxu0 %v1811
    %1854 = vmatpush1.msra.mxu0 %v1810
    %1855 = vmatprep.subr.mxu0 %v1808
    %1856 = vmatpush1.msra.mxu0 %v1807
    %1857 = vmatprep.subr.mxu0 %v1805
    %1858 = vmatpush1.msra.mxu0 %v1804
    %1859 = vmatprep.subr.mxu0 %v1802
    %1860 = vmatpush1.msra.mxu0 %v1801
    %1861 = vmatprep.subr.mxu0 %v1799
    %1862 = vmatpush1.msra.mxu0 %v1798
    %1863 = vmatprep.subr.mxu0 %v1796
    %1864 = vmatpush1.msra.mxu0 %v1795
    %1865 = vmatprep.subr.mxu0 %v1793
    %1866 = vmatpush1.msra.mxu0 %v1792
    %1867 = vmatprep.subr.mxu0 %v1790
    %1868 = vmatpush1.msra.mxu0 %v1789
    %1869 = vmatprep.subr.mxu0 %v1787
    %1870 = vmatpush1.msra.mxu0 %v1786
    %1871 = vmatprep.subr.mxu0 %v1784
    %1872 = vmatpush1.msra.mxu0 %v1783
    %1873 = vmatprep.subr.mxu0 %v1781
    %1874 = vmatpush1.msra.mxu0 %v1780
    %1875 = vmatprep.subr.mxu0 %v1778
    %1876 = vmatpush1.msra.mxu0 %v1777
    %1877 = vmatprep.subr.mxu0 0.0
    %1878 = vmatpush2.msra.mxu0 0.0
    %1879 = vmatprep.subr.mxu0 0.0
    %1880 = vmatpush2.msra.mxu0 0.0
    %1881 = vmatprep.subr.mxu0 0.0
    %1882 = vmatpush2.msra.mxu0 0.0
    %1883 = vmatprep.subr.mxu0 0.0
    %1884 = vmatpush2.msra.mxu0 0.0
    %1885 = vmatprep.subr.mxu0 0.0
    %1886 = vmatpush2.msra.mxu0 0.0
    %1887 = vmatprep.subr.mxu0 0.0
    %1888 = vmatpush2.msra.mxu0 0.0
    %1889 = vmatprep.subr.mxu0 0.0
    %1890 = vmatpush2.msra.mxu0 0.0
    %1891 = vmatprep.subr.mxu0 0.0
    %1892 = vmatpush2.msra.mxu0 0.0
    %1893 = vmatprep.subr.mxu0 0.0
    %1894 = vmatpush2.msra.mxu0 0.0
    %1895 = vmatprep.subr.mxu0 0.0
    %1896 = vmatpush2.msra.mxu0 0.0
    %1897 = vmatprep.subr.mxu0 0.0
    %1898 = vmatpush2.msra.mxu0 0.0
    %1899 = vmatprep.subr.mxu0 0.0
    %1900 = vmatpush2.msra.mxu0 0.0
    %1901 = vmatprep.subr.mxu0 0.0
    %1902 = vmatpush2.msra.mxu0 0.0
    %1903 = vmatprep.subr.mxu0 0.0
    %1904 = vmatpush2.msra.mxu0 0.0
    %1905 = vmatprep.subr.mxu0 0.0
    %1906 = vmatpush2.msra.mxu0 0.0
    %1907 = vmatprep.subr.mxu0 0.0
    %1908 = vmatpush2.msra.mxu0 0.0
    %1909 = vmatprep.mubr.f32.mxu0 0.0
    %1910 = vmatmul.mubr.f32.gmra.mxu0 %v1827
    %v1911 = vpop.f32.mrf.mxu0
    %v1912 = vadd.f32 %v1833, %v1911
    %v1913 = vpop.f32.mrf.mxu0
    %v1914 = vadd.f32 %v1837, %v1913
    %1915 = vdwg.mxu0
    %1916 = vmatprep.subr.mxu0 0.0
    %1917 = vmatpush1.msra.mxu0 %v1824
    %1918 = vmatprep.subr.mxu0 0.0
    %1919 = vmatpush1.msra.mxu0 %v1821
    %1920 = vmatprep.subr.mxu0 0.0
    %1921 = vmatpush1.msra.mxu0 %v1818
    %1922 = vmatprep.subr.mxu0 0.0
    %1923 = vmatpush1.msra.mxu0 %v1815
    %1924 = vmatprep.subr.mxu0 0.0
    %1925 = vmatpush1.msra.mxu0 %v1812
    %1926 = vmatprep.subr.mxu0 0.0
    %1927 = vmatpush1.msra.mxu0 %v1809
    %1928 = vmatprep.subr.mxu0 0.0
    %1929 = vmatpush1.msra.mxu0 %v1806
    %1930 = vmatprep.subr.mxu0 0.0
    %1931 = vmatpush1.msra.mxu0 %v1803
    %1932 = vmatprep.subr.mxu0 0.0
    %1933 = vmatpush1.msra.mxu0 %v1800
    %1934 = vmatprep.subr.mxu0 0.0
    %1935 = vmatpush1.msra.mxu0 %v1797
    %1936 = vmatprep.subr.mxu0 0.0
    %1937 = vmatpush1.msra.mxu0 %v1794
    %1938 = vmatprep.subr.mxu0 0.0
    %1939 = vmatpush1.msra.mxu0 %v1791
    %1940 = vmatprep.subr.mxu0 0.0
    %1941 = vmatpush1.msra.mxu0 %v1788
    %1942 = vmatprep.subr.mxu0 0.0
    %1943 = vmatpush1.msra.mxu0 %v1785
    %1944 = vmatprep.subr.mxu0 0.0
    %1945 = vmatpush1.msra.mxu0 %v1782
    %1946 = vmatprep.subr.mxu0 0.0
    %1947 = vmatpush1.msra.mxu0 %v1779
    %1948 = vmatprep.subr.mxu0 0.0
    %1949 = vmatpush2.msra.mxu0 0.0
    %1950 = vmatprep.subr.mxu0 0.0
    %1951 = vmatpush2.msra.mxu0 0.0
    %1952 = vmatprep.subr.mxu0 0.0
    %1953 = vmatpush2.msra.mxu0 0.0
    %1954 = vmatprep.subr.mxu0 0.0
    %1955 = vmatpush2.msra.mxu0 0.0
    %1956 = vmatprep.subr.mxu0 0.0
    %1957 = vmatpush2.msra.mxu0 0.0
    %1958 = vmatprep.subr.mxu0 0.0
    %1959 = vmatpush2.msra.mxu0 0.0
    %1960 = vmatprep.subr.mxu0 0.0
    %1961 = vmatpush2.msra.mxu0 0.0
    %1962 = vmatprep.subr.mxu0 0.0
    %1963 = vmatpush2.msra.mxu0 0.0
    %1964 = vmatprep.subr.mxu0 0.0
    %1965 = vmatpush2.msra.mxu0 0.0
    %1966 = vmatprep.subr.mxu0 0.0
    %1967 = vmatpush2.msra.mxu0 0.0
    %1968 = vmatprep.subr.mxu0 0.0
    %1969 = vmatpush2.msra.mxu0 0.0
    %1970 = vmatprep.subr.mxu0 0.0
    %1971 = vmatpush2.msra.mxu0 0.0
    %1972 = vmatprep.subr.mxu0 0.0
    %1973 = vmatpush2.msra.mxu0 0.0
    %1974 = vmatprep.subr.mxu0 0.0
    %1975 = vmatpush2.msra.mxu0 0.0
    %1976 = vmatprep.subr.mxu0 0.0
    %1977 = vmatpush2.msra.mxu0 0.0
    %1978 = vmatprep.subr.mxu0 0.0
    %1979 = vmatpush2.msra.mxu0 0.0
    %1980 = vmatprep.mubr.f32.mxu0 0.0
    %1981 = vmatmul.mubr.f32.gmra.mxu0 %v1827
    %v1982 = vpop.f32.mrf.mxu0
    %v1983 = vadd.f32 %v1841, %v1982
    %v1984 = vpop.f32.mrf.mxu0
    %1985 = vdwg.mxu0
    %v1987 = vrot.slane %v1912, 2
    %v1989 = vadd.f32 %v266, %v1987
    %v1990 = vxor.u32 %v1989, 2147483648
    %v1991 = vmul.f32 %v1990, 1.442695
    %v1992 = vpow.pop %v1991
    %v1993 = vadd.f32 %v1992, 1.0
    %v1994 = vrcp.pop %v1993
    %v1995 = vmul.f32 1.0, %v1994
    %v1997 = vrot.slane %v1914, 2
    %v1999 = vadd.f32 %v268, %v1997
    %v2000 = vxor.u32 %v1999, 2147483648
    %v2001 = vmul.f32 %v2000, 1.442695
    %v2002 = vpow.pop %v2001
    %v2003 = vadd.f32 %v2002, 1.0
    %v2004 = vrcp.pop %v2003
    %v2005 = vmul.f32 1.0, %v2004
    %v2007 = vrot.slane %v1983, 2
    %v2009 = vmul.f32 %v1995, %v2007
    %v2010 = vadd.f32 %v337, %v2009
    %v2011 = vtanh.pop %v2010
    %v2012 = vsub.f32 1.0, %v2005
    %v2013 = vmul.f32 %v2012, %v2011
    %v2014 = vrot.slane %v1775, 7
    %v2016 = vmul.f32 %v2005, %v2014
    %v2017 = vadd.f32 %v2013, %v2016
    %2018 = vst [vmem:[#allocation3] sm:$0x40] %v2017
    %v2019 = vld [vmem:[#allocation11] sm:$0xff]
    %v2020 = vld [vmem:[#allocation11 + $0x8] sm:$0xff]
    %v2021 = vld [vmem:[#allocation11 + $0x10] sm:$0xff]
    %v2022 = vld [vmem:[#allocation11 + $0x18] sm:$0xff]
    %v2023 = vld [vmem:[#allocation11 + $0x20] sm:$0xff]
    %v2024 = vld [vmem:[#allocation11 + $0x28] sm:$0xff]
    %v2025 = vld [vmem:[#allocation11 + $0x30] sm:$0xff]
    %v2026 = vld [vmem:[#allocation11 + $0x38] sm:$0xff]
    %v2027 = vld [vmem:[#allocation11 + $0x40] sm:$0xff]
    %v2028 = vld [vmem:[#allocation11 + $0x48] sm:$0xff]
    %v2029 = vld [vmem:[#allocation11 + $0x50] sm:$0xff]
    %v2030 = vld [vmem:[#allocation11 + $0x58] sm:$0xff]
    %v2031 = vld [vmem:[#allocation11 + $0x60] sm:$0xff]
    %v2032 = vld [vmem:[#allocation11 + $0x68] sm:$0xff]
    %v2033 = vld [vmem:[#allocation11 + $0x70] sm:$0xff]
    %v2034 = vld [vmem:[#allocation11 + $0x78] sm:$0xff]
    %v2035 = vld [vmem:[#allocation11 + $0x80] sm:$0xff]
    %v2036 = vld [vmem:[#allocation11 + $0x88] sm:$0xff]
    %v2037 = vld [vmem:[#allocation11 + $0x90] sm:$0xff]
    %v2038 = vld [vmem:[#allocation11 + $0x98] sm:$0xff]
    %v2039 = vld [vmem:[#allocation11 + $0xa0] sm:$0xff]
    %v2040 = vld [vmem:[#allocation11 + $0xa8] sm:$0xff]
    %v2041 = vld [vmem:[#allocation11 + $0xb0] sm:$0xff]
    %v2042 = vld [vmem:[#allocation11 + $0xb8] sm:$0xff]
    %v2043 = vld [vmem:[#allocation11 + $0xc0] sm:$0xff]
    %v2044 = vld [vmem:[#allocation11 + $0xc8] sm:$0xff]
    %v2045 = vld [vmem:[#allocation11 + $0xd0] sm:$0xff]
    %v2046 = vld [vmem:[#allocation11 + $0xd8] sm:$0xff]
    %v2047 = vld [vmem:[#allocation11 + $0xe0] sm:$0xff]
    %v2048 = vld [vmem:[#allocation11 + $0xe8] sm:$0xff]
    %v2049 = vld [vmem:[#allocation11 + $0xf0] sm:$0xff]
    %v2050 = vld [vmem:[#allocation11 + $0xf8] sm:$0xff]
    %v2051 = vld [vmem:[#allocation11 + $0x100] sm:$0xff]
    %v2052 = vld [vmem:[#allocation11 + $0x108] sm:$0xff]
    %v2053 = vld [vmem:[#allocation11 + $0x110] sm:$0xff]
    %v2054 = vld [vmem:[#allocation11 + $0x118] sm:$0xff]
    %v2055 = vld [vmem:[#allocation11 + $0x120] sm:$0xff]
    %v2056 = vld [vmem:[#allocation11 + $0x128] sm:$0xff]
    %v2057 = vld [vmem:[#allocation11 + $0x130] sm:$0xff]
    %v2058 = vld [vmem:[#allocation11 + $0x138] sm:$0xff]
    %v2059 = vld [vmem:[#allocation11 + $0x140] sm:$0xff]
    %v2060 = vld [vmem:[#allocation11 + $0x148] sm:$0xff]
    %v2061 = vld [vmem:[#allocation11 + $0x150] sm:$0xff]
    %v2062 = vld [vmem:[#allocation11 + $0x158] sm:$0xff]
    %v2063 = vld [vmem:[#allocation11 + $0x160] sm:$0xff]
    %v2064 = vld [vmem:[#allocation11 + $0x168] sm:$0xff]
    %v2065 = vld [vmem:[#allocation11 + $0x170] sm:$0xff]
    %v2066 = vld [vmem:[#allocation11 + $0x178] sm:$0xff]
    %v2067 = vld [vmem:[%s6] sm:$0x7]
    %v2069 = vrot.slane %v2017, 6
    %v2072 = vlaneseq
    %v2073 = vshrl.u32 %v2072, 7
    %v2074 = vsub.s32 0, %v2073
    %v2075 = vrot.slane %v2067, %v2074
    %v2076 = vlaneseq
    %v2077 = vshrl.u32 %v2076, 7
    %v2078 = vsub.s32 1, %v2077
    %v2079 = vrot.slane %v2067, %v2078
    %v2080 = vlaneseq
    %v2081 = vshrl.u32 %v2080, 7
    %v2082 = vsub.s32 2, %v2081
    %v2083 = vrot.slane %v2067, %v2082
    %2087 = vmatprep.subr.mxu0 %v2065
    %2088 = vmatpush1.msra.mxu0 %v2064
    %2089 = vmatprep.subr.mxu0 %v2062
    %2090 = vmatpush1.msra.mxu0 %v2061
    %2091 = vmatprep.subr.mxu0 %v2059
    %2092 = vmatpush1.msra.mxu0 %v2058
    %2093 = vmatprep.subr.mxu0 %v2056
    %2094 = vmatpush1.msra.mxu0 %v2055
    %2095 = vmatprep.subr.mxu0 %v2053
    %2096 = vmatpush1.msra.mxu0 %v2052
    %2097 = vmatprep.subr.mxu0 %v2050
    %2098 = vmatpush1.msra.mxu0 %v2049
    %2099 = vmatprep.subr.mxu0 %v2047
    %2100 = vmatpush1.msra.mxu0 %v2046
    %2101 = vmatprep.subr.mxu0 %v2044
    %2102 = vmatpush1.msra.mxu0 %v2043
    %2103 = vmatprep.subr.mxu0 %v2041
    %2104 = vmatpush1.msra.mxu0 %v2040
    %2105 = vmatprep.subr.mxu0 %v2038
    %2106 = vmatpush1.msra.mxu0 %v2037
    %2107 = vmatprep.subr.mxu0 %v2035
    %2108 = vmatpush1.msra.mxu0 %v2034
    %2109 = vmatprep.subr.mxu0 %v2032
    %2110 = vmatpush1.msra.mxu0 %v2031
    %2111 = vmatprep.subr.mxu0 %v2029
    %2112 = vmatpush1.msra.mxu0 %v2028
    %2113 = vmatprep.subr.mxu0 %v2026
    %2114 = vmatpush1.msra.mxu0 %v2025
    %2115 = vmatprep.subr.mxu0 %v2023
    %2116 = vmatpush1.msra.mxu0 %v2022
    %2117 = vmatprep.subr.mxu0 %v2020
    %2118 = vmatpush1.msra.mxu0 %v2019
    %2119 = vmatprep.subr.mxu0 0.0
    %2120 = vmatpush2.msra.mxu0 0.0
    %2121 = vmatprep.subr.mxu0 0.0
    %2122 = vmatpush2.msra.mxu0 0.0
    %2123 = vmatprep.subr.mxu0 0.0
    %2124 = vmatpush2.msra.mxu0 0.0
    %2125 = vmatprep.subr.mxu0 0.0
    %2126 = vmatpush2.msra.mxu0 0.0
    %2127 = vmatprep.subr.mxu0 0.0
    %2128 = vmatpush2.msra.mxu0 0.0
    %2129 = vmatprep.subr.mxu0 0.0
    %2130 = vmatpush2.msra.mxu0 0.0
    %2131 = vmatprep.subr.mxu0 0.0
    %2132 = vmatpush2.msra.mxu0 0.0
    %2133 = vmatprep.subr.mxu0 0.0
    %2134 = vmatpush2.msra.mxu0 0.0
    %2135 = vmatprep.subr.mxu0 0.0
    %2136 = vmatpush2.msra.mxu0 0.0
    %2137 = vmatprep.subr.mxu0 0.0
    %2138 = vmatpush2.msra.mxu0 0.0
    %2139 = vmatprep.subr.mxu0 0.0
    %2140 = vmatpush2.msra.mxu0 0.0
    %2141 = vmatprep.subr.mxu0 0.0
    %2142 = vmatpush2.msra.mxu0 0.0
    %2143 = vmatprep.subr.mxu0 0.0
    %2144 = vmatpush2.msra.mxu0 0.0
    %2145 = vmatprep.subr.mxu0 0.0
    %2146 = vmatpush2.msra.mxu0 0.0
    %2147 = vmatprep.subr.mxu0 0.0
    %2148 = vmatpush2.msra.mxu0 0.0
    %2149 = vmatprep.subr.mxu0 0.0
    %2150 = vmatpush2.msra.mxu0 0.0
    %2151 = vmatprep.mubr.f32.mxu0 0.0
    %2152 = vmatmul.mubr.f32.gmra.mxu0 %v2069
    %v2153 = vpop.f32.mrf.mxu0
    %v2154 = vadd.f32 %v2075, %v2153
    %v2155 = vpop.f32.mrf.mxu0
    %v2156 = vadd.f32 %v2079, %v2155
    %2157 = vdwg.mxu0
    %2158 = vmatprep.subr.mxu0 0.0
    %2159 = vmatpush1.msra.mxu0 %v2066
    %2160 = vmatprep.subr.mxu0 0.0
    %2161 = vmatpush1.msra.mxu0 %v2063
    %2162 = vmatprep.subr.mxu0 0.0
    %2163 = vmatpush1.msra.mxu0 %v2060
    %2164 = vmatprep.subr.mxu0 0.0
    %2165 = vmatpush1.msra.mxu0 %v2057
    %2166 = vmatprep.subr.mxu0 0.0
    %2167 = vmatpush1.msra.mxu0 %v2054
    %2168 = vmatprep.subr.mxu0 0.0
    %2169 = vmatpush1.msra.mxu0 %v2051
    %2170 = vmatprep.subr.mxu0 0.0
    %2171 = vmatpush1.msra.mxu0 %v2048
    %2172 = vmatprep.subr.mxu0 0.0
    %2173 = vmatpush1.msra.mxu0 %v2045
    %2174 = vmatprep.subr.mxu0 0.0
    %2175 = vmatpush1.msra.mxu0 %v2042
    %2176 = vmatprep.subr.mxu0 0.0
    %2177 = vmatpush1.msra.mxu0 %v2039
    %2178 = vmatprep.subr.mxu0 0.0
    %2179 = vmatpush1.msra.mxu0 %v2036
    %2180 = vmatprep.subr.mxu0 0.0
    %2181 = vmatpush1.msra.mxu0 %v2033
    %2182 = vmatprep.subr.mxu0 0.0
    %2183 = vmatpush1.msra.mxu0 %v2030
    %2184 = vmatprep.subr.mxu0 0.0
    %2185 = vmatpush1.msra.mxu0 %v2027
    %2186 = vmatprep.subr.mxu0 0.0
    %2187 = vmatpush1.msra.mxu0 %v2024
    %2188 = vmatprep.subr.mxu0 0.0
    %2189 = vmatpush1.msra.mxu0 %v2021
    %2190 = vmatprep.subr.mxu0 0.0
    %2191 = vmatpush2.msra.mxu0 0.0
    %2192 = vmatprep.subr.mxu0 0.0
    %2193 = vmatpush2.msra.mxu0 0.0
    %2194 = vmatprep.subr.mxu0 0.0
    %2195 = vmatpush2.msra.mxu0 0.0
    %2196 = vmatprep.subr.mxu0 0.0
    %2197 = vmatpush2.msra.mxu0 0.0
    %2198 = vmatprep.subr.mxu0 0.0
    %2199 = vmatpush2.msra.mxu0 0.0
    %2200 = vmatprep.subr.mxu0 0.0
    %2201 = vmatpush2.msra.mxu0 0.0
    %2202 = vmatprep.subr.mxu0 0.0
    %2203 = vmatpush2.msra.mxu0 0.0
    %2204 = vmatprep.subr.mxu0 0.0
    %2205 = vmatpush2.msra.mxu0 0.0
    %2206 = vmatprep.subr.mxu0 0.0
    %2207 = vmatpush2.msra.mxu0 0.0
    %2208 = vmatprep.subr.mxu0 0.0
    %2209 = vmatpush2.msra.mxu0 0.0
    %2210 = vmatprep.subr.mxu0 0.0
    %2211 = vmatpush2.msra.mxu0 0.0
    %2212 = vmatprep.subr.mxu0 0.0
    %2213 = vmatpush2.msra.mxu0 0.0
    %2214 = vmatprep.subr.mxu0 0.0
    %2215 = vmatpush2.msra.mxu0 0.0
    %2216 = vmatprep.subr.mxu0 0.0
    %2217 = vmatpush2.msra.mxu0 0.0
    %2218 = vmatprep.subr.mxu0 0.0
    %2219 = vmatpush2.msra.mxu0 0.0
    %2220 = vmatprep.subr.mxu0 0.0
    %2221 = vmatpush2.msra.mxu0 0.0
    %2222 = vmatprep.mubr.f32.mxu0 0.0
    %2223 = vmatmul.mubr.f32.gmra.mxu0 %v2069
    %v2224 = vpop.f32.mrf.mxu0
    %v2225 = vadd.f32 %v2083, %v2224
    %v2226 = vpop.f32.mrf.mxu0
    %2227 = vdwg.mxu0
    %v2229 = vrot.slane %v2154, 1
    %v2231 = vadd.f32 %v266, %v2229
    %v2232 = vxor.u32 %v2231, 2147483648
    %v2233 = vmul.f32 %v2232, 1.442695
    %v2234 = vpow.pop %v2233
    %v2235 = vadd.f32 %v2234, 1.0
    %v2236 = vrcp.pop %v2235
    %v2237 = vmul.f32 1.0, %v2236
    %v2239 = vrot.slane %v2156, 1
    %v2241 = vadd.f32 %v268, %v2239
    %v2242 = vxor.u32 %v2241, 2147483648
    %v2243 = vmul.f32 %v2242, 1.442695
    %v2244 = vpow.pop %v2243
    %v2245 = vadd.f32 %v2244, 1.0
    %v2246 = vrcp.pop %v2245
    %v2247 = vmul.f32 1.0, %v2246
    %v2249 = vrot.slane %v2225, 1
    %v2251 = vmul.f32 %v2237, %v2249
    %v2252 = vadd.f32 %v337, %v2251
    %v2253 = vtanh.pop %v2252
    %v2254 = vsub.f32 1.0, %v2247
    %v2255 = vmul.f32 %v2254, %v2253
    %v2256 = vrot.slane %v2017, 7
    %v2258 = vmul.f32 %v2247, %v2256
    %v2259 = vadd.f32 %v2255, %v2258
    %2260 = vst [vmem:[#allocation3] sm:$0x80] %v2259
    %2261 = vst [vmem:[#allocation15 - $0x7] sm:$0x80] %v2259
    %v2262 = vld [vmem:[#allocation3] sm:$0xff]
    %v2263 = vld [vmem:[#allocation12] sm:$0xff]
    %v2264 = vld [vmem:[#allocation12 + $0x8] sm:$0xff]
    %v2265 = vld [vmem:[#allocation12 + $0x10] sm:$0xff]
    %v2266 = vld [vmem:[#allocation12 + $0x18] sm:$0xff]
    %v2267 = vld [vmem:[#allocation12 + $0x20] sm:$0xff]
    %v2268 = vld [vmem:[#allocation12 + $0x28] sm:$0xff]
    %v2269 = vld [vmem:[#allocation12 + $0x30] sm:$0xff]
    %v2270 = vld [vmem:[#allocation12 + $0x38] sm:$0xff]
    %v2271 = vld [vmem:[#allocation12 + $0x40] sm:$0xff]
    %v2272 = vld [vmem:[#allocation12 + $0x48] sm:$0xff]
    %v2273 = vld [vmem:[#allocation12 + $0x50] sm:$0xff]
    %v2274 = vld [vmem:[#allocation12 + $0x58] sm:$0xff]
    %v2275 = vld [vmem:[#allocation12 + $0x60] sm:$0xff]
    %v2276 = vld [vmem:[#allocation12 + $0x68] sm:$0xff]
    %v2277 = vld [vmem:[#allocation12 + $0x70] sm:$0xff]
    %v2278 = vld [vmem:[#allocation12 + $0x78] sm:$0xff]
    %v2279 = vld [vmem:[%s8] sm:$0x1]
    %v2281 = vlaneseq
    %v2282 = vshrl.u32 %v2281, 7
    %v2283 = vsub.s32 0, %v2282
    %v2284 = vrot.slane %v2279, %v2283
    %2286 = vmatprep.subr.mxu0 0.0
    %2287 = vmatpush1.msra.mxu0 %v2278
    %2288 = vmatprep.subr.mxu0 0.0
    %2289 = vmatpush1.msra.mxu0 %v2277
    %2290 = vmatprep.subr.mxu0 0.0
    %2291 = vmatpush1.msra.mxu0 %v2276
    %2292 = vmatprep.subr.mxu0 0.0
    %2293 = vmatpush1.msra.mxu0 %v2275
    %2294 = vmatprep.subr.mxu0 0.0
    %2295 = vmatpush1.msra.mxu0 %v2274
    %2296 = vmatprep.subr.mxu0 0.0
    %2297 = vmatpush1.msra.mxu0 %v2273
    %2298 = vmatprep.subr.mxu0 0.0
    %2299 = vmatpush1.msra.mxu0 %v2272
    %2300 = vmatprep.subr.mxu0 0.0
    %2301 = vmatpush1.msra.mxu0 %v2271
    %2302 = vmatprep.subr.mxu0 0.0
    %2303 = vmatpush1.msra.mxu0 %v2270
    %2304 = vmatprep.subr.mxu0 0.0
    %2305 = vmatpush1.msra.mxu0 %v2269
    %2306 = vmatprep.subr.mxu0 0.0
    %2307 = vmatpush1.msra.mxu0 %v2268
    %2308 = vmatprep.subr.mxu0 0.0
    %2309 = vmatpush1.msra.mxu0 %v2267
    %2310 = vmatprep.subr.mxu0 0.0
    %2311 = vmatpush1.msra.mxu0 %v2266
    %2312 = vmatprep.subr.mxu0 0.0
    %2313 = vmatpush1.msra.mxu0 %v2265
    %2314 = vmatprep.subr.mxu0 0.0
    %2315 = vmatpush1.msra.mxu0 %v2264
    %2316 = vmatprep.subr.mxu0 0.0
    %2317 = vmatpush1.msra.mxu0 %v2263
    %2318 = vmatprep.subr.mxu0 0.0
    %2319 = vmatpush2.msra.mxu0 0.0
    %2320 = vmatprep.subr.mxu0 0.0
    %2321 = vmatpush2.msra.mxu0 0.0
    %2322 = vmatprep.subr.mxu0 0.0
    %2323 = vmatpush2.msra.mxu0 0.0
    %2324 = vmatprep.subr.mxu0 0.0
    %2325 = vmatpush2.msra.mxu0 0.0
    %2326 = vmatprep.subr.mxu0 0.0
    %2327 = vmatpush2.msra.mxu0 0.0
    %2328 = vmatprep.subr.mxu0 0.0
    %2329 = vmatpush2.msra.mxu0 0.0
    %2330 = vmatprep.subr.mxu0 0.0
    %2331 = vmatpush2.msra.mxu0 0.0
    %2332 = vmatprep.subr.mxu0 0.0
    %2333 = vmatpush2.msra.mxu0 0.0
    %2334 = vmatprep.subr.mxu0 0.0
    %2335 = vmatpush2.msra.mxu0 0.0
    %2336 = vmatprep.subr.mxu0 0.0
    %2337 = vmatpush2.msra.mxu0 0.0
    %2338 = vmatprep.subr.mxu0 0.0
    %2339 = vmatpush2.msra.mxu0 0.0
    %2340 = vmatprep.subr.mxu0 0.0
    %2341 = vmatpush2.msra.mxu0 0.0
    %2342 = vmatprep.subr.mxu0 0.0
    %2343 = vmatpush2.msra.mxu0 0.0
    %2344 = vmatprep.subr.mxu0 0.0
    %2345 = vmatpush2.msra.mxu0 0.0
    %2346 = vmatprep.subr.mxu0 0.0
    %2347 = vmatpush2.msra.mxu0 0.0
    %2348 = vmatprep.subr.mxu0 0.0
    %2349 = vmatpush2.msra.mxu0 0.0
    %2350 = vmatprep.mubr.f32.mxu0 0.0
    %2351 = vmatmul.mubr.f32.gmra.mxu0 %v2262
    %v2352 = vpop.f32.mrf.mxu0
    %v2353 = vadd.f32 %v2284, %v2352
    %v2354 = vpop.f32.mrf.mxu0
    %2355 = vdwg.mxu0
    %2356 = vmax.xlane.f32.xlu0 %v2353
    %v2357 = vpop.xlane.xlu0 %2356
    %v2358 = vsub.f32 %v2353, %v2357
    %v2359 = vmul.f32 %v2358, 1.442695
    %v2360 = vpow.pop %v2359
    %2361 = vadd.xlane.f32.xlu0 %v2360
    %v2362 = vpop.xlane.xlu0 %2361
    %v2363 = vlog2.pop %v2362
    %v2364 = vmul.f32 %v2363, 0.6931472
    %v2365 = vsub.f32 %v2358, %v2364
    %2366 = vst [vmem:[#allocation14] sm:$0xff] %v2365
    // Predicated region
    $region50: #{tpu_custom_call.1} parent=1 // pred_check
      _
    $region51: #{tpu_custom_call.1} parent=1 // pred_check_branch
      %2368 = sbr.rel (0) target = $region53
    $region52: #{tpu_custom_call.1} parent=1 // pred_region
      %s2370 = ssub.s32 128, 128
      %2371 = vsyncadd [#allocation8], %s2370
      %s2373 = sshll.u32 [#allocation14], 4
      %s2374 = int_to_ptr.vmem [resolvable:$true] %s2373
      %2376 = dma.vmem_to_hbm [thread:$0]  %s2374, 128, %s9, [#allocation8]
    $region53: #{tpu_custom_call.1} parent=1 // pred_fallthru
      _
    // Predicated region
    $region54: #{tpu_custom_call.1} parent=1 // pred_check
      _
    $region55: #{tpu_custom_call.1} parent=1 // pred_check_branch
      %2378 = sbr.rel (0) target = $region57
    $region56: #{tpu_custom_call.1} parent=1 // pred_region
      %s2380 = ssub.s32 16, 16
      %2381 = vsyncadd [#allocation16], %s2380
      %s2383 = sshll.u32 [#allocation15], 4
      %s2384 = int_to_ptr.vmem [resolvable:$true] %s2383
      %2386 = dma.vmem_to_hbm [thread:$0]  %s2384, 16, %s10, [#allocation16]
    $region57: #{tpu_custom_call.1} parent=1 // pred_fallthru
      _
    // Predicated region
    $region58: #{tpu_custom_call.1} parent=1 // pred_check
      _
    $region59: #{tpu_custom_call.1} parent=1 // pred_check_branch
      %2388 = sbr.rel (0) target = $region61
    $region60: #{tpu_custom_call.1} parent=1 // pred_region
      %2389 = dma.done [#allocation8], 128
    $region61: #{tpu_custom_call.1} parent=1 // pred_fallthru
      _
    // Predicated region
    $region62: #{tpu_custom_call.1} parent=1 // pred_check
      _
    $region63: #{tpu_custom_call.1} parent=1 // pred_check_branch
      %2391 = sbr.rel (0) target = $region65
    $region64: #{tpu_custom_call.1} parent=1 // pred_region
      %2392 = dma.done [#allocation16], 16
    $region65: #{tpu_custom_call.1} parent=1 // pred_fallthru
      _
    %2393 = vsyncpa [#allocation7], 1
    %2394 = vsyncpa [#allocation10], 1
    %2395 = vsyncpa [#allocation13], 1
    %2396 = vsyncpa [#allocation8], 1
    %2397 = vsyncpa [#allocation16], 1

</llo_original>
